<compile_context>
chip_gen: v5e
topology: v5e:2x2
jax: 0.10.0
libtpu: 0.0.40
codegen_flags: <defaults>
</compile_context>

<pallas_src>
import functools
import math

import jax
import jax.numpy as jnp
from jax.experimental import pallas as pl
from jax.experimental.pallas import tpu as pltpu


_MAX_ROW_TILE = 256  # keeps double-buffered weight + activation tiles inside
                     # v5e's 16 MiB scoped-VMEM default for realistic E/FF


def _row_tile(n_rows, max_rows=_MAX_ROW_TILE):
    """Row tile: <= max_rows, and >=2 blocks when cleanly possible (v7x 2 TCs)."""
    if n_rows <= max_rows:
        if n_rows >= 16 and n_rows % 16 == 0:
            return n_rows // 2
        return n_rows
    return max_rows


_CP1 = pltpu.CompilerParams(dimension_semantics=("parallel",))


# ---------------------------------------------------------------------------
# Kernels
# ---------------------------------------------------------------------------
def _sa_qkv_kernel(x_ref, pos_ref, wqk_ref, bqk_ref, wv_ref, bv_ref,
                   q_ref, k_ref, v_ref):
    # q/k = (x + query_pos) @ [Wq';Wk]^T + [bq';bk]   (scale already in Wq'/bq')
    # v   =  x              @  Wv^T       +  bv
    x = x_ref[...].astype(jnp.float32)
    xp = x + pos_ref[...].astype(jnp.float32)
    qk = jnp.dot(xp, wqk_ref[...], preferred_element_type=jnp.float32) + bqk_ref[...]
    e = q_ref.shape[-1]
    q_ref[...] = qk[:, :e].astype(q_ref.dtype)
    k_ref[...] = qk[:, e:].astype(k_ref.dtype)
    v_ref[...] = (jnp.dot(x, wv_ref[...], preferred_element_type=jnp.float32)
                  + bv_ref[...]).astype(v_ref.dtype)


def _ca_kv_kernel(g_ref, pos_ref, wk_ref, bk_ref, wv_ref, bv_ref, k_ref, v_ref):
    # k = (g + pos) @ Wk^T + bk ;  v = g @ Wv^T + bv
    g = g_ref[...].astype(jnp.float32)
    gp = g + pos_ref[...].astype(jnp.float32)
    k_ref[...] = (jnp.dot(gp, wk_ref[...], preferred_element_type=jnp.float32)
                  + bk_ref[...]).astype(k_ref.dtype)
    v_ref[...] = (jnp.dot(g, wv_ref[...], preferred_element_type=jnp.float32)
                  + bv_ref[...]).astype(v_ref.dtype)


def _attn_kernel(q_ref, k_ref, v_ref, o_ref, *, nhead):
    # Per-batch attention over all heads.  q/k/v keep heads concatenated along
    # the lane axis; output is written lane-dense (width E).  Scale is folded
    # into the Q projection.
    q = q_ref[...].astype(jnp.float32)       # (Lq, E)
    k = k_ref[...].astype(jnp.float32)       # (Lk, E)
    v = v_ref[...].astype(jnp.float32)       # (Lk, E)
    e = q.shape[-1]
    dh = e // nhead
    outs = []
    for h in range(nhead):
        sl = slice(h * dh, (h + 1) * dh)
        s = jax.lax.dot_general(q[:, sl], k[:, sl],
                                (((1,), (1,)), ((), ())),
                                preferred_element_type=jnp.float32)  # (Lq, Lk)
        m = jnp.max(s, axis=-1, keepdims=True)
        p = jnp.exp(s - m)
        l = jnp.sum(p, axis=-1, keepdims=True)
        o = jnp.dot(p, v[:, sl], preferred_element_type=jnp.float32)
        outs.append(o * pl.reciprocal(l, approx=True))
    o_ref[...] = jnp.concatenate(outs, axis=-1).astype(o_ref.dtype)


def _layernorm(x, g, b, eps):
    mean = jnp.mean(x, axis=-1, keepdims=True)
    xc = x - mean
    var = jnp.mean(xc * xc, axis=-1, keepdims=True)
    return xc * jax.lax.rsqrt(var + eps) * g + b


def _sa_tail_kernel(a_ref, wo_ref, bo_ref, res_ref, g_ref, be_ref,
                    qpos_ref, wq_ref, bq_ref, x_ref, q_ref, *, eps):
    # x = LN1(residual + attn @ Wo^T + bo);  q_ca = (x + query_pos) @ Wq'^T + bq'
    y = (jnp.dot(a_ref[...].astype(jnp.float32), wo_ref[...],
                 preferred_element_type=jnp.float32) + bo_ref[...])
    xn = _layernorm(y + res_ref[...].astype(jnp.float32),
                    g_ref[...], be_ref[...], eps)
    x_ref[...] = xn.astype(x_ref.dtype)
    qin = xn + qpos_ref[...].astype(jnp.float32)
    q_ref[...] = (jnp.dot(qin, wq_ref[...], preferred_element_type=jnp.float32)
                  + bq_ref[...]).astype(q_ref.dtype)


def _attn_tail_kernel(a_ref, wo_ref, bo_ref, res_ref, g_ref, be_ref, o_ref, *, eps):
    # o = LN(residual + attn @ Wo^T + bo)
    y = (jnp.dot(a_ref[...].astype(jnp.float32), wo_ref[...],
                 preferred_element_type=jnp.float32) + bo_ref[...])
    o_ref[...] = _layernorm(y + res_ref[...].astype(jnp.float32),
                            g_ref[...], be_ref[...], eps).astype(o_ref.dtype)


def _ffn_ln_kernel(x_ref, w1_ref, b1_ref, w2_ref, b2_ref, g_ref, be_ref,
                   o_ref, *, eps):
    # f = ReLU(x @ W1^T + b1) @ W2^T + b2 ; out = LN3(f + f)
    x = x_ref[...].astype(jnp.float32)
    h = jnp.maximum(jnp.dot(x, w1_ref[...], preferred_element_type=jnp.float32)
                    + b1_ref[...], 0.0)
    f = jnp.dot(h, w2_ref[...], preferred_element_type=jnp.float32) + b2_ref[...]
    o_ref[...] = _layernorm(f + f, g_ref[...], be_ref[...], eps).astype(o_ref.dtype)


# ---------------------------------------------------------------------------
# pallas_call wrappers (all operate on batch-major (N*L, E) row tensors)
# ---------------------------------------------------------------------------
def _row_spec(tile, width):
    return pl.BlockSpec((tile, width), lambda i: (i, 0))


def _full_spec(r, c):
    return pl.BlockSpec((r, c), lambda i: (0, 0))


def sa_qkv_pallas(x2d, pos2d, wqk_t, bqk, wv_t, bv):
    t, e = x2d.shape
    e2 = wqk_t.shape[-1]
    tile = _row_tile(t)
    return pl.pallas_call(
        _sa_qkv_kernel,
        out_shape=tuple(jax.ShapeDtypeStruct((t, e), x2d.dtype) for _ in range(3)),
        grid_spec=pltpu.PrefetchScalarGridSpec(
            num_scalar_prefetch=0, grid=(pl.cdiv(t, tile),),
            in_specs=[_row_spec(tile, e), _row_spec(tile, e),
                      _full_spec(e, e2), _full_spec(1, e2),
                      _full_spec(e, e), _full_spec(1, e)],
            out_specs=[_row_spec(tile, e) for _ in range(3)]),
        compiler_params=_CP1,
    )(x2d, pos2d, wqk_t, bqk, wv_t, bv)


def ca_kv_pallas(g2d, pos2d, wk_t, bk, wv_t, bv):
    t, e = g2d.shape
    tile = _row_tile(t)
    return pl.pallas_call(
        _ca_kv_kernel,
        out_shape=tuple(jax.ShapeDtypeStruct((t, e), g2d.dtype) for _ in range(2)),
        grid_spec=pltpu.PrefetchScalarGridSpec(
            num_scalar_prefetch=0, grid=(pl.cdiv(t, tile),),
            in_specs=[_row_spec(tile, e), _row_spec(tile, e),
                      _full_spec(e, e), _full_spec(1, e),
                      _full_spec(e, e), _full_spec(1, e)],
            out_specs=[_row_spec(tile, e) for _ in range(2)]),
        compiler_params=_CP1,
    )(g2d, pos2d, wk_t, bk, wv_t, bv)


def attention_pallas(q2d, k2d, v2d, n, lq, lk, nhead):
    e = q2d.shape[-1]
    kernel = functools.partial(_attn_kernel, nhead=nhead)
    return pl.pallas_call(
        kernel,
        out_shape=jax.ShapeDtypeStruct((n * lq, e), q2d.dtype),
        grid_spec=pltpu.PrefetchScalarGridSpec(
            num_scalar_prefetch=0, grid=(n,),
            in_specs=[pl.BlockSpec((lq, e), lambda b: (b, 0)),
                      pl.BlockSpec((lk, e), lambda b: (b, 0)),
                      pl.BlockSpec((lk, e), lambda b: (b, 0))],
            out_specs=pl.BlockSpec((lq, e), lambda b: (b, 0))),
        compiler_params=_CP1,
    )(q2d, k2d, v2d)


def sa_tail_pallas(a2d, wo_t, bo, res2d, g, be, qpos2d, wq_t, bq, eps):
    t, e = a2d.shape
    tile = _row_tile(t)
    kernel = functools.partial(_sa_tail_kernel, eps=eps)
    return pl.pallas_call(
        kernel,
        out_shape=tuple(jax.ShapeDtypeStruct((t, e), a2d.dtype) for _ in range(2)),
        grid_spec=pltpu.PrefetchScalarGridSpec(
            num_scalar_prefetch=0, grid=(pl.cdiv(t, tile),),
            in_specs=[_row_spec(tile, e), _full_spec(e, e), _full_spec(1, e),
                      _row_spec(tile, e), _full_spec(1, e), _full_spec(1, e),
                      _row_spec(tile, e), _full_spec(e, e), _full_spec(1, e)],
            out_specs=[_row_spec(tile, e) for _ in range(2)]),
        compiler_params=_CP1,
    )(a2d, wo_t, bo, res2d, g, be, qpos2d, wq_t, bq)


def attn_tail_pallas(a2d, wo_t, bo, res2d, g, be, eps):
    t, e = a2d.shape
    tile = _row_tile(t)
    kernel = functools.partial(_attn_tail_kernel, eps=eps)
    return pl.pallas_call(
        kernel,
        out_shape=jax.ShapeDtypeStruct((t, e), a2d.dtype),
        grid_spec=pltpu.PrefetchScalarGridSpec(
            num_scalar_prefetch=0, grid=(pl.cdiv(t, tile),),
            in_specs=[_row_spec(tile, e), _full_spec(e, e), _full_spec(1, e),
                      _row_spec(tile, e), _full_spec(1, e), _full_spec(1, e)],
            out_specs=_row_spec(tile, e)),
        compiler_params=_CP1,
    )(a2d, wo_t, bo, res2d, g, be)


def ffn_ln_pallas(x2d, w1_t, b1, w2_t, b2, g, be, eps):
    t, e = x2d.shape
    f = w1_t.shape[-1]
    tile = _row_tile(t)
    kernel = functools.partial(_ffn_ln_kernel, eps=eps)
    return pl.pallas_call(
        kernel,
        out_shape=jax.ShapeDtypeStruct((t, e), x2d.dtype),
        grid_spec=pltpu.PrefetchScalarGridSpec(
            num_scalar_prefetch=0, grid=(pl.cdiv(t, tile),),
            in_specs=[_row_spec(tile, e),
                      _full_spec(e, f), _full_spec(1, f),
                      _full_spec(f, e), _full_spec(1, e),
                      _full_spec(1, e), _full_spec(1, e)],
            out_specs=_row_spec(tile, e)),
        compiler_params=_CP1,
    )(x2d, w1_t, b1, w2_t, b2, g, be)


# ---------------------------------------------------------------------------
# One-time parameter preparation (outside jit): transpose / split / fold scale
# ---------------------------------------------------------------------------
def prepare_params(params, nhead):
    e = params["sa_out_w"].shape[0]
    dh = e // nhead
    scale = 1.0 / math.sqrt(dh)
    row = lambda b: b.reshape(1, -1)

    def split(w, b):
        return (w[:e], w[e:2 * e], w[2 * e:], b[:e], b[e:2 * e], b[2 * e:])

    swq, swk, swv, sbq, sbk, sbv = split(params["sa_in_w"], params["sa_in_b"])
    cwq, cwk, cwv, cbq, cbk, cbv = split(params["ca_in_w"], params["ca_in_b"])

    return {
        # self-attention: attention scale folded into Q weights/bias
        "sa_wqk_t": jnp.concatenate([swq * scale, swk], axis=0).T,   # (E, 2E)
        "sa_bqk": row(jnp.concatenate([sbq * scale, sbk])),          # (1, 2E)
        "sa_wv_t": swv.T, "sa_bv": row(sbv),
        "sa_wo_t": params["sa_out_w"].T, "sa_bo": row(params["sa_out_b"]),
        # cross-attention
        "ca_wq_t": (cwq * scale).T, "ca_bq": row(cbq * scale),
        "ca_wk_t": cwk.T, "ca_bk": row(cbk),
        "ca_wv_t": cwv.T, "ca_bv": row(cbv),
        "ca_wo_t": params["ca_out_w"].T, "ca_bo": row(params["ca_out_b"]),
        # feed-forward
        "w1_t": params["w1"].T, "b1": row(params["b1"]),
        "w2_t": params["w2"].T, "b2": row(params["b2"]),
        # layer norms
        "g1": row(params["g1"]), "be1": row(params["be1"]),
        "g2": row(params["g2"]), "be2": row(params["be2"]),
        "g3": row(params["g3"]), "be3": row(params["be3"]),
    }


# ---------------------------------------------------------------------------
# Full decoder layer (forward_post, eval mode)
# ---------------------------------------------------------------------------
def _to_rows(x):       # (L, N, E) -> batch-major (N*L, E); one boundary transpose
    l, n, e = x.shape
    return jnp.transpose(x, (1, 0, 2)).reshape(n * l, e)


def _from_rows(x2d, n, l):   # (N*L, E) -> (L, N, E)
    e = x2d.shape[-1]
    return jnp.transpose(x2d.reshape(n, l, e), (1, 0, 2))


def decoder_layer_pallas(prototype, global_feat, pos, query_pos, prepared, *,
                         nhead, eps=1e-5):
    lq, n, e = prototype.shape
    lk = global_feat.shape[0]
    if query_pos is None:
        query_pos = jnp.zeros_like(prototype)
    if pos is None:
        pos = jnp.zeros_like(global_feat)

    p = prepared
    x0 = _to_rows(prototype)        # (N*Lq, E)
    qpos = _to_rows(query_pos)      # (N*Lq, E)
    g = _to_rows(global_feat)       # (N*Lk, E)
    kpos = _to_rows(pos)            # (N*Lk, E)

    # --- self-attention block ---
    q, k, v = sa_qkv_pallas(x0, qpos, p["sa_wqk_t"], p["sa_bqk"],
                            p["sa_wv_t"], p["sa_bv"])
    sa = attention_pallas(q, k, v, n, lq, lq, nhead)
    # out_proj + residual + LN1, fused with the cross-attn Q projection
    x1, q_ca = sa_tail_pallas(sa, p["sa_wo_t"], p["sa_bo"], x0,
                              p["g1"], p["be1"], qpos,
                              p["ca_wq_t"], p["ca_bq"], eps)

    # --- cross-attention block ---
    k_ca, v_ca = ca_kv_pallas(g, kpos, p["ca_wk_t"], p["ca_bk"],
                              p["ca_wv_t"], p["ca_bv"])
    ca = attention_pallas(q_ca, k_ca, v_ca, n, lq, lk, nhead)
    x2 = attn_tail_pallas(ca, p["ca_wo_t"], p["ca_bo"], x1,
                          p["g2"], p["be2"], eps)

    # --- feed-forward block (LN3 fused; module overwrites residual -> LN(2*ffn)) ---
    out = ffn_ln_pallas(x2, p["w1_t"], p["b1"], p["w2_t"], p["b2"],
                        p["g3"], p["be3"], eps)
    return _from_rows(out, n, lq)


# ---------------------------------------------------------------------------
# Pure-JAX reference (mirrors the PyTorch module in eval mode)
# ---------------------------------------------------------------------------
def _mha_ref(query, key, value, in_w, in_b, out_w, out_b, nhead):
    lq, n, e = query.shape
    lk = key.shape[0]
    dh = e // nhead
    scale = 1.0 / math.sqrt(dh)
    qp = query.reshape(lq * n, e) @ in_w[:e].T + in_b[:e]
    kp = key.reshape(lk * n, e) @ in_w[e:2 * e].T + in_b[e:2 * e]
    vp = value.reshape(lk * n, e) @ in_w[2 * e:].T + in_b[2 * e:]
    qh = qp.reshape(lq, n * nhead, dh).transpose(1, 0, 2)
    kh = kp.reshape(lk, n * nhead, dh).transpose(1, 0, 2)
    vh = vp.reshape(lk, n * nhead, dh).transpose(1, 0, 2)
    s = jnp.einsum('hqd,hkd->hqk', qh, kh) * scale
    p = jax.nn.softmax(s, axis=-1)
    o = jnp.einsum('hqk,hkd->hqd', p, vh)
    o = o.transpose(1, 0, 2).reshape(lq * n, e) @ out_w.T + out_b
    return o.reshape(lq, n, e)


def _ln_ref(x, g, b, eps=1e-5):
    m = x.mean(-1, keepdims=True)
    v = ((x - m) ** 2).mean(-1, keepdims=True)
    return (x - m) / jnp.sqrt(v + eps) * g + b


def decoder_layer_ref(prototype, global_feat, pos, query_pos, params, *, nhead,
                      eps=1e-5):
    qk = prototype + query_pos
    sa = _mha_ref(qk, qk, prototype, params["sa_in_w"], params["sa_in_b"],
                  params["sa_out_w"], params["sa_out_b"], nhead)
    x = _ln_ref(prototype + sa, params["g1"], params["be1"], eps)
    ca = _mha_ref(x + query_pos, global_feat + pos, global_feat,
                  params["ca_in_w"], params["ca_in_b"],
                  params["ca_out_w"], params["ca_out_b"], nhead)
    x = _ln_ref(x + ca, params["g2"], params["be2"], eps)
    h = jnp.maximum(x @ params["w1"].T + params["b1"], 0.0)
    ffn = h @ params["w2"].T + params["b2"]
    return _ln_ref(ffn + ffn, params["g3"], params["be3"], eps)


if __name__ == "__main__":
    LQ, LK, N, E, NHEAD, FF = 8, 16, 2, 32, 4, 64

    keys = iter(jax.random.split(jax.random.PRNGKey(0), 24))

    def rnd(shape, scale=0.1):
        return scale * jax.random.normal(next(keys), shape, dtype=jnp.float32)

    params = {
        "sa_in_w": rnd((3 * E, E)), "sa_in_b": rnd((3 * E,)),
        "sa_out_w": rnd((E, E)), "sa_out_b": rnd((E,)),
        "ca_in_w": rnd((3 * E, E)), "ca_in_b": rnd((3 * E,)),
        "ca_out_w": rnd((E, E)), "ca_out_b": rnd((E,)),
        "w1": rnd((FF, E)), "b1": rnd((FF,)),
        "w2": rnd((E, FF)), "b2": rnd((E,)),
        "g1": 1.0 + rnd((E,)), "be1": rnd((E,)),
        "g2": 1.0 + rnd((E,)), "be2": rnd((E,)),
        "g3": 1.0 + rnd((E,)), "be3": rnd((E,)),
    }

    prototype = rnd((LQ, N, E), scale=1.0)    # (seq_q, batch, d_model)
    global_feat = rnd((LK, N, E), scale=1.0)  # (seq_k, batch, d_model)
    query_pos = rnd((LQ, N, E), scale=1.0)
    pos = rnd((LK, N, E), scale=1.0)

    # One-time parameter preparation (pre-transpose / split / scale fold).
    prepared = jax.tree_util.tree_map(jnp.asarray, prepare_params(params, NHEAD))

    fwd = jax.jit(functools.partial(decoder_layer_pallas, nhead=NHEAD))
    y = jax.block_until_ready(fwd(prototype, global_feat, pos, query_pos, prepared))

    y_ref = decoder_layer_ref(prototype, global_feat, pos, query_pos, params,
                              nhead=NHEAD)

    assert y.shape == prototype.shape and y.dtype == prototype.dtype
    max_err = float(jnp.max(jnp.abs(y - y_ref)))
    assert jnp.allclose(y, y_ref, atol=2e-2, rtol=2e-2), f"max abs err = {max_err}"
    print("KERNEL_OK")
</pallas_src>

<mosaic_0001>
module attributes {stable_mosaic.version = 11 : i64} {
  func.func @_ca_kv_kernel(%arg0: i32, %arg1: memref<16x32xf32, #tpu.memory_space<vmem>>, %arg2: memref<16x32xf32, #tpu.memory_space<vmem>>, %arg3: memref<32x32xf32, #tpu.memory_space<vmem>>, %arg4: memref<1x32xf32, #tpu.memory_space<vmem>>, %arg5: memref<32x32xf32, #tpu.memory_space<vmem>>, %arg6: memref<1x32xf32, #tpu.memory_space<vmem>>, %arg7: memref<16x32xf32, #tpu.memory_space<vmem>>, %arg8: memref<16x32xf32, #tpu.memory_space<vmem>>) attributes {dimension_semantics = [#tpu.dimension_semantics<parallel>], iteration_bounds = array<i64: 2>, scalar_prefetch = 0 : i64, scratch_operands = 0 : i64, tpu.core_type = #tpu.core_type<tc>, window_params = [{transform_indices = @transform_0, window_bounds = array<i64: 16, 32>}, {transform_indices = @transform_1, window_bounds = array<i64: 16, 32>}, {pipeline_mode = #tpu.pipeline_mode<synchronous>, transform_indices = @transform_2, window_bounds = array<i64: 32, 32>}, {pipeline_mode = #tpu.pipeline_mode<synchronous>, transform_indices = @transform_3, window_bounds = array<i64: 1, 32>}, {pipeline_mode = #tpu.pipeline_mode<synchronous>, transform_indices = @transform_4, window_bounds = array<i64: 32, 32>}, {pipeline_mode = #tpu.pipeline_mode<synchronous>, transform_indices = @transform_5, window_bounds = array<i64: 1, 32>}, {transform_indices = @transform_6, window_bounds = array<i64: 16, 32>}, {transform_indices = @transform_7, window_bounds = array<i64: 16, 32>}]} {
    %c0 = arith.constant 0 : index
    %c0_0 = arith.constant 0 : index
    %0 = vector.load %arg1[%c0, %c0_0] : memref<16x32xf32, #tpu.memory_space<vmem>>, vector<16x32xf32>
    %c0_1 = arith.constant 0 : index
    %c0_2 = arith.constant 0 : index
    %1 = vector.load %arg2[%c0_1, %c0_2] : memref<16x32xf32, #tpu.memory_space<vmem>>, vector<16x32xf32>
    %2 = arith.addf %0, %1 : vector<16x32xf32>
    %c0_3 = arith.constant 0 : index
    %c0_4 = arith.constant 0 : index
    %3 = vector.load %arg3[%c0_3, %c0_4] : memref<32x32xf32, #tpu.memory_space<vmem>>, vector<32x32xf32>
    %cst = arith.constant dense<0.000000e+00> : vector<16x32xf32>
    %4 = tpu.matmul %2, %3, %cst {dimension_numbers = #tpu.dot_dimension_numbers<[1], [0], [0], [1], [0, 0, 1, 1], [], []>} : vector<16x32xf32>, vector<32x32xf32>, vector<16x32xf32> -> vector<16x32xf32>
    %c0_5 = arith.constant 0 : index
    %c0_6 = arith.constant 0 : index
    %5 = vector.load %arg4[%c0_5, %c0_6] : memref<1x32xf32, #tpu.memory_space<vmem>>, vector<1x32xf32>
    %6 = vector.broadcast %5 : vector<1x32xf32> to vector<16x32xf32>
    %7 = arith.addf %4, %6 : vector<16x32xf32>
    %c0_7 = arith.constant 0 : index
    %c0_8 = arith.constant 0 : index
    %8 = vector.load %arg7[%c0_7, %c0_8] : memref<16x32xf32, #tpu.memory_space<vmem>>, vector<16x32xf32>
    tpu.vector_store %arg7[%c0_7, %c0_8], %7 {strides = array<i32>} : memref<16x32xf32, #tpu.memory_space<vmem>>, vector<16x32xf32>,
    %c0_9 = arith.constant 0 : index
    %c0_10 = arith.constant 0 : index
    %9 = vector.load %arg5[%c0_9, %c0_10] : memref<32x32xf32, #tpu.memory_space<vmem>>, vector<32x32xf32>
    %cst_11 = arith.constant dense<0.000000e+00> : vector<16x32xf32>
    %10 = tpu.matmul %0, %9, %cst_11 {dimension_numbers = #tpu.dot_dimension_numbers<[1], [0], [0], [1], [0, 0, 1, 1], [], []>} : vector<16x32xf32>, vector<32x32xf32>, vector<16x32xf32> -> vector<16x32xf32>
    %c0_12 = arith.constant 0 : index
    %c0_13 = arith.constant 0 : index
    %11 = vector.load %arg6[%c0_12, %c0_13] : memref<1x32xf32, #tpu.memory_space<vmem>>, vector<1x32xf32>
    %12 = vector.broadcast %11 : vector<1x32xf32> to vector<16x32xf32>
    %13 = arith.addf %10, %12 : vector<16x32xf32>
    %c0_14 = arith.constant 0 : index
    %c0_15 = arith.constant 0 : index
    %14 = vector.load %arg8[%c0_14, %c0_15] : memref<16x32xf32, #tpu.memory_space<vmem>>, vector<16x32xf32>
    tpu.vector_store %arg8[%c0_14, %c0_15], %13 {strides = array<i32>} : memref<16x32xf32, #tpu.memory_space<vmem>>, vector<16x32xf32>,
    return
  }
  func.func @transform_0(%arg0: i32) -> (i32, i32) {
    %c0_i32 = arith.constant 0 : i32
    %c0_i32_0 = arith.constant 0 : i32
    return %arg0, %c0_i32 : i32, i32
  }
  func.func @transform_1(%arg0: i32) -> (i32, i32) {
    %c0_i32 = arith.constant 0 : i32
    %c0_i32_0 = arith.constant 0 : i32
    return %arg0, %c0_i32 : i32, i32
  }
  func.func @transform_2(%arg0: i32) -> (i32, i32) {
    %c0_i32 = arith.constant 0 : i32
    %c0_i32_0 = arith.constant 0 : i32
    %c0_i32_1 = arith.constant 0 : i32
    return %c0_i32, %c0_i32_0 : i32, i32
  }
  func.func @transform_3(%arg0: i32) -> (i32, i32) {
    %c0_i32 = arith.constant 0 : i32
    %c0_i32_0 = arith.constant 0 : i32
    %c0_i32_1 = arith.constant 0 : i32
    return %c0_i32, %c0_i32_0 : i32, i32
  }
  func.func @transform_4(%arg0: i32) -> (i32, i32) {
    %c0_i32 = arith.constant 0 : i32
    %c0_i32_0 = arith.constant 0 : i32
    %c0_i32_1 = arith.constant 0 : i32
    return %c0_i32, %c0_i32_0 : i32, i32
  }
  func.func @transform_5(%arg0: i32) -> (i32, i32) {
    %c0_i32 = arith.constant 0 : i32
    %c0_i32_0 = arith.constant 0 : i32
    %c0_i32_1 = arith.constant 0 : i32
    return %c0_i32, %c0_i32_0 : i32, i32
  }
  func.func @transform_6(%arg0: i32) -> (i32, i32) {
    %c0_i32 = arith.constant 0 : i32
    %c0_i32_0 = arith.constant 0 : i32
    return %arg0, %c0_i32 : i32, i32
  }
  func.func @transform_7(%arg0: i32) -> (i32, i32) {
    %c0_i32 = arith.constant 0 : i32
    %c0_i32_0 = arith.constant 0 : i32
    return %arg0, %c0_i32 : i32, i32
  }
}

module attributes {stable_mosaic.version = 11 : i64} {
  func.func @_attn_kernel(%arg0: i32, %arg1: memref<8x32xf32, #tpu.memory_space<vmem>>, %arg2: memref<8x32xf32, #tpu.memory_space<vmem>>, %arg3: memref<8x32xf32, #tpu.memory_space<vmem>>, %arg4: memref<8x32xf32, #tpu.memory_space<vmem>>) attributes {dimension_semantics = [#tpu.dimension_semantics<parallel>], iteration_bounds = array<i64: 2>, scalar_prefetch = 0 : i64, scratch_operands = 0 : i64, tpu.core_type = #tpu.core_type<tc>, window_params = [{transform_indices = @transform_0, window_bounds = array<i64: 8, 32>}, {transform_indices = @transform_1, window_bounds = array<i64: 8, 32>}, {transform_indices = @transform_2, window_bounds = array<i64: 8, 32>}, {transform_indices = @transform_3, window_bounds = array<i64: 8, 32>}]} {
    %c0 = arith.constant 0 : index
    %c0_0 = arith.constant 0 : index
    %0 = vector.load %arg1[%c0, %c0_0] : memref<8x32xf32, #tpu.memory_space<vmem>>, vector<8x32xf32>
    %c0_1 = arith.constant 0 : index
    %c0_2 = arith.constant 0 : index
    %1 = vector.load %arg2[%c0_1, %c0_2] : memref<8x32xf32, #tpu.memory_space<vmem>>, vector<8x32xf32>
    %c0_3 = arith.constant 0 : index
    %c0_4 = arith.constant 0 : index
    %2 = vector.load %arg3[%c0_3, %c0_4] : memref<8x32xf32, #tpu.memory_space<vmem>>, vector<8x32xf32>
    %3 = vector.extract_strided_slice %0 {offsets = [0, 0], sizes = [8, 8], strides = [1, 1]} : vector<8x32xf32> to vector<8x8xf32>
    %4 = vector.extract_strided_slice %1 {offsets = [0, 0], sizes = [8, 8], strides = [1, 1]} : vector<8x32xf32> to vector<8x8xf32>
    %cst = arith.constant dense<0.000000e+00> : vector<8x8xf32>
    %5 = tpu.matmul %3, %4, %cst {dimension_numbers = #tpu.dot_dimension_numbers<[1], [1], [0], [0], [0, 0, 1, 0], [], []>} : vector<8x8xf32>, vector<8x8xf32>, vector<8x8xf32> -> vector<8x8xf32>
    %cst_5 = arith.constant dense<0xFF800000> : vector<8xf32>
    %6 = vector.multi_reduction <maximumf>, %5, %cst_5 [1] : vector<8x8xf32> to vector<8xf32>
    %7 = vector.shape_cast %6 : vector<8xf32> to vector<8x1xf32>
    %8 = vector.broadcast %7 : vector<8x1xf32> to vector<8x8xf32>
    %9 = arith.subf %5, %8 : vector<8x8xf32>
    %10 = math.exp %9 : vector<8x8xf32>
    %cst_6 = arith.constant dense<0.000000e+00> : vector<8xf32>
    %11 = vector.multi_reduction <add>, %10, %cst_6 [1] : vector<8x8xf32> to vector<8xf32>
    %12 = vector.shape_cast %11 : vector<8xf32> to vector<8x1xf32>
    %13 = vector.extract_strided_slice %2 {offsets = [0, 0], sizes = [8, 8], strides = [1, 1]} : vector<8x32xf32> to vector<8x8xf32>
    %cst_7 = arith.constant dense<0.000000e+00> : vector<8x8xf32>
    %14 = tpu.matmul %10, %13, %cst_7 {dimension_numbers = #tpu.dot_dimension_numbers<[1], [0], [0], [1], [0, 0, 1, 1], [], []>} : vector<8x8xf32>, vector<8x8xf32>, vector<8x8xf32> -> vector<8x8xf32>
    %15 = tpu.reciprocal %12 {approx = true} : vector<8x1xf32> -> vector<8x1xf32>
    %16 = vector.broadcast %15 : vector<8x1xf32> to vector<8x8xf32>
    %17 = arith.mulf %14, %16 : vector<8x8xf32>
    %18 = vector.extract_strided_slice %0 {offsets = [0, 8], sizes = [8, 8], strides = [1, 1]} : vector<8x32xf32> to vector<8x8xf32>
    %19 = vector.extract_strided_slice %1 {offsets = [0, 8], sizes = [8, 8], strides = [1, 1]} : vector<8x32xf32> to vector<8x8xf32>
    %cst_8 = arith.constant dense<0.000000e+00> : vector<8x8xf32>
    %20 = tpu.matmul %18, %19, %cst_8 {dimension_numbers = #tpu.dot_dimension_numbers<[1], [1], [0], [0], [0, 0, 1, 0], [], []>} : vector<8x8xf32>, vector<8x8xf32>, vector<8x8xf32> -> vector<8x8xf32>
    %cst_9 = arith.constant dense<0xFF800000> : vector<8xf32>
    %21 = vector.multi_reduction <maximumf>, %20, %cst_9 [1] : vector<8x8xf32> to vector<8xf32>
    %22 = vector.shape_cast %21 : vector<8xf32> to vector<8x1xf32>
    %23 = vector.broadcast %22 : vector<8x1xf32> to vector<8x8xf32>
    %24 = arith.subf %20, %23 : vector<8x8xf32>
    %25 = math.exp %24 : vector<8x8xf32>
    %cst_10 = arith.constant dense<0.000000e+00> : vector<8xf32>
    %26 = vector.multi_reduction <add>, %25, %cst_10 [1] : vector<8x8xf32> to vector<8xf32>
    %27 = vector.shape_cast %26 : vector<8xf32> to vector<8x1xf32>
    %28 = vector.extract_strided_slice %2 {offsets = [0, 8], sizes = [8, 8], strides = [1, 1]} : vector<8x32xf32> to vector<8x8xf32>
    %cst_11 = arith.constant dense<0.000000e+00> : vector<8x8xf32>
    %29 = tpu.matmul %25, %28, %cst_11 {dimension_numbers = #tpu.dot_dimension_numbers<[1], [0], [0], [1], [0, 0, 1, 1], [], []>} : vector<8x8xf32>, vector<8x8xf32>, vector<8x8xf32> -> vector<8x8xf32>
    %30 = tpu.reciprocal %27 {approx = true} : vector<8x1xf32> -> vector<8x1xf32>
    %31 = vector.broadcast %30 : vector<8x1xf32> to vector<8x8xf32>
    %32 = arith.mulf %29, %31 : vector<8x8xf32>
    %33 = vector.extract_strided_slice %0 {offsets = [0, 16], sizes = [8, 8], strides = [1, 1]} : vector<8x32xf32> to vector<8x8xf32>
    %34 = vector.extract_strided_slice %1 {offsets = [0, 16], sizes = [8, 8], strides = [1, 1]} : vector<8x32xf32> to vector<8x8xf32>
    %cst_12 = arith.constant dense<0.000000e+00> : vector<8x8xf32>
    %35 = tpu.matmul %33, %34, %cst_12 {dimension_numbers = #tpu.dot_dimension_numbers<[1], [1], [0], [0], [0, 0, 1, 0], [], []>} : vector<8x8xf32>, vector<8x8xf32>, vector<8x8xf32> -> vector<8x8xf32>
    %cst_13 = arith.constant dense<0xFF800000> : vector<8xf32>
    %36 = vector.multi_reduction <maximumf>, %35, %cst_13 [1] : vector<8x8xf32> to vector<8xf32>
    %37 = vector.shape_cast %36 : vector<8xf32> to vector<8x1xf32>
    %38 = vector.broadcast %37 : vector<8x1xf32> to vector<8x8xf32>
    %39 = arith.subf %35, %38 : vector<8x8xf32>
    %40 = math.exp %39 : vector<8x8xf32>
    %cst_14 = arith.constant dense<0.000000e+00> : vector<8xf32>
    %41 = vector.multi_reduction <add>, %40, %cst_14 [1] : vector<8x8xf32> to vector<8xf32>
    %42 = vector.shape_cast %41 : vector<8xf32> to vector<8x1xf32>
    %43 = vector.extract_strided_slice %2 {offsets = [0, 16], sizes = [8, 8], strides = [1, 1]} : vector<8x32xf32> to vector<8x8xf32>
    %cst_15 = arith.constant dense<0.000000e+00> : vector<8x8xf32>
    %44 = tpu.matmul %40, %43, %cst_15 {dimension_numbers = #tpu.dot_dimension_numbers<[1], [0], [0], [1], [0, 0, 1, 1], [], []>} : vector<8x8xf32>, vector<8x8xf32>, vector<8x8xf32> -> vector<8x8xf32>
    %45 = tpu.reciprocal %42 {approx = true} : vector<8x1xf32> -> vector<8x1xf32>
    %46 = vector.broadcast %45 : vector<8x1xf32> to vector<8x8xf32>
    %47 = arith.mulf %44, %46 : vector<8x8xf32>
    %48 = vector.extract_strided_slice %0 {offsets = [0, 24], sizes = [8, 8], strides = [1, 1]} : vector<8x32xf32> to vector<8x8xf32>
    %49 = vector.extract_strided_slice %1 {offsets = [0, 24], sizes = [8, 8], strides = [1, 1]} : vector<8x32xf32> to vector<8x8xf32>
    %cst_16 = arith.constant dense<0.000000e+00> : vector<8x8xf32>
    %50 = tpu.matmul %48, %49, %cst_16 {dimension_numbers = #tpu.dot_dimension_numbers<[1], [1], [0], [0], [0, 0, 1, 0], [], []>} : vector<8x8xf32>, vector<8x8xf32>, vector<8x8xf32> -> vector<8x8xf32>
    %cst_17 = arith.constant dense<0xFF800000> : vector<8xf32>
    %51 = vector.multi_reduction <maximumf>, %50, %cst_17 [1] : vector<8x8xf32> to vector<8xf32>
    %52 = vector.shape_cast %51 : vector<8xf32> to vector<8x1xf32>
    %53 = vector.broadcast %52 : vector<8x1xf32> to vector<8x8xf32>
    %54 = arith.subf %50, %53 : vector<8x8xf32>
    %55 = math.exp %54 : vector<8x8xf32>
    %cst_18 = arith.constant dense<0.000000e+00> : vector<8xf32>
    %56 = vector.multi_reduction <add>, %55, %cst_18 [1] : vector<8x8xf32> to vector<8xf32>
    %57 = vector.shape_cast %56 : vector<8xf32> to vector<8x1xf32>
    %58 = vector.extract_strided_slice %2 {offsets = [0, 24], sizes = [8, 8], strides = [1, 1]} : vector<8x32xf32> to vector<8x8xf32>
    %cst_19 = arith.constant dense<0.000000e+00> : vector<8x8xf32>
    %59 = tpu.matmul %55, %58, %cst_19 {dimension_numbers = #tpu.dot_dimension_numbers<[1], [0], [0], [1], [0, 0, 1, 1], [], []>} : vector<8x8xf32>, vector<8x8xf32>, vector<8x8xf32> -> vector<8x8xf32>
    %60 = tpu.reciprocal %57 {approx = true} : vector<8x1xf32> -> vector<8x1xf32>
    %61 = vector.broadcast %60 : vector<8x1xf32> to vector<8x8xf32>
    %62 = arith.mulf %59, %61 : vector<8x8xf32>
    %63 = tpu.concatenate %17, %32, %47, %62 in 1 : vector<8x8xf32>, vector<8x8xf32>, vector<8x8xf32>, vector<8x8xf32> -> vector<8x32xf32>
    %c0_20 = arith.constant 0 : index
    %c0_21 = arith.constant 0 : index
    %64 = vector.load %arg4[%c0_20, %c0_21] : memref<8x32xf32, #tpu.memory_space<vmem>>, vector<8x32xf32>
    tpu.vector_store %arg4[%c0_20, %c0_21], %63 {strides = array<i32>} : memref<8x32xf32, #tpu.memory_space<vmem>>, vector<8x32xf32>,
    return
  }
  func.func @transform_0(%arg0: i32) -> (i32, i32) {
    %c0_i32 = arith.constant 0 : i32
    %c0_i32_0 = arith.constant 0 : i32
    return %arg0, %c0_i32 : i32, i32
  }
  func.func @transform_1(%arg0: i32) -> (i32, i32) {
    %c0_i32 = arith.constant 0 : i32
    %c0_i32_0 = arith.constant 0 : i32
    return %arg0, %c0_i32 : i32, i32
  }
  func.func @transform_2(%arg0: i32) -> (i32, i32) {
    %c0_i32 = arith.constant 0 : i32
    %c0_i32_0 = arith.constant 0 : i32
    return %arg0, %c0_i32 : i32, i32
  }
  func.func @transform_3(%arg0: i32) -> (i32, i32) {
    %c0_i32 = arith.constant 0 : i32
    %c0_i32_0 = arith.constant 0 : i32
    return %arg0, %c0_i32 : i32, i32
  }
}

module attributes {stable_mosaic.version = 11 : i64} {
  func.func @_sa_qkv_kernel(%arg0: i32, %arg1: memref<8x32xf32, #tpu.memory_space<vmem>>, %arg2: memref<8x32xf32, #tpu.memory_space<vmem>>, %arg3: memref<32x64xf32, #tpu.memory_space<vmem>>, %arg4: memref<1x64xf32, #tpu.memory_space<vmem>>, %arg5: memref<32x32xf32, #tpu.memory_space<vmem>>, %arg6: memref<1x32xf32, #tpu.memory_space<vmem>>, %arg7: memref<8x32xf32, #tpu.memory_space<vmem>>, %arg8: memref<8x32xf32, #tpu.memory_space<vmem>>, %arg9: memref<8x32xf32, #tpu.memory_space<vmem>>) attributes {dimension_semantics = [#tpu.dimension_semantics<parallel>], iteration_bounds = array<i64: 2>, scalar_prefetch = 0 : i64, scratch_operands = 0 : i64, tpu.core_type = #tpu.core_type<tc>, window_params = [{transform_indices = @transform_0, window_bounds = array<i64: 8, 32>}, {transform_indices = @transform_1, window_bounds = array<i64: 8, 32>}, {pipeline_mode = #tpu.pipeline_mode<synchronous>, transform_indices = @transform_2, window_bounds = array<i64: 32, 64>}, {pipeline_mode = #tpu.pipeline_mode<synchronous>, transform_indices = @transform_3, window_bounds = array<i64: 1, 64>}, {pipeline_mode = #tpu.pipeline_mode<synchronous>, transform_indices = @transform_4, window_bounds = array<i64: 32, 32>}, {pipeline_mode = #tpu.pipeline_mode<synchronous>, transform_indices = @transform_5, window_bounds = array<i64: 1, 32>}, {transform_indices = @transform_6, window_bounds = array<i64: 8, 32>}, {transform_indices = @transform_7, window_bounds = array<i64: 8, 32>}, {transform_indices = @transform_8, window_bounds = array<i64: 8, 32>}]} {
    %c0 = arith.constant 0 : index
    %c0_0 = arith.constant 0 : index
    %0 = vector.load %arg1[%c0, %c0_0] : memref<8x32xf32, #tpu.memory_space<vmem>>, vector<8x32xf32>
    %c0_1 = arith.constant 0 : index
    %c0_2 = arith.constant 0 : index
    %1 = vector.load %arg2[%c0_1, %c0_2] : memref<8x32xf32, #tpu.memory_space<vmem>>, vector<8x32xf32>
    %2 = arith.addf %0, %1 : vector<8x32xf32>
    %c0_3 = arith.constant 0 : index
    %c0_4 = arith.constant 0 : index
    %3 = vector.load %arg3[%c0_3, %c0_4] : memref<32x64xf32, #tpu.memory_space<vmem>>, vector<32x64xf32>
    %cst = arith.constant dense<0.000000e+00> : vector<8x64xf32>
    %4 = tpu.matmul %2, %3, %cst {dimension_numbers = #tpu.dot_dimension_numbers<[1], [0], [0], [1], [0, 0, 1, 1], [], []>} : vector<8x32xf32>, vector<32x64xf32>, vector<8x64xf32> -> vector<8x64xf32>
    %c0_5 = arith.constant 0 : index
    %c0_6 = arith.constant 0 : index
    %5 = vector.load %arg4[%c0_5, %c0_6] : memref<1x64xf32, #tpu.memory_space<vmem>>, vector<1x64xf32>
    %6 = vector.broadcast %5 : vector<1x64xf32> to vector<8x64xf32>
    %7 = arith.addf %4, %6 : vector<8x64xf32>
    %8 = vector.extract_strided_slice %7 {offsets = [0, 0], sizes = [8, 32], strides = [1, 1]} : vector<8x64xf32> to vector<8x32xf32>
    %c0_7 = arith.constant 0 : index
    %c0_8 = arith.constant 0 : index
    %9 = vector.load %arg7[%c0_7, %c0_8] : memref<8x32xf32, #tpu.memory_space<vmem>>, vector<8x32xf32>
    tpu.vector_store %arg7[%c0_7, %c0_8], %8 {strides = array<i32>} : memref<8x32xf32, #tpu.memory_space<vmem>>, vector<8x32xf32>,
    %10 = vector.extract_strided_slice %7 {offsets = [0, 32], sizes = [8, 32], strides = [1, 1]} : vector<8x64xf32> to vector<8x32xf32>
    %c0_9 = arith.constant 0 : index
    %c0_10 = arith.constant 0 : index
    %11 = vector.load %arg8[%c0_9, %c0_10] : memref<8x32xf32, #tpu.memory_space<vmem>>, vector<8x32xf32>
    tpu.vector_store %arg8[%c0_9, %c0_10], %10 {strides = array<i32>} : memref<8x32xf32, #tpu.memory_space<vmem>>, vector<8x32xf32>,
    %c0_11 = arith.constant 0 : index
    %c0_12 = arith.constant 0 : index
    %12 = vector.load %arg5[%c0_11, %c0_12] : memref<32x32xf32, #tpu.memory_space<vmem>>, vector<32x32xf32>
    %cst_13 = arith.constant dense<0.000000e+00> : vector<8x32xf32>
    %13 = tpu.matmul %0, %12, %cst_13 {dimension_numbers = #tpu.dot_dimension_numbers<[1], [0], [0], [1], [0, 0, 1, 1], [], []>} : vector<8x32xf32>, vector<32x32xf32>, vector<8x32xf32> -> vector<8x32xf32>
    %c0_14 = arith.constant 0 : index
    %c0_15 = arith.constant 0 : index
    %14 = vector.load %arg6[%c0_14, %c0_15] : memref<1x32xf32, #tpu.memory_space<vmem>>, vector<1x32xf32>
    %15 = vector.broadcast %14 : vector<1x32xf32> to vector<8x32xf32>
    %16 = arith.addf %13, %15 : vector<8x32xf32>
    %c0_16 = arith.constant 0 : index
    %c0_17 = arith.constant 0 : index
    %17 = vector.load %arg9[%c0_16, %c0_17] : memref<8x32xf32, #tpu.memory_space<vmem>>, vector<8x32xf32>
    tpu.vector_store %arg9[%c0_16, %c0_17], %16 {strides = array<i32>} : memref<8x32xf32, #tpu.memory_space<vmem>>, vector<8x32xf32>,
    return
  }
  func.func @transform_0(%arg0: i32) -> (i32, i32) {
    %c0_i32 = arith.constant 0 : i32
    %c0_i32_0 = arith.constant 0 : i32
    return %arg0, %c0_i32 : i32, i32
  }
  func.func @transform_1(%arg0: i32) -> (i32, i32) {
    %c0_i32 = arith.constant 0 : i32
    %c0_i32_0 = arith.constant 0 : i32
    return %arg0, %c0_i32 : i32, i32
  }
  func.func @transform_2(%arg0: i32) -> (i32, i32) {
    %c0_i32 = arith.constant 0 : i32
    %c0_i32_0 = arith.constant 0 : i32
    %c0_i32_1 = arith.constant 0 : i32
    return %c0_i32, %c0_i32_0 : i32, i32
  }
  func.func @transform_3(%arg0: i32) -> (i32, i32) {
    %c0_i32 = arith.constant 0 : i32
    %c0_i32_0 = arith.constant 0 : i32
    %c0_i32_1 = arith.constant 0 : i32
    return %c0_i32, %c0_i32_0 : i32, i32
  }
  func.func @transform_4(%arg0: i32) -> (i32, i32) {
    %c0_i32 = arith.constant 0 : i32
    %c0_i32_0 = arith.constant 0 : i32
    %c0_i32_1 = arith.constant 0 : i32
    return %c0_i32, %c0_i32_0 : i32, i32
  }
  func.func @transform_5(%arg0: i32) -> (i32, i32) {
    %c0_i32 = arith.constant 0 : i32
    %c0_i32_0 = arith.constant 0 : i32
    %c0_i32_1 = arith.constant 0 : i32
    return %c0_i32, %c0_i32_0 : i32, i32
  }
  func.func @transform_6(%arg0: i32) -> (i32, i32) {
    %c0_i32 = arith.constant 0 : i32
    %c0_i32_0 = arith.constant 0 : i32
    return %arg0, %c0_i32 : i32, i32
  }
  func.func @transform_7(%arg0: i32) -> (i32, i32) {
    %c0_i32 = arith.constant 0 : i32
    %c0_i32_0 = arith.constant 0 : i32
    return %arg0, %c0_i32 : i32, i32
  }
  func.func @transform_8(%arg0: i32) -> (i32, i32) {
    %c0_i32 = arith.constant 0 : i32
    %c0_i32_0 = arith.constant 0 : i32
    return %arg0, %c0_i32 : i32, i32
  }
}

module attributes {stable_mosaic.version = 11 : i64} {
  func.func @_sa_tail_kernel(%arg0: i32, %arg1: memref<8x32xf32, #tpu.memory_space<vmem>>, %arg2: memref<32x32xf32, #tpu.memory_space<vmem>>, %arg3: memref<1x32xf32, #tpu.memory_space<vmem>>, %arg4: memref<8x32xf32, #tpu.memory_space<vmem>>, %arg5: memref<1x32xf32, #tpu.memory_space<vmem>>, %arg6: memref<1x32xf32, #tpu.memory_space<vmem>>, %arg7: memref<8x32xf32, #tpu.memory_space<vmem>>, %arg8: memref<32x32xf32, #tpu.memory_space<vmem>>, %arg9: memref<1x32xf32, #tpu.memory_space<vmem>>, %arg10: memref<8x32xf32, #tpu.memory_space<vmem>>, %arg11: memref<8x32xf32, #tpu.memory_space<vmem>>) attributes {dimension_semantics = [#tpu.dimension_semantics<parallel>], iteration_bounds = array<i64: 2>, scalar_prefetch = 0 : i64, scratch_operands = 0 : i64, tpu.core_type = #tpu.core_type<tc>, window_params = [{transform_indices = @transform_0, window_bounds = array<i64: 8, 32>}, {pipeline_mode = #tpu.pipeline_mode<synchronous>, transform_indices = @transform_1, window_bounds = array<i64: 32, 32>}, {pipeline_mode = #tpu.pipeline_mode<synchronous>, transform_indices = @transform_2, window_bounds = array<i64: 1, 32>}, {transform_indices = @transform_3, window_bounds = array<i64: 8, 32>}, {pipeline_mode = #tpu.pipeline_mode<synchronous>, transform_indices = @transform_4, window_bounds = array<i64: 1, 32>}, {pipeline_mode = #tpu.pipeline_mode<synchronous>, transform_indices = @transform_5, window_bounds = array<i64: 1, 32>}, {transform_indices = @transform_6, window_bounds = array<i64: 8, 32>}, {pipeline_mode = #tpu.pipeline_mode<synchronous>, transform_indices = @transform_7, window_bounds = array<i64: 32, 32>}, {pipeline_mode = #tpu.pipeline_mode<synchronous>, transform_indices = @transform_8, window_bounds = array<i64: 1, 32>}, {transform_indices = @transform_9, window_bounds = array<i64: 8, 32>}, {transform_indices = @transform_10, window_bounds = array<i64: 8, 32>}]} {
    %c0 = arith.constant 0 : index
    %c0_0 = arith.constant 0 : index
    %0 = vector.load %arg1[%c0, %c0_0] : memref<8x32xf32, #tpu.memory_space<vmem>>, vector<8x32xf32>
    %c0_1 = arith.constant 0 : index
    %c0_2 = arith.constant 0 : index
    %1 = vector.load %arg2[%c0_1, %c0_2] : memref<32x32xf32, #tpu.memory_space<vmem>>, vector<32x32xf32>
    %cst = arith.constant dense<0.000000e+00> : vector<8x32xf32>
    %2 = tpu.matmul %0, %1, %cst {dimension_numbers = #tpu.dot_dimension_numbers<[1], [0], [0], [1], [0, 0, 1, 1], [], []>} : vector<8x32xf32>, vector<32x32xf32>, vector<8x32xf32> -> vector<8x32xf32>
    %c0_3 = arith.constant 0 : index
    %c0_4 = arith.constant 0 : index
    %3 = vector.load %arg3[%c0_3, %c0_4] : memref<1x32xf32, #tpu.memory_space<vmem>>, vector<1x32xf32>
    %4 = vector.broadcast %3 : vector<1x32xf32> to vector<8x32xf32>
    %5 = arith.addf %2, %4 : vector<8x32xf32>
    %c0_5 = arith.constant 0 : index
    %c0_6 = arith.constant 0 : index
    %6 = vector.load %arg4[%c0_5, %c0_6] : memref<8x32xf32, #tpu.memory_space<vmem>>, vector<8x32xf32>
    %7 = arith.addf %5, %6 : vector<8x32xf32>
    %c0_7 = arith.constant 0 : index
    %c0_8 = arith.constant 0 : index
    %8 = vector.load %arg5[%c0_7, %c0_8] : memref<1x32xf32, #tpu.memory_space<vmem>>, vector<1x32xf32>
    %c0_9 = arith.constant 0 : index
    %c0_10 = arith.constant 0 : index
    %9 = vector.load %arg6[%c0_9, %c0_10] : memref<1x32xf32, #tpu.memory_space<vmem>>, vector<1x32xf32>
    %cst_11 = arith.constant dense<0.000000e+00> : vector<8xf32>
    %10 = vector.multi_reduction <add>, %7, %cst_11 [1] : vector<8x32xf32> to vector<8xf32>
    %11 = vector.shape_cast %10 : vector<8xf32> to vector<8x1xf32>
    %cst_12 = arith.constant 3.200000e+01 : f32
    %12 = vector.broadcast %cst_12 : f32 to vector<8x1xf32>
    %13 = arith.divf %11, %12 : vector<8x1xf32>
    %14 = vector.broadcast %13 : vector<8x1xf32> to vector<8x32xf32>
    %15 = arith.subf %7, %14 : vector<8x32xf32>
    %16 = arith.mulf %15, %15 : vector<8x32xf32>
    %cst_13 = arith.constant dense<0.000000e+00> : vector<8xf32>
    %17 = vector.multi_reduction <add>, %16, %cst_13 [1] : vector<8x32xf32> to vector<8xf32>
    %18 = vector.shape_cast %17 : vector<8xf32> to vector<8x1xf32>
    %cst_14 = arith.constant 3.200000e+01 : f32
    %19 = vector.broadcast %cst_14 : f32 to vector<8x1xf32>
    %20 = arith.divf %18, %19 : vector<8x1xf32>
    %cst_15 = arith.constant 9.99999974E-6 : f32
    %21 = vector.broadcast %cst_15 : f32 to vector<8x1xf32>
    %22 = arith.addf %20, %21 : vector<8x1xf32>
    %23 = math.rsqrt %22 : vector<8x1xf32>
    %24 = vector.broadcast %23 : vector<8x1xf32> to vector<8x32xf32>
    %25 = arith.mulf %15, %24 : vector<8x32xf32>
    %26 = vector.broadcast %8 : vector<1x32xf32> to vector<8x32xf32>
    %27 = arith.mulf %25, %26 : vector<8x32xf32>
    %28 = vector.broadcast %9 : vector<1x32xf32> to vector<8x32xf32>
    %29 = arith.addf %27, %28 : vector<8x32xf32>
    %c0_16 = arith.constant 0 : index
    %c0_17 = arith.constant 0 : index
    %30 = vector.load %arg10[%c0_16, %c0_17] : memref<8x32xf32, #tpu.memory_space<vmem>>, vector<8x32xf32>
    tpu.vector_store %arg10[%c0_16, %c0_17], %29 {strides = array<i32>} : memref<8x32xf32, #tpu.memory_space<vmem>>, vector<8x32xf32>,
    %c0_18 = arith.constant 0 : index
    %c0_19 = arith.constant 0 : index
    %31 = vector.load %arg7[%c0_18, %c0_19] : memref<8x32xf32, #tpu.memory_space<vmem>>, vector<8x32xf32>
    %32 = arith.addf %29, %31 : vector<8x32xf32>
    %c0_20 = arith.constant 0 : index
    %c0_21 = arith.constant 0 : index
    %33 = vector.load %arg8[%c0_20, %c0_21] : memref<32x32xf32, #tpu.memory_space<vmem>>, vector<32x32xf32>
    %cst_22 = arith.constant dense<0.000000e+00> : vector<8x32xf32>
    %34 = tpu.matmul %32, %33, %cst_22 {dimension_numbers = #tpu.dot_dimension_numbers<[1], [0], [0], [1], [0, 0, 1, 1], [], []>} : vector<8x32xf32>, vector<32x32xf32>, vector<8x32xf32> -> vector<8x32xf32>
    %c0_23 = arith.constant 0 : index
    %c0_24 = arith.constant 0 : index
    %35 = vector.load %arg9[%c0_23, %c0_24] : memref<1x32xf32, #tpu.memory_space<vmem>>, vector<1x32xf32>
    %36 = vector.broadcast %35 : vector<1x32xf32> to vector<8x32xf32>
    %37 = arith.addf %34, %36 : vector<8x32xf32>
    %c0_25 = arith.constant 0 : index
    %c0_26 = arith.constant 0 : index
    %38 = vector.load %arg11[%c0_25, %c0_26] : memref<8x32xf32, #tpu.memory_space<vmem>>, vector<8x32xf32>
    tpu.vector_store %arg11[%c0_25, %c0_26], %37 {strides = array<i32>} : memref<8x32xf32, #tpu.memory_space<vmem>>, vector<8x32xf32>,
    return
  }
  func.func @transform_0(%arg0: i32) -> (i32, i32) {
    %c0_i32 = arith.constant 0 : i32
    %c0_i32_0 = arith.constant 0 : i32
    return %arg0, %c0_i32 : i32, i32
  }
  func.func @transform_1(%arg0: i32) -> (i32, i32) {
    %c0_i32 = arith.constant 0 : i32
    %c0_i32_0 = arith.constant 0 : i32
    %c0_i32_1 = arith.constant 0 : i32
    return %c0_i32, %c0_i32_0 : i32, i32
  }
  func.func @transform_2(%arg0: i32) -> (i32, i32) {
    %c0_i32 = arith.constant 0 : i32
    %c0_i32_0 = arith.constant 0 : i32
    %c0_i32_1 = arith.constant 0 : i32
    return %c0_i32, %c0_i32_0 : i32, i32
  }
  func.func @transform_3(%arg0: i32) -> (i32, i32) {
    %c0_i32 = arith.constant 0 : i32
    %c0_i32_0 = arith.constant 0 : i32
    return %arg0, %c0_i32 : i32, i32
  }
  func.func @transform_4(%arg0: i32) -> (i32, i32) {
    %c0_i32 = arith.constant 0 : i32
    %c0_i32_0 = arith.constant 0 : i32
    %c0_i32_1 = arith.constant 0 : i32
    return %c0_i32, %c0_i32_0 : i32, i32
  }
  func.func @transform_5(%arg0: i32) -> (i32, i32) {
    %c0_i32 = arith.constant 0 : i32
    %c0_i32_0 = arith.constant 0 : i32
    %c0_i32_1 = arith.constant 0 : i32
    return %c0_i32, %c0_i32_0 : i32, i32
  }
  func.func @transform_6(%arg0: i32) -> (i32, i32) {
    %c0_i32 = arith.constant 0 : i32
    %c0_i32_0 = arith.constant 0 : i32
    return %arg0, %c0_i32 : i32, i32
  }
  func.func @transform_7(%arg0: i32) -> (i32, i32) {
    %c0_i32 = arith.constant 0 : i32
    %c0_i32_0 = arith.constant 0 : i32
    %c0_i32_1 = arith.constant 0 : i32
    return %c0_i32, %c0_i32_0 : i32, i32
  }
  func.func @transform_8(%arg0: i32) -> (i32, i32) {
    %c0_i32 = arith.constant 0 : i32
    %c0_i32_0 = arith.constant 0 : i32
    %c0_i32_1 = arith.constant 0 : i32
    return %c0_i32, %c0_i32_0 : i32, i32
  }
  func.func @transform_9(%arg0: i32) -> (i32, i32) {
    %c0_i32 = arith.constant 0 : i32
    %c0_i32_0 = arith.constant 0 : i32
    return %arg0, %c0_i32 : i32, i32
  }
  func.func @transform_10(%arg0: i32) -> (i32, i32) {
    %c0_i32 = arith.constant 0 : i32
    %c0_i32_0 = arith.constant 0 : i32
    return %arg0, %c0_i32 : i32, i32
  }
}

module attributes {stable_mosaic.version = 11 : i64} {
  func.func @_attn_kernel(%arg0: i32, %arg1: memref<8x32xf32, #tpu.memory_space<vmem>>, %arg2: memref<16x32xf32, #tpu.memory_space<vmem>>, %arg3: memref<16x32xf32, #tpu.memory_space<vmem>>, %arg4: memref<8x32xf32, #tpu.memory_space<vmem>>) attributes {dimension_semantics = [#tpu.dimension_semantics<parallel>], iteration_bounds = array<i64: 2>, scalar_prefetch = 0 : i64, scratch_operands = 0 : i64, tpu.core_type = #tpu.core_type<tc>, window_params = [{transform_indices = @transform_0, window_bounds = array<i64: 8, 32>}, {transform_indices = @transform_1, window_bounds = array<i64: 16, 32>}, {transform_indices = @transform_2, window_bounds = array<i64: 16, 32>}, {transform_indices = @transform_3, window_bounds = array<i64: 8, 32>}]} {
    %c0 = arith.constant 0 : index
    %c0_0 = arith.constant 0 : index
    %0 = vector.load %arg1[%c0, %c0_0] : memref<8x32xf32, #tpu.memory_space<vmem>>, vector<8x32xf32>
    %c0_1 = arith.constant 0 : index
    %c0_2 = arith.constant 0 : index
    %1 = vector.load %arg2[%c0_1, %c0_2] : memref<16x32xf32, #tpu.memory_space<vmem>>, vector<16x32xf32>
    %c0_3 = arith.constant 0 : index
    %c0_4 = arith.constant 0 : index
    %2 = vector.load %arg3[%c0_3, %c0_4] : memref<16x32xf32, #tpu.memory_space<vmem>>, vector<16x32xf32>
    %3 = vector.extract_strided_slice %0 {offsets = [0, 0], sizes = [8, 8], strides = [1, 1]} : vector<8x32xf32> to vector<8x8xf32>
    %4 = vector.extract_strided_slice %1 {offsets = [0, 0], sizes = [16, 8], strides = [1, 1]} : vector<16x32xf32> to vector<16x8xf32>
    %cst = arith.constant dense<0.000000e+00> : vector<8x16xf32>
    %5 = tpu.matmul %3, %4, %cst {dimension_numbers = #tpu.dot_dimension_numbers<[1], [1], [0], [0], [0, 0, 1, 0], [], []>} : vector<8x8xf32>, vector<16x8xf32>, vector<8x16xf32> -> vector<8x16xf32>
    %cst_5 = arith.constant dense<0xFF800000> : vector<8xf32>
    %6 = vector.multi_reduction <maximumf>, %5, %cst_5 [1] : vector<8x16xf32> to vector<8xf32>
    %7 = vector.shape_cast %6 : vector<8xf32> to vector<8x1xf32>
    %8 = vector.broadcast %7 : vector<8x1xf32> to vector<8x16xf32>
    %9 = arith.subf %5, %8 : vector<8x16xf32>
    %10 = math.exp %9 : vector<8x16xf32>
    %cst_6 = arith.constant dense<0.000000e+00> : vector<8xf32>
    %11 = vector.multi_reduction <add>, %10, %cst_6 [1] : vector<8x16xf32> to vector<8xf32>
    %12 = vector.shape_cast %11 : vector<8xf32> to vector<8x1xf32>
    %13 = vector.extract_strided_slice %2 {offsets = [0, 0], sizes = [16, 8], strides = [1, 1]} : vector<16x32xf32> to vector<16x8xf32>
    %cst_7 = arith.constant dense<0.000000e+00> : vector<8x8xf32>
    %14 = tpu.matmul %10, %13, %cst_7 {dimension_numbers = #tpu.dot_dimension_numbers<[1], [0], [0], [1], [0, 0, 1, 1], [], []>} : vector<8x16xf32>, vector<16x8xf32>, vector<8x8xf32> -> vector<8x8xf32>
    %15 = tpu.reciprocal %12 {approx = true} : vector<8x1xf32> -> vector<8x1xf32>
    %16 = vector.broadcast %15 : vector<8x1xf32> to vector<8x8xf32>
    %17 = arith.mulf %14, %16 : vector<8x8xf32>
    %18 = vector.extract_strided_slice %0 {offsets = [0, 8], sizes = [8, 8], strides = [1, 1]} : vector<8x32xf32> to vector<8x8xf32>
    %19 = vector.extract_strided_slice %1 {offsets = [0, 8], sizes = [16, 8], strides = [1, 1]} : vector<16x32xf32> to vector<16x8xf32>
    %cst_8 = arith.constant dense<0.000000e+00> : vector<8x16xf32>
    %20 = tpu.matmul %18, %19, %cst_8 {dimension_numbers = #tpu.dot_dimension_numbers<[1], [1], [0], [0], [0, 0, 1, 0], [], []>} : vector<8x8xf32>, vector<16x8xf32>, vector<8x16xf32> -> vector<8x16xf32>
    %cst_9 = arith.constant dense<0xFF800000> : vector<8xf32>
    %21 = vector.multi_reduction <maximumf>, %20, %cst_9 [1] : vector<8x16xf32> to vector<8xf32>
    %22 = vector.shape_cast %21 : vector<8xf32> to vector<8x1xf32>
    %23 = vector.broadcast %22 : vector<8x1xf32> to vector<8x16xf32>
    %24 = arith.subf %20, %23 : vector<8x16xf32>
    %25 = math.exp %24 : vector<8x16xf32>
    %cst_10 = arith.constant dense<0.000000e+00> : vector<8xf32>
    %26 = vector.multi_reduction <add>, %25, %cst_10 [1] : vector<8x16xf32> to vector<8xf32>
    %27 = vector.shape_cast %26 : vector<8xf32> to vector<8x1xf32>
    %28 = vector.extract_strided_slice %2 {offsets = [0, 8], sizes = [16, 8], strides = [1, 1]} : vector<16x32xf32> to vector<16x8xf32>
    %cst_11 = arith.constant dense<0.000000e+00> : vector<8x8xf32>
    %29 = tpu.matmul %25, %28, %cst_11 {dimension_numbers = #tpu.dot_dimension_numbers<[1], [0], [0], [1], [0, 0, 1, 1], [], []>} : vector<8x16xf32>, vector<16x8xf32>, vector<8x8xf32> -> vector<8x8xf32>
    %30 = tpu.reciprocal %27 {approx = true} : vector<8x1xf32> -> vector<8x1xf32>
    %31 = vector.broadcast %30 : vector<8x1xf32> to vector<8x8xf32>
    %32 = arith.mulf %29, %31 : vector<8x8xf32>
    %33 = vector.extract_strided_slice %0 {offsets = [0, 16], sizes = [8, 8], strides = [1, 1]} : vector<8x32xf32> to vector<8x8xf32>
    %34 = vector.extract_strided_slice %1 {offsets = [0, 16], sizes = [16, 8], strides = [1, 1]} : vector<16x32xf32> to vector<16x8xf32>
    %cst_12 = arith.constant dense<0.000000e+00> : vector<8x16xf32>
    %35 = tpu.matmul %33, %34, %cst_12 {dimension_numbers = #tpu.dot_dimension_numbers<[1], [1], [0], [0], [0, 0, 1, 0], [], []>} : vector<8x8xf32>, vector<16x8xf32>, vector<8x16xf32> -> vector<8x16xf32>
    %cst_13 = arith.constant dense<0xFF800000> : vector<8xf32>
    %36 = vector.multi_reduction <maximumf>, %35, %cst_13 [1] : vector<8x16xf32> to vector<8xf32>
    %37 = vector.shape_cast %36 : vector<8xf32> to vector<8x1xf32>
    %38 = vector.broadcast %37 : vector<8x1xf32> to vector<8x16xf32>
    %39 = arith.subf %35, %38 : vector<8x16xf32>
    %40 = math.exp %39 : vector<8x16xf32>
    %cst_14 = arith.constant dense<0.000000e+00> : vector<8xf32>
    %41 = vector.multi_reduction <add>, %40, %cst_14 [1] : vector<8x16xf32> to vector<8xf32>
    %42 = vector.shape_cast %41 : vector<8xf32> to vector<8x1xf32>
    %43 = vector.extract_strided_slice %2 {offsets = [0, 16], sizes = [16, 8], strides = [1, 1]} : vector<16x32xf32> to vector<16x8xf32>
    %cst_15 = arith.constant dense<0.000000e+00> : vector<8x8xf32>
    %44 = tpu.matmul %40, %43, %cst_15 {dimension_numbers = #tpu.dot_dimension_numbers<[1], [0], [0], [1], [0, 0, 1, 1], [], []>} : vector<8x16xf32>, vector<16x8xf32>, vector<8x8xf32> -> vector<8x8xf32>
    %45 = tpu.reciprocal %42 {approx = true} : vector<8x1xf32> -> vector<8x1xf32>
    %46 = vector.broadcast %45 : vector<8x1xf32> to vector<8x8xf32>
    %47 = arith.mulf %44, %46 : vector<8x8xf32>
    %48 = vector.extract_strided_slice %0 {offsets = [0, 24], sizes = [8, 8], strides = [1, 1]} : vector<8x32xf32> to vector<8x8xf32>
    %49 = vector.extract_strided_slice %1 {offsets = [0, 24], sizes = [16, 8], strides = [1, 1]} : vector<16x32xf32> to vector<16x8xf32>
    %cst_16 = arith.constant dense<0.000000e+00> : vector<8x16xf32>
    %50 = tpu.matmul %48, %49, %cst_16 {dimension_numbers = #tpu.dot_dimension_numbers<[1], [1], [0], [0], [0, 0, 1, 0], [], []>} : vector<8x8xf32>, vector<16x8xf32>, vector<8x16xf32> -> vector<8x16xf32>
    %cst_17 = arith.constant dense<0xFF800000> : vector<8xf32>
    %51 = vector.multi_reduction <maximumf>, %50, %cst_17 [1] : vector<8x16xf32> to vector<8xf32>
    %52 = vector.shape_cast %51 : vector<8xf32> to vector<8x1xf32>
    %53 = vector.broadcast %52 : vector<8x1xf32> to vector<8x16xf32>
    %54 = arith.subf %50, %53 : vector<8x16xf32>
    %55 = math.exp %54 : vector<8x16xf32>
    %cst_18 = arith.constant dense<0.000000e+00> : vector<8xf32>
    %56 = vector.multi_reduction <add>, %55, %cst_18 [1] : vector<8x16xf32> to vector<8xf32>
    %57 = vector.shape_cast %56 : vector<8xf32> to vector<8x1xf32>
    %58 = vector.extract_strided_slice %2 {offsets = [0, 24], sizes = [16, 8], strides = [1, 1]} : vector<16x32xf32> to vector<16x8xf32>
    %cst_19 = arith.constant dense<0.000000e+00> : vector<8x8xf32>
    %59 = tpu.matmul %55, %58, %cst_19 {dimension_numbers = #tpu.dot_dimension_numbers<[1], [0], [0], [1], [0, 0, 1, 1], [], []>} : vector<8x16xf32>, vector<16x8xf32>, vector<8x8xf32> -> vector<8x8xf32>
    %60 = tpu.reciprocal %57 {approx = true} : vector<8x1xf32> -> vector<8x1xf32>
    %61 = vector.broadcast %60 : vector<8x1xf32> to vector<8x8xf32>
    %62 = arith.mulf %59, %61 : vector<8x8xf32>
    %63 = tpu.concatenate %17, %32, %47, %62 in 1 : vector<8x8xf32>, vector<8x8xf32>, vector<8x8xf32>, vector<8x8xf32> -> vector<8x32xf32>
    %c0_20 = arith.constant 0 : index
    %c0_21 = arith.constant 0 : index
    %64 = vector.load %arg4[%c0_20, %c0_21] : memref<8x32xf32, #tpu.memory_space<vmem>>, vector<8x32xf32>
    tpu.vector_store %arg4[%c0_20, %c0_21], %63 {strides = array<i32>} : memref<8x32xf32, #tpu.memory_space<vmem>>, vector<8x32xf32>,
    return
  }
  func.func @transform_0(%arg0: i32) -> (i32, i32) {
    %c0_i32 = arith.constant 0 : i32
    %c0_i32_0 = arith.constant 0 : i32
    return %arg0, %c0_i32 : i32, i32
  }
  func.func @transform_1(%arg0: i32) -> (i32, i32) {
    %c0_i32 = arith.constant 0 : i32
    %c0_i32_0 = arith.constant 0 : i32
    return %arg0, %c0_i32 : i32, i32
  }
  func.func @transform_2(%arg0: i32) -> (i32, i32) {
    %c0_i32 = arith.constant 0 : i32
    %c0_i32_0 = arith.constant 0 : i32
    return %arg0, %c0_i32 : i32, i32
  }
  func.func @transform_3(%arg0: i32) -> (i32, i32) {
    %c0_i32 = arith.constant 0 : i32
    %c0_i32_0 = arith.constant 0 : i32
    return %arg0, %c0_i32 : i32, i32
  }
}

module attributes {stable_mosaic.version = 11 : i64} {
  func.func @_attn_tail_kernel(%arg0: i32, %arg1: memref<8x32xf32, #tpu.memory_space<vmem>>, %arg2: memref<32x32xf32, #tpu.memory_space<vmem>>, %arg3: memref<1x32xf32, #tpu.memory_space<vmem>>, %arg4: memref<8x32xf32, #tpu.memory_space<vmem>>, %arg5: memref<1x32xf32, #tpu.memory_space<vmem>>, %arg6: memref<1x32xf32, #tpu.memory_space<vmem>>, %arg7: memref<8x32xf32, #tpu.memory_space<vmem>>) attributes {dimension_semantics = [#tpu.dimension_semantics<parallel>], iteration_bounds = array<i64: 2>, scalar_prefetch = 0 : i64, scratch_operands = 0 : i64, tpu.core_type = #tpu.core_type<tc>, window_params = [{transform_indices = @transform_0, window_bounds = array<i64: 8, 32>}, {pipeline_mode = #tpu.pipeline_mode<synchronous>, transform_indices = @transform_1, window_bounds = array<i64: 32, 32>}, {pipeline_mode = #tpu.pipeline_mode<synchronous>, transform_indices = @transform_2, window_bounds = array<i64: 1, 32>}, {transform_indices = @transform_3, window_bounds = array<i64: 8, 32>}, {pipeline_mode = #tpu.pipeline_mode<synchronous>, transform_indices = @transform_4, window_bounds = array<i64: 1, 32>}, {pipeline_mode = #tpu.pipeline_mode<synchronous>, transform_indices = @transform_5, window_bounds = array<i64: 1, 32>}, {transform_indices = @transform_6, window_bounds = array<i64: 8, 32>}]} {
    %c0 = arith.constant 0 : index
    %c0_0 = arith.constant 0 : index
    %0 = vector.load %arg1[%c0, %c0_0] : memref<8x32xf32, #tpu.memory_space<vmem>>, vector<8x32xf32>
    %c0_1 = arith.constant 0 : index
    %c0_2 = arith.constant 0 : index
    %1 = vector.load %arg2[%c0_1, %c0_2] : memref<32x32xf32, #tpu.memory_space<vmem>>, vector<32x32xf32>
    %cst = arith.constant dense<0.000000e+00> : vector<8x32xf32>
    %2 = tpu.matmul %0, %1, %cst {dimension_numbers = #tpu.dot_dimension_numbers<[1], [0], [0], [1], [0, 0, 1, 1], [], []>} : vector<8x32xf32>, vector<32x32xf32>, vector<8x32xf32> -> vector<8x32xf32>
    %c0_3 = arith.constant 0 : index
    %c0_4 = arith.constant 0 : index
    %3 = vector.load %arg3[%c0_3, %c0_4] : memref<1x32xf32, #tpu.memory_space<vmem>>, vector<1x32xf32>
    %4 = vector.broadcast %3 : vector<1x32xf32> to vector<8x32xf32>
    %5 = arith.addf %2, %4 : vector<8x32xf32>
    %c0_5 = arith.constant 0 : index
    %c0_6 = arith.constant 0 : index
    %6 = vector.load %arg4[%c0_5, %c0_6] : memref<8x32xf32, #tpu.memory_space<vmem>>, vector<8x32xf32>
    %7 = arith.addf %5, %6 : vector<8x32xf32>
    %c0_7 = arith.constant 0 : index
    %c0_8 = arith.constant 0 : index
    %8 = vector.load %arg5[%c0_7, %c0_8] : memref<1x32xf32, #tpu.memory_space<vmem>>, vector<1x32xf32>
    %c0_9 = arith.constant 0 : index
    %c0_10 = arith.constant 0 : index
    %9 = vector.load %arg6[%c0_9, %c0_10] : memref<1x32xf32, #tpu.memory_space<vmem>>, vector<1x32xf32>
    %cst_11 = arith.constant dense<0.000000e+00> : vector<8xf32>
    %10 = vector.multi_reduction <add>, %7, %cst_11 [1] : vector<8x32xf32> to vector<8xf32>
    %11 = vector.shape_cast %10 : vector<8xf32> to vector<8x1xf32>
    %cst_12 = arith.constant 3.200000e+01 : f32
    %12 = vector.broadcast %cst_12 : f32 to vector<8x1xf32>
    %13 = arith.divf %11, %12 : vector<8x1xf32>
    %14 = vector.broadcast %13 : vector<8x1xf32> to vector<8x32xf32>
    %15 = arith.subf %7, %14 : vector<8x32xf32>
    %16 = arith.mulf %15, %15 : vector<8x32xf32>
    %cst_13 = arith.constant dense<0.000000e+00> : vector<8xf32>
    %17 = vector.multi_reduction <add>, %16, %cst_13 [1] : vector<8x32xf32> to vector<8xf32>
    %18 = vector.shape_cast %17 : vector<8xf32> to vector<8x1xf32>
    %cst_14 = arith.constant 3.200000e+01 : f32
    %19 = vector.broadcast %cst_14 : f32 to vector<8x1xf32>
    %20 = arith.divf %18, %19 : vector<8x1xf32>
    %cst_15 = arith.constant 9.99999974E-6 : f32
    %21 = vector.broadcast %cst_15 : f32 to vector<8x1xf32>
    %22 = arith.addf %20, %21 : vector<8x1xf32>
    %23 = math.rsqrt %22 : vector<8x1xf32>
    %24 = vector.broadcast %23 : vector<8x1xf32> to vector<8x32xf32>
    %25 = arith.mulf %15, %24 : vector<8x32xf32>
    %26 = vector.broadcast %8 : vector<1x32xf32> to vector<8x32xf32>
    %27 = arith.mulf %25, %26 : vector<8x32xf32>
    %28 = vector.broadcast %9 : vector<1x32xf32> to vector<8x32xf32>
    %29 = arith.addf %27, %28 : vector<8x32xf32>
    %c0_16 = arith.constant 0 : index
    %c0_17 = arith.constant 0 : index
    %30 = vector.load %arg7[%c0_16, %c0_17] : memref<8x32xf32, #tpu.memory_space<vmem>>, vector<8x32xf32>
    tpu.vector_store %arg7[%c0_16, %c0_17], %29 {strides = array<i32>} : memref<8x32xf32, #tpu.memory_space<vmem>>, vector<8x32xf32>,
    return
  }
  func.func @transform_0(%arg0: i32) -> (i32, i32) {
    %c0_i32 = arith.constant 0 : i32
    %c0_i32_0 = arith.constant 0 : i32
    return %arg0, %c0_i32 : i32, i32
  }
  func.func @transform_1(%arg0: i32) -> (i32, i32) {
    %c0_i32 = arith.constant 0 : i32
    %c0_i32_0 = arith.constant 0 : i32
    %c0_i32_1 = arith.constant 0 : i32
    return %c0_i32, %c0_i32_0 : i32, i32
  }
  func.func @transform_2(%arg0: i32) -> (i32, i32) {
    %c0_i32 = arith.constant 0 : i32
    %c0_i32_0 = arith.constant 0 : i32
    %c0_i32_1 = arith.constant 0 : i32
    return %c0_i32, %c0_i32_0 : i32, i32
  }
  func.func @transform_3(%arg0: i32) -> (i32, i32) {
    %c0_i32 = arith.constant 0 : i32
    %c0_i32_0 = arith.constant 0 : i32
    return %arg0, %c0_i32 : i32, i32
  }
  func.func @transform_4(%arg0: i32) -> (i32, i32) {
    %c0_i32 = arith.constant 0 : i32
    %c0_i32_0 = arith.constant 0 : i32
    %c0_i32_1 = arith.constant 0 : i32
    return %c0_i32, %c0_i32_0 : i32, i32
  }
  func.func @transform_5(%arg0: i32) -> (i32, i32) {
    %c0_i32 = arith.constant 0 : i32
    %c0_i32_0 = arith.constant 0 : i32
    %c0_i32_1 = arith.constant 0 : i32
    return %c0_i32, %c0_i32_0 : i32, i32
  }
  func.func @transform_6(%arg0: i32) -> (i32, i32) {
    %c0_i32 = arith.constant 0 : i32
    %c0_i32_0 = arith.constant 0 : i32
    return %arg0, %c0_i32 : i32, i32
  }
}

module attributes {stable_mosaic.version = 11 : i64} {
  func.func @_ffn_ln_kernel(%arg0: i32, %arg1: memref<8x32xf32, #tpu.memory_space<vmem>>, %arg2: memref<32x64xf32, #tpu.memory_space<vmem>>, %arg3: memref<1x64xf32, #tpu.memory_space<vmem>>, %arg4: memref<64x32xf32, #tpu.memory_space<vmem>>, %arg5: memref<1x32xf32, #tpu.memory_space<vmem>>, %arg6: memref<1x32xf32, #tpu.memory_space<vmem>>, %arg7: memref<1x32xf32, #tpu.memory_space<vmem>>, %arg8: memref<8x32xf32, #tpu.memory_space<vmem>>) attributes {dimension_semantics = [#tpu.dimension_semantics<parallel>], iteration_bounds = array<i64: 2>, scalar_prefetch = 0 : i64, scratch_operands = 0 : i64, tpu.core_type = #tpu.core_type<tc>, window_params = [{transform_indices = @transform_0, window_bounds = array<i64: 8, 32>}, {pipeline_mode = #tpu.pipeline_mode<synchronous>, transform_indices = @transform_1, window_bounds = array<i64: 32, 64>}, {pipeline_mode = #tpu.pipeline_mode<synchronous>, transform_indices = @transform_2, window_bounds = array<i64: 1, 64>}, {pipeline_mode = #tpu.pipeline_mode<synchronous>, transform_indices = @transform_3, window_bounds = array<i64: 64, 32>}, {pipeline_mode = #tpu.pipeline_mode<synchronous>, transform_indices = @transform_4, window_bounds = array<i64: 1, 32>}, {pipeline_mode = #tpu.pipeline_mode<synchronous>, transform_indices = @transform_5, window_bounds = array<i64: 1, 32>}, {pipeline_mode = #tpu.pipeline_mode<synchronous>, transform_indices = @transform_6, window_bounds = array<i64: 1, 32>}, {transform_indices = @transform_7, window_bounds = array<i64: 8, 32>}]} {
    %c0 = arith.constant 0 : index
    %c0_0 = arith.constant 0 : index
    %0 = vector.load %arg1[%c0, %c0_0] : memref<8x32xf32, #tpu.memory_space<vmem>>, vector<8x32xf32>
    %c0_1 = arith.constant 0 : index
    %c0_2 = arith.constant 0 : index
    %1 = vector.load %arg2[%c0_1, %c0_2] : memref<32x64xf32, #tpu.memory_space<vmem>>, vector<32x64xf32>
    %cst = arith.constant dense<0.000000e+00> : vector<8x64xf32>
    %2 = tpu.matmul %0, %1, %cst {dimension_numbers = #tpu.dot_dimension_numbers<[1], [0], [0], [1], [0, 0, 1, 1], [], []>} : vector<8x32xf32>, vector<32x64xf32>, vector<8x64xf32> -> vector<8x64xf32>
    %c0_3 = arith.constant 0 : index
    %c0_4 = arith.constant 0 : index
    %3 = vector.load %arg3[%c0_3, %c0_4] : memref<1x64xf32, #tpu.memory_space<vmem>>, vector<1x64xf32>
    %4 = vector.broadcast %3 : vector<1x64xf32> to vector<8x64xf32>
    %5 = arith.addf %2, %4 : vector<8x64xf32>
    %cst_5 = arith.constant 0.000000e+00 : f32
    %6 = vector.broadcast %cst_5 : f32 to vector<8x64xf32>
    %7 = arith.maximumf %5, %6 : vector<8x64xf32>
    %c0_6 = arith.constant 0 : index
    %c0_7 = arith.constant 0 : index
    %8 = vector.load %arg4[%c0_6, %c0_7] : memref<64x32xf32, #tpu.memory_space<vmem>>, vector<64x32xf32>
    %cst_8 = arith.constant dense<0.000000e+00> : vector<8x32xf32>
    %9 = tpu.matmul %7, %8, %cst_8 {dimension_numbers = #tpu.dot_dimension_numbers<[1], [0], [0], [1], [0, 0, 1, 1], [], []>} : vector<8x64xf32>, vector<64x32xf32>, vector<8x32xf32> -> vector<8x32xf32>
    %c0_9 = arith.constant 0 : index
    %c0_10 = arith.constant 0 : index
    %10 = vector.load %arg5[%c0_9, %c0_10] : memref<1x32xf32, #tpu.memory_space<vmem>>, vector<1x32xf32>
    %11 = vector.broadcast %10 : vector<1x32xf32> to vector<8x32xf32>
    %12 = arith.addf %9, %11 : vector<8x32xf32>
    %13 = arith.addf %12, %12 : vector<8x32xf32>
    %c0_11 = arith.constant 0 : index
    %c0_12 = arith.constant 0 : index
    %14 = vector.load %arg6[%c0_11, %c0_12] : memref<1x32xf32, #tpu.memory_space<vmem>>, vector<1x32xf32>
    %c0_13 = arith.constant 0 : index
    %c0_14 = arith.constant 0 : index
    %15 = vector.load %arg7[%c0_13, %c0_14] : memref<1x32xf32, #tpu.memory_space<vmem>>, vector<1x32xf32>
    %cst_15 = arith.constant dense<0.000000e+00> : vector<8xf32>
    %16 = vector.multi_reduction <add>, %13, %cst_15 [1] : vector<8x32xf32> to vector<8xf32>
    %17 = vector.shape_cast %16 : vector<8xf32> to vector<8x1xf32>
    %cst_16 = arith.constant 3.200000e+01 : f32
    %18 = vector.broadcast %cst_16 : f32 to vector<8x1xf32>
    %19 = arith.divf %17, %18 : vector<8x1xf32>
    %20 = vector.broadcast %19 : vector<8x1xf32> to vector<8x32xf32>
    %21 = arith.subf %13, %20 : vector<8x32xf32>
    %22 = arith.mulf %21, %21 : vector<8x32xf32>
    %cst_17 = arith.constant dense<0.000000e+00> : vector<8xf32>
    %23 = vector.multi_reduction <add>, %22, %cst_17 [1] : vector<8x32xf32> to vector<8xf32>
    %24 = vector.shape_cast %23 : vector<8xf32> to vector<8x1xf32>
    %cst_18 = arith.constant 3.200000e+01 : f32
    %25 = vector.broadcast %cst_18 : f32 to vector<8x1xf32>
    %26 = arith.divf %24, %25 : vector<8x1xf32>
    %cst_19 = arith.constant 9.99999974E-6 : f32
    %27 = vector.broadcast %cst_19 : f32 to vector<8x1xf32>
    %28 = arith.addf %26, %27 : vector<8x1xf32>
    %29 = math.rsqrt %28 : vector<8x1xf32>
    %30 = vector.broadcast %29 : vector<8x1xf32> to vector<8x32xf32>
    %31 = arith.mulf %21, %30 : vector<8x32xf32>
    %32 = vector.broadcast %14 : vector<1x32xf32> to vector<8x32xf32>
    %33 = arith.mulf %31, %32 : vector<8x32xf32>
    %34 = vector.broadcast %15 : vector<1x32xf32> to vector<8x32xf32>
    %35 = arith.addf %33, %34 : vector<8x32xf32>
    %c0_20 = arith.constant 0 : index
    %c0_21 = arith.constant 0 : index
    %36 = vector.load %arg8[%c0_20, %c0_21] : memref<8x32xf32, #tpu.memory_space<vmem>>, vector<8x32xf32>
    tpu.vector_store %arg8[%c0_20, %c0_21], %35 {strides = array<i32>} : memref<8x32xf32, #tpu.memory_space<vmem>>, vector<8x32xf32>,
    return
  }
  func.func @transform_0(%arg0: i32) -> (i32, i32) {
    %c0_i32 = arith.constant 0 : i32
    %c0_i32_0 = arith.constant 0 : i32
    return %arg0, %c0_i32 : i32, i32
  }
  func.func @transform_1(%arg0: i32) -> (i32, i32) {
    %c0_i32 = arith.constant 0 : i32
    %c0_i32_0 = arith.constant 0 : i32
    %c0_i32_1 = arith.constant 0 : i32
    return %c0_i32, %c0_i32_0 : i32, i32
  }
  func.func @transform_2(%arg0: i32) -> (i32, i32) {
    %c0_i32 = arith.constant 0 : i32
    %c0_i32_0 = arith.constant 0 : i32
    %c0_i32_1 = arith.constant 0 : i32
    return %c0_i32, %c0_i32_0 : i32, i32
  }
  func.func @transform_3(%arg0: i32) -> (i32, i32) {
    %c0_i32 = arith.constant 0 : i32
    %c0_i32_0 = arith.constant 0 : i32
    %c0_i32_1 = arith.constant 0 : i32
    return %c0_i32, %c0_i32_0 : i32, i32
  }
  func.func @transform_4(%arg0: i32) -> (i32, i32) {
    %c0_i32 = arith.constant 0 : i32
    %c0_i32_0 = arith.constant 0 : i32
    %c0_i32_1 = arith.constant 0 : i32
    return %c0_i32, %c0_i32_0 : i32, i32
  }
  func.func @transform_5(%arg0: i32) -> (i32, i32) {
    %c0_i32 = arith.constant 0 : i32
    %c0_i32_0 = arith.constant 0 : i32
    %c0_i32_1 = arith.constant 0 : i32
    return %c0_i32, %c0_i32_0 : i32, i32
  }
  func.func @transform_6(%arg0: i32) -> (i32, i32) {
    %c0_i32 = arith.constant 0 : i32
    %c0_i32_0 = arith.constant 0 : i32
    %c0_i32_1 = arith.constant 0 : i32
    return %c0_i32, %c0_i32_0 : i32, i32
  }
  func.func @transform_7(%arg0: i32) -> (i32, i32) {
    %c0_i32 = arith.constant 0 : i32
    %c0_i32_0 = arith.constant 0 : i32
    return %arg0, %c0_i32 : i32, i32
  }
}

</mosaic_0001>

<llo_original>
// kernel: decoder_layer_pallas.10
$region0: #{decoder_layer_pallas.10}
  #allocation0 [shape = 'u32[]', space=smem, size = 0x4, offset = 0x4, fixed_abs, tag = 'smem constant byte address 0x4 - core index']
  #allocation1 [shape = 'u32[72,128]{1,0:T(1,128)}', space=vmem, size = 0x9000, scoped, tag = 'internal scratch']
  %s0 = inlined_call_operand.vmem [shape: f32[32,32], index: 0, kind: input, shape index: {}]
  %s1 = inlined_call_operand.vmem [shape: f32[32,32], index: 1, kind: input, shape index: {}]
  %s2 = inlined_call_operand.vmem [shape: f32[32,32], index: 2, kind: input, shape index: {}]
  %s3 = inlined_call_operand.vmem [shape: f32[1,32], index: 3, kind: input, shape index: {}]
  %s4 = inlined_call_operand.vmem [shape: f32[32,32], index: 4, kind: input, shape index: {}]
  %s5 = inlined_call_operand.vmem [shape: f32[1,32], index: 5, kind: input, shape index: {}]
  %s6 = inlined_call_operand.vmem [shape: f32[32,32], index: 6, kind: output, shape index: {0}]
  %s7 = inlined_call_operand.vmem [shape: f32[32,32], index: 7, kind: output, shape index: {1}]
  %8 = xla_tuple %s6, %s7
  %s9 = sld [smem:[#allocation0]]
  $region65: #{decoder_layer_pallas.10} parent=0
    _
  %s11 = ssub.s32 1, %s9
  %s12 = scalar_select 0, %s11, %s9
  loop: start=0, step=1, limit=4
  $region2: #{decoder_layer_pallas.10} parent=0 // loop_pre_header
    _
  $region3: #{decoder_layer_pallas.10} parent=0 // loop_header
    %s14 = sphi 0, %s18
    %p15 = scmp.ge.s32.totalorder %s14, 4
    %s24 = sphi 0, %s26
    %s27 = sphi 0, %s24
    %s28 = sphi 0, %s27
    %s44 = sphi 0, %s28
    %s50 = sphi 0, %s52
    %s53 = sphi 0, %s50
    %s54 = sphi 0, %s53
    %s70 = sphi 0, %s54
    %s74 = sphi 0, %s74
    %s76 = sphi 0, %s74
    %s77 = sphi 0, %s76
    %s91 = sphi 0, %s77
    %s95 = sphi 0, %s95
    %s97 = sphi 0, %s95
    %s98 = sphi 0, %s97
    %s112 = sphi 0, %s98
    %s116 = sphi 0, %s116
    %s118 = sphi 0, %s116
    %s119 = sphi 0, %s118
    %s133 = sphi 0, %s119
    %s137 = sphi 0, %s137
    %s139 = sphi 0, %s137
    %s140 = sphi 0, %s139
    %s154 = sphi 0, %s140
    %s160 = sphi 0, %s162
    %s163 = sphi 0, %s160
    %s164 = sphi 0, %s163
    %s180 = sphi 0, %s164
    %s186 = sphi 0, %s188
    %s189 = sphi 0, %s186
    %s190 = sphi 0, %s189
    %s206 = sphi 0, %s190
  $region4: #{decoder_layer_pallas.10} parent=0 // loop_header_branch
    %17 = sbr.rel (%p15) target = $region8
  $region5: #{decoder_layer_pallas.10} parent=0 // loop_body
    %s19 = ssub.s32 %s14, 1
    %s20 = ssub.s32 %s14, 2
    %s21 = sadd.s32 %s14, 1
    %s22 = ssub.s32 %s14, %s21
    %p23 = scmp.eq.s32.totalorder %s22, 0
    %s25 = sadd.s32 %s24, 1
    %s26 = scalar_select %p23, %s24, %s25
    %p29 = pneg %p23
    %p30 = scmp.eq.s32.totalorder %s14, 1
    %p31 = por %p29, %p30
    %p32 = scmp.ne.s32.totalorder %s24, %s27
    %p33 = scmp.eq.s32.totalorder %s14, 0
    %p34 = por %p32, %p33
    %p35 = scmp.ne.s32.totalorder %s24, %s27
    %p36 = scmp.eq.s32.totalorder %s19, 1
    %p37 = por %p35, %p36
    %p38 = scmp.ne.s32.totalorder %s27, %s28
    %p39 = scmp.eq.s32.totalorder %s19, 0
    %p40 = por %p38, %p39
    %p41 = scmp.ne.s32.totalorder %s27, %s28
    %p42 = scmp.eq.s32.totalorder %s20, 1
    %p43 = por %p41, %p42
    %p45 = scmp.ne.s32.totalorder %s28, %s44
    %p46 = scmp.eq.s32.totalorder %s20, 0
    %p47 = por %p45, %p46
    %s48 = ssub.s32 %s14, %s21
    %p49 = scmp.eq.s32.totalorder %s48, 0
    %s51 = sadd.s32 %s50, 1
    %s52 = scalar_select %p49, %s50, %s51
    %p55 = pneg %p49
    %p56 = scmp.eq.s32.totalorder %s14, 1
    %p57 = por %p55, %p56
    %p58 = scmp.ne.s32.totalorder %s50, %s53
    %p59 = scmp.eq.s32.totalorder %s14, 0
    %p60 = por %p58, %p59
    %p61 = scmp.ne.s32.totalorder %s50, %s53
    %p62 = scmp.eq.s32.totalorder %s19, 1
    %p63 = por %p61, %p62
    %p64 = scmp.ne.s32.totalorder %s53, %s54
    %p65 = scmp.eq.s32.totalorder %s19, 0
    %p66 = por %p64, %p65
    %p67 = scmp.ne.s32.totalorder %s53, %s54
    %p68 = scmp.eq.s32.totalorder %s20, 1
    %p69 = por %p67, %p68
    %p71 = scmp.ne.s32.totalorder %s54, %s70
    %p72 = scmp.eq.s32.totalorder %s20, 0
    %p73 = por %p71, %p72
    %s75 = sadd.s32 %s74, 1
    %p78 = scmp.eq.s32.totalorder %s14, 1
    %p79 = scmp.ne.s32.totalorder %s74, %s76
    %p80 = scmp.eq.s32.totalorder %s14, 0
    %p81 = por %p79, %p80
    %p82 = scmp.ne.s32.totalorder %s74, %s76
    %p83 = scmp.eq.s32.totalorder %s19, 1
    %p84 = por %p82, %p83
    %p85 = scmp.ne.s32.totalorder %s76, %s77
    %p86 = scmp.eq.s32.totalorder %s19, 0
    %p87 = por %p85, %p86
    %p88 = scmp.ne.s32.totalorder %s76, %s77
    %p89 = scmp.eq.s32.totalorder %s20, 1
    %p90 = por %p88, %p89
    %p92 = scmp.ne.s32.totalorder %s77, %s91
    %p93 = scmp.eq.s32.totalorder %s20, 0
    %p94 = por %p92, %p93
    %s96 = sadd.s32 %s95, 1
    %p99 = scmp.eq.s32.totalorder %s14, 1
    %p100 = scmp.ne.s32.totalorder %s95, %s97
    %p101 = scmp.eq.s32.totalorder %s14, 0
    %p102 = por %p100, %p101
    %p103 = scmp.ne.s32.totalorder %s95, %s97
    %p104 = scmp.eq.s32.totalorder %s19, 1
    %p105 = por %p103, %p104
    %p106 = scmp.ne.s32.totalorder %s97, %s98
    %p107 = scmp.eq.s32.totalorder %s19, 0
    %p108 = por %p106, %p107
    %p109 = scmp.ne.s32.totalorder %s97, %s98
    %p110 = scmp.eq.s32.totalorder %s20, 1
    %p111 = por %p109, %p110
    %p113 = scmp.ne.s32.totalorder %s98, %s112
    %p114 = scmp.eq.s32.totalorder %s20, 0
    %p115 = por %p113, %p114
    %s117 = sadd.s32 %s116, 1
    %p120 = scmp.eq.s32.totalorder %s14, 1
    %p121 = scmp.ne.s32.totalorder %s116, %s118
    %p122 = scmp.eq.s32.totalorder %s14, 0
    %p123 = por %p121, %p122
    %p124 = scmp.ne.s32.totalorder %s116, %s118
    %p125 = scmp.eq.s32.totalorder %s19, 1
    %p126 = por %p124, %p125
    %p127 = scmp.ne.s32.totalorder %s118, %s119
    %p128 = scmp.eq.s32.totalorder %s19, 0
    %p129 = por %p127, %p128
    %p130 = scmp.ne.s32.totalorder %s118, %s119
    %p131 = scmp.eq.s32.totalorder %s20, 1
    %p132 = por %p130, %p131
    %p134 = scmp.ne.s32.totalorder %s119, %s133
    %p135 = scmp.eq.s32.totalorder %s20, 0
    %p136 = por %p134, %p135
    %s138 = sadd.s32 %s137, 1
    %p141 = scmp.eq.s32.totalorder %s14, 1
    %p142 = scmp.ne.s32.totalorder %s137, %s139
    %p143 = scmp.eq.s32.totalorder %s14, 0
    %p144 = por %p142, %p143
    %p145 = scmp.ne.s32.totalorder %s137, %s139
    %p146 = scmp.eq.s32.totalorder %s19, 1
    %p147 = por %p145, %p146
    %p148 = scmp.ne.s32.totalorder %s139, %s140
    %p149 = scmp.eq.s32.totalorder %s19, 0
    %p150 = por %p148, %p149
    %p151 = scmp.ne.s32.totalorder %s139, %s140
    %p152 = scmp.eq.s32.totalorder %s20, 1
    %p153 = por %p151, %p152
    %p155 = scmp.ne.s32.totalorder %s140, %s154
    %p156 = scmp.eq.s32.totalorder %s20, 0
    %p157 = por %p155, %p156
    %s158 = ssub.s32 %s14, %s21
    %p159 = scmp.eq.s32.totalorder %s158, 0
    %s161 = sadd.s32 %s160, 1
    %s162 = scalar_select %p159, %s160, %s161
    %p165 = pneg %p159
    %p166 = scmp.eq.s32.totalorder %s14, 1
    %p167 = por %p165, %p166
    %p168 = scmp.ne.s32.totalorder %s160, %s163
    %p169 = scmp.eq.s32.totalorder %s14, 0
    %p170 = por %p168, %p169
    %p171 = scmp.ne.s32.totalorder %s160, %s163
    %p172 = scmp.eq.s32.totalorder %s19, 1
    %p173 = por %p171, %p172
    %p174 = scmp.ne.s32.totalorder %s163, %s164
    %p175 = scmp.eq.s32.totalorder %s19, 0
    %p176 = por %p174, %p175
    %p177 = scmp.ne.s32.totalorder %s163, %s164
    %p178 = scmp.eq.s32.totalorder %s20, 1
    %p179 = por %p177, %p178
    %p181 = scmp.ne.s32.totalorder %s164, %s180
    %p182 = scmp.eq.s32.totalorder %s20, 0
    %p183 = por %p181, %p182
    %s184 = ssub.s32 %s14, %s21
    %p185 = scmp.eq.s32.totalorder %s184, 0
    %s187 = sadd.s32 %s186, 1
    %s188 = scalar_select %p185, %s186, %s187
    %p191 = pneg %p185
    %p192 = scmp.eq.s32.totalorder %s14, 1
    %p193 = por %p191, %p192
    %p194 = scmp.ne.s32.totalorder %s186, %s189
    %p195 = scmp.eq.s32.totalorder %s14, 0
    %p196 = por %p194, %p195
    %p197 = scmp.ne.s32.totalorder %s186, %s189
    %p198 = scmp.eq.s32.totalorder %s19, 1
    %p199 = por %p197, %p198
    %p200 = scmp.ne.s32.totalorder %s189, %s190
    %p201 = scmp.eq.s32.totalorder %s19, 0
    %p202 = por %p200, %p201
    %p203 = scmp.ne.s32.totalorder %s189, %s190
    %p204 = scmp.eq.s32.totalorder %s20, 1
    %p205 = por %p203, %p204
    %p207 = scmp.ne.s32.totalorder %s190, %s206
    %p208 = scmp.eq.s32.totalorder %s20, 0
    %p209 = por %p207, %p208
    %p210 = scmp.le.s32.totalorder 1, %s14
    %p211 = scmp.lt.s32.totalorder %s14, 3
    %p212 = pnand %p210, %p211
    %p213 = pneg %p212
    // Predicated region
    $region9: #{decoder_layer_pallas.10} parent=5 // pred_check
      _
    $region10: #{decoder_layer_pallas.10} parent=5 // pred_check_branch
      %215 = sbr.rel (%p212) target = $region12
    $region11: #{decoder_layer_pallas.10} parent=5 // pred_region
      %s216 = ssub.s32 %s14, 1
      // Predicated region
      $region13: #{decoder_layer_pallas.10} parent=11 // pred_check
        %p217 = pneg %p87
      $region14: #{decoder_layer_pallas.10} parent=11 // pred_check_branch
        %219 = sbr.rel (%p217) target = $region16
      $region15: #{decoder_layer_pallas.10} parent=11 // pred_region
        _
      $region16: #{decoder_layer_pallas.10} parent=11 // pred_fallthru
        _
      // Predicated region
      $region17: #{decoder_layer_pallas.10} parent=11 // pred_check
        %p220 = pneg %p108
      $region18: #{decoder_layer_pallas.10} parent=11 // pred_check_branch
        %222 = sbr.rel (%p220) target = $region20
      $region19: #{decoder_layer_pallas.10} parent=11 // pred_region
        _
      $region20: #{decoder_layer_pallas.10} parent=11 // pred_fallthru
        _
      // Predicated region
      $region21: #{decoder_layer_pallas.10} parent=11 // pred_check
        %p223 = pneg %p129
      $region22: #{decoder_layer_pallas.10} parent=11 // pred_check_branch
        %225 = sbr.rel (%p223) target = $region24
      $region23: #{decoder_layer_pallas.10} parent=11 // pred_region
        _
      $region24: #{decoder_layer_pallas.10} parent=11 // pred_fallthru
        _
      // Predicated region
      $region25: #{decoder_layer_pallas.10} parent=11 // pred_check
        %p226 = pneg %p150
      $region26: #{decoder_layer_pallas.10} parent=11 // pred_check_branch
        %228 = sbr.rel (%p226) target = $region28
      $region27: #{decoder_layer_pallas.10} parent=11 // pred_region
        _
      $region28: #{decoder_layer_pallas.10} parent=11 // pred_fallthru
        _
    $region12: #{decoder_layer_pallas.10} parent=5 // pred_fallthru
      _
    %p229 = scmp.lt.s32.totalorder %s14, 2
    // Predicated region
    $region29: #{decoder_layer_pallas.10} parent=5 // pred_check
      %p230 = pneg %p229
    $region30: #{decoder_layer_pallas.10} parent=5 // pred_check_branch
      %232 = sbr.rel (%p230) target = $region32
    $region31: #{decoder_layer_pallas.10} parent=5 // pred_region
      // Predicated region
      $region33: #{decoder_layer_pallas.10} parent=31 // pred_check
        %p233 = pneg %p34
      $region34: #{decoder_layer_pallas.10} parent=31 // pred_check_branch
        %235 = sbr.rel (%p233) target = $region36
      $region35: #{decoder_layer_pallas.10} parent=31 // pred_region
        %s236 = smul.u32 2, %s14
        %p237 = scmp.lt.s32.totalorder %s236, 3
        %s238 = scalar_select %p237, %s236, 3
        %s239 = smul.addr %s238, 8
        %s240 = scalar_lea.vmem %s0, %s239
        %s241 = smul.u32 2, %s14
      $region36: #{decoder_layer_pallas.10} parent=31 // pred_fallthru
        _
      // Predicated region
      $region37: #{decoder_layer_pallas.10} parent=31 // pred_check
        %p242 = pneg %p60
      $region38: #{decoder_layer_pallas.10} parent=31 // pred_check_branch
        %244 = sbr.rel (%p242) target = $region40
      $region39: #{decoder_layer_pallas.10} parent=31 // pred_region
        %s245 = smul.u32 2, %s14
        %p246 = scmp.lt.s32.totalorder %s245, 3
        %s247 = scalar_select %p246, %s245, 3
        %s248 = smul.addr %s247, 8
        %s249 = scalar_lea.vmem %s1, %s248
        %s250 = smul.u32 2, %s14
      $region40: #{decoder_layer_pallas.10} parent=31 // pred_fallthru
        _
    $region32: #{decoder_layer_pallas.10} parent=5 // pred_fallthru
      _
    %p251 = scmp.le.s32.totalorder 1, %s14
    %p252 = scmp.lt.s32.totalorder %s14, 3
    %p253 = pnand %p251, %p252
    %p254 = pneg %p253
    // Predicated region
    $region41: #{decoder_layer_pallas.10} parent=5 // pred_check
      _
    $region42: #{decoder_layer_pallas.10} parent=5 // pred_check_branch
      %256 = sbr.rel (%p253) target = $region44
    $region43: #{decoder_layer_pallas.10} parent=5 // pred_region
      %s257 = ssub.s32 %s14, 1
      %s258 = smul.u32 2, %s19
      %p259 = scmp.lt.s32.totalorder %s258, 3
      %s260 = scalar_select %p259, %s258, 3
      %s261 = smul.addr %s260, 8
      %s262 = scalar_lea.vmem %s0, %s261
      %p263 = pneg %p40
      %p264 = pneg %p37
      %s265 = smul.u32 2, %s19
      %p266 = scmp.lt.s32.totalorder %s265, 3
      %s267 = scalar_select %p266, %s265, 3
      %s268 = smul.addr %s267, 8
      %s269 = scalar_lea.vmem %s1, %s268
      %p270 = pneg %p66
      %p271 = pneg %p63
      %p272 = pneg %p87
      %p273 = pneg %p84
      %p274 = pneg %p108
      %p275 = pneg %p105
      %p276 = pneg %p129
      %p277 = pneg %p126
      %p278 = pneg %p150
      %p279 = pneg %p147
      %p280 = pneg %p176
      %p281 = pneg %p173
      %s282 = smul.u32 2, %s19
      %p283 = scmp.lt.s32.totalorder %s282, 3
      %s284 = scalar_select %p283, %s282, 3
      %s285 = smul.addr %s284, 8
      %s286 = scalar_lea.vmem %s6, %s285
      %p287 = pneg %p202
      %p288 = pneg %p199
      %s289 = smul.u32 2, %s19
      %p290 = scmp.lt.s32.totalorder %s289, 3
      %s291 = scalar_select %p290, %s289, 3
      %s292 = smul.addr %s291, 8
      %s293 = scalar_lea.vmem %s7, %s292
      %s294 = smul.u32 2, %s19
      %p295 = scmp.lt.s32.totalorder %s294, 3
      %s296 = scalar_select %p295, %s294, 3
      %s297 = smul.addr %s296, 8
      %s298 = scalar_lea.vmem %s0, %s297
      %s299 = smul.u32 2, %s19
      %s300 = smul.u32 2, %s19
      %p301 = scmp.lt.s32.totalorder %s300, 3
      %s302 = scalar_select %p301, %s300, 3
      %s303 = smul.addr %s302, 8
      %s304 = scalar_lea.vmem %s1, %s303
      %s305 = smul.u32 2, %s19
      %s306 = smul.u32 2, %s19
      %p307 = scmp.lt.s32.totalorder %s306, 3
      %s308 = scalar_select %p307, %s306, 3
      %s309 = smul.addr %s308, 8
      %s310 = scalar_lea.vmem %s6, %s309
      %s311 = smul.u32 2, %s19
      %s312 = smul.u32 2, %s19
      %p313 = scmp.lt.s32.totalorder %s312, 3
      %s314 = scalar_select %p313, %s312, 3
      %s315 = smul.addr %s314, 8
      %s316 = scalar_lea.vmem %s7, %s315
      %s317 = smul.u32 2, %s19
      %v318 = vld [vmem:[%s298] sm:$0xff]
      %v319 = vld [vmem:[%s298 + $0x8] sm:$0xff]
      %v320 = vld [vmem:[%s304] sm:$0xff]
      %v321 = vld [vmem:[%s304 + $0x8] sm:$0xff]
      %v322 = vadd.f32 %v318, %v320
      %v323 = vadd.f32 %v319, %v321
      %v324 = vld [vmem:[%s2] sm:$0xff]
      %v325 = vld [vmem:[%s2 + $0x8] sm:$0xff]
      %v326 = vld [vmem:[%s2 + $0x10] sm:$0xff]
      %v327 = vld [vmem:[%s2 + $0x18] sm:$0xff]
      %v328 = vld [vmem:[%s3] sm:$0x1]
      %v330 = vperm.slane %v328, 0
      %vm332 = vcmask 261120
      %v334 = vsel %vm332, %v322, 0
      %v337 = vsel %vm332, %v323, 0
      %339 = vmatpush.msra.mxu0 0.0
      %340 = vmatpush.msra.mxu0 0.0
      %341 = vmatpush.msra.mxu0 0.0
      %342 = vmatpush.msra.mxu0 0.0
      %343 = vmatpush.msra.mxu0 0.0
      %344 = vmatpush.msra.mxu0 0.0
      %345 = vmatpush.msra.mxu0 0.0
      %346 = vmatpush.msra.mxu0 0.0
      %347 = vmatpush.msra.mxu0 0.0
      %348 = vmatpush.msra.mxu0 0.0
      %349 = vmatpush.msra.mxu0 0.0
      %350 = vmatpush.msra.mxu0 0.0
      %351 = vmatpush.msra.mxu0 %v327
      %352 = vmatpush.msra.mxu0 %v326
      %353 = vmatpush.msra.mxu0 %v325
      %354 = vmatpush.msra.mxu0 %v324
      %355 = vmatmul.f32.gmra.mxu0 %v334
      %v356 = vpop.f32.mrf.mxu0
      %v357 = vadd.f32 %v330, %v356
      %358 = vmatmul.f32.gmra.mxu0 %v337
      %v359 = vpop.f32.mrf.mxu0
      %v360 = vadd.f32 %v330, %v359
      %361 = vdwg.mxu0
      %362 = vst.msk [vmem:[%s310] sm:$0xff] %vm332, %v357
      %363 = vst.msk [vmem:[%s310 + $0x8] sm:$0xff] %vm332, %v360
      %v364 = vld [vmem:[%s4] sm:$0xff]
      %v365 = vld [vmem:[%s4 + $0x8] sm:$0xff]
      %v366 = vld [vmem:[%s4 + $0x10] sm:$0xff]
      %v367 = vld [vmem:[%s4 + $0x18] sm:$0xff]
      %v368 = vld [vmem:[%s5] sm:$0x1]
      %v370 = vperm.slane %v368, 0
      %v373 = vsel %vm332, %v318, 0
      %v376 = vsel %vm332, %v319, 0
      %378 = vmatpush.msra.mxu0 0.0
      %379 = vmatpush.msra.mxu0 0.0
      %380 = vmatpush.msra.mxu0 0.0
      %381 = vmatpush.msra.mxu0 0.0
      %382 = vmatpush.msra.mxu0 0.0
      %383 = vmatpush.msra.mxu0 0.0
      %384 = vmatpush.msra.mxu0 0.0
      %385 = vmatpush.msra.mxu0 0.0
      %386 = vmatpush.msra.mxu0 0.0
      %387 = vmatpush.msra.mxu0 0.0
      %388 = vmatpush.msra.mxu0 0.0
      %389 = vmatpush.msra.mxu0 0.0
      %390 = vmatpush.msra.mxu0 %v367
      %391 = vmatpush.msra.mxu0 %v366
      %392 = vmatpush.msra.mxu0 %v365
      %393 = vmatpush.msra.mxu0 %v364
      %394 = vmatmul.f32.gmra.mxu0 %v373
      %v395 = vpop.f32.mrf.mxu0
      %v396 = vadd.f32 %v370, %v395
      %397 = vmatmul.f32.gmra.mxu0 %v376
      %v398 = vpop.f32.mrf.mxu0
      %v399 = vadd.f32 %v370, %v398
      %400 = vdwg.mxu0
      %401 = vst.msk [vmem:[%s316] sm:$0xff] %vm332, %v396
      %402 = vst.msk [vmem:[%s316 + $0x8] sm:$0xff] %vm332, %v399
      %s403 = smul.u32 2, %s19
      %p404 = scmp.lt.s32.totalorder %s403, 3
      %s405 = scalar_select %p404, %s403, 3
      %s406 = smul.addr %s405, 8
      %s407 = scalar_lea.vmem %s6, %s406
      %s408 = smul.u32 2, %s19
      %p409 = scmp.lt.s32.totalorder %s408, 3
      %s410 = scalar_select %p409, %s408, 3
      %s411 = smul.addr %s410, 8
      %s412 = scalar_lea.vmem %s7, %s411
      // Predicated region
      $region45: #{decoder_layer_pallas.10} parent=43 // pred_check
        %p413 = pneg %p173
      $region46: #{decoder_layer_pallas.10} parent=43 // pred_check_branch
        %415 = sbr.rel (%p413) target = $region48
      $region47: #{decoder_layer_pallas.10} parent=43 // pred_region
        %s416 = smul.u32 2, %s19
      $region48: #{decoder_layer_pallas.10} parent=43 // pred_fallthru
        _
      // Predicated region
      $region49: #{decoder_layer_pallas.10} parent=43 // pred_check
        %p417 = pneg %p199
      $region50: #{decoder_layer_pallas.10} parent=43 // pred_check_branch
        %419 = sbr.rel (%p417) target = $region52
      $region51: #{decoder_layer_pallas.10} parent=43 // pred_region
        %s420 = smul.u32 2, %s19
      $region52: #{decoder_layer_pallas.10} parent=43 // pred_fallthru
        _
    $region44: #{decoder_layer_pallas.10} parent=5 // pred_fallthru
      _
    %p421 = scmp.le.s32.totalorder 2, %s14
    // Predicated region
    $region53: #{decoder_layer_pallas.10} parent=5 // pred_check
      %p422 = pneg %p421
    $region54: #{decoder_layer_pallas.10} parent=5 // pred_check_branch
      %424 = sbr.rel (%p422) target = $region56
    $region55: #{decoder_layer_pallas.10} parent=5 // pred_region
      %s425 = ssub.s32 %s14, 2
      // Predicated region
      $region57: #{decoder_layer_pallas.10} parent=55 // pred_check
        %p426 = pneg %p179
      $region58: #{decoder_layer_pallas.10} parent=55 // pred_check_branch
        %428 = sbr.rel (%p426) target = $region60
      $region59: #{decoder_layer_pallas.10} parent=55 // pred_region
        %s429 = smul.u32 2, %s20
        %p430 = scmp.lt.s32.totalorder %s429, 3
        %s431 = scalar_select %p430, %s429, 3
        %s432 = smul.addr %s431, 8
        %s433 = scalar_lea.vmem %s6, %s432
      $region60: #{decoder_layer_pallas.10} parent=55 // pred_fallthru
        _
      // Predicated region
      $region61: #{decoder_layer_pallas.10} parent=55 // pred_check
        %p434 = pneg %p205
      $region62: #{decoder_layer_pallas.10} parent=55 // pred_check_branch
        %436 = sbr.rel (%p434) target = $region64
      $region63: #{decoder_layer_pallas.10} parent=55 // pred_region
        %s437 = smul.u32 2, %s20
        %p438 = scmp.lt.s32.totalorder %s437, 3
        %s439 = scalar_select %p438, %s437, 3
        %s440 = smul.addr %s439, 8
        %s441 = scalar_lea.vmem %s7, %s440
      $region64: #{decoder_layer_pallas.10} parent=55 // pred_fallthru
        _
    $region56: #{decoder_layer_pallas.10} parent=5 // pred_fallthru
      _
  $region6: #{decoder_layer_pallas.10} parent=0 // loop_footer
    %s18 = sadd.s32 1, %s14
  $region7: #{decoder_layer_pallas.10} parent=0 // loop_footer_branch
    %13 = sbr.rel target = $region3
  $region8: #{decoder_layer_pallas.10} parent=0 // loop_exit
    _

// kernel: decoder_layer_pallas.8
$region0: #{decoder_layer_pallas.8}
  #allocation0 [shape = 'u32[]', space=smem, size = 0x4, offset = 0x4, fixed_abs, tag = 'smem constant byte address 0x4 - core index']
  #allocation1 [shape = 'u32[72,128]{1,0:T(1,128)}', space=vmem, size = 0x9000, scoped, tag = 'internal scratch']
  %s0 = inlined_call_operand.vmem [shape: f32[16,32], index: 0, kind: input, shape index: {}]
  %s1 = inlined_call_operand.vmem [shape: f32[16,32], index: 1, kind: input, shape index: {}]
  %s2 = inlined_call_operand.vmem [shape: f32[16,32], index: 2, kind: input, shape index: {}]
  %s3 = inlined_call_operand.vmem [shape: f32[16,32], index: 3, kind: output, shape index: {}]
  %s4 = sld [smem:[#allocation0]]
  $region45: #{decoder_layer_pallas.8} parent=0
    _
  %s6 = ssub.s32 1, %s4
  %s7 = scalar_select 0, %s6, %s4
  loop: start=0, step=1, limit=4
  $region2: #{decoder_layer_pallas.8} parent=0 // loop_pre_header
    _
  $region3: #{decoder_layer_pallas.8} parent=0 // loop_header
    %s9 = sphi 0, %s13
    %p10 = scmp.ge.s32.totalorder %s9, 4
    %s19 = sphi 0, %s21
    %s22 = sphi 0, %s19
    %s23 = sphi 0, %s22
    %s39 = sphi 0, %s23
    %s45 = sphi 0, %s47
    %s48 = sphi 0, %s45
    %s49 = sphi 0, %s48
    %s65 = sphi 0, %s49
    %s71 = sphi 0, %s73
    %s74 = sphi 0, %s71
    %s75 = sphi 0, %s74
    %s91 = sphi 0, %s75
    %s97 = sphi 0, %s99
    %s100 = sphi 0, %s97
    %s101 = sphi 0, %s100
    %s117 = sphi 0, %s101
  $region4: #{decoder_layer_pallas.8} parent=0 // loop_header_branch
    %12 = sbr.rel (%p10) target = $region8
  $region5: #{decoder_layer_pallas.8} parent=0 // loop_body
    %s14 = ssub.s32 %s9, 1
    %s15 = ssub.s32 %s9, 2
    %s16 = sadd.s32 %s9, 1
    %s17 = ssub.s32 %s9, %s16
    %p18 = scmp.eq.s32.totalorder %s17, 0
    %s20 = sadd.s32 %s19, 1
    %s21 = scalar_select %p18, %s19, %s20
    %p24 = pneg %p18
    %p25 = scmp.eq.s32.totalorder %s9, 1
    %p26 = por %p24, %p25
    %p27 = scmp.ne.s32.totalorder %s19, %s22
    %p28 = scmp.eq.s32.totalorder %s9, 0
    %p29 = por %p27, %p28
    %p30 = scmp.ne.s32.totalorder %s19, %s22
    %p31 = scmp.eq.s32.totalorder %s14, 1
    %p32 = por %p30, %p31
    %p33 = scmp.ne.s32.totalorder %s22, %s23
    %p34 = scmp.eq.s32.totalorder %s14, 0
    %p35 = por %p33, %p34
    %p36 = scmp.ne.s32.totalorder %s22, %s23
    %p37 = scmp.eq.s32.totalorder %s15, 1
    %p38 = por %p36, %p37
    %p40 = scmp.ne.s32.totalorder %s23, %s39
    %p41 = scmp.eq.s32.totalorder %s15, 0
    %p42 = por %p40, %p41
    %s43 = ssub.s32 %s9, %s16
    %p44 = scmp.eq.s32.totalorder %s43, 0
    %s46 = sadd.s32 %s45, 1
    %s47 = scalar_select %p44, %s45, %s46
    %p50 = pneg %p44
    %p51 = scmp.eq.s32.totalorder %s9, 1
    %p52 = por %p50, %p51
    %p53 = scmp.ne.s32.totalorder %s45, %s48
    %p54 = scmp.eq.s32.totalorder %s9, 0
    %p55 = por %p53, %p54
    %p56 = scmp.ne.s32.totalorder %s45, %s48
    %p57 = scmp.eq.s32.totalorder %s14, 1
    %p58 = por %p56, %p57
    %p59 = scmp.ne.s32.totalorder %s48, %s49
    %p60 = scmp.eq.s32.totalorder %s14, 0
    %p61 = por %p59, %p60
    %p62 = scmp.ne.s32.totalorder %s48, %s49
    %p63 = scmp.eq.s32.totalorder %s15, 1
    %p64 = por %p62, %p63
    %p66 = scmp.ne.s32.totalorder %s49, %s65
    %p67 = scmp.eq.s32.totalorder %s15, 0
    %p68 = por %p66, %p67
    %s69 = ssub.s32 %s9, %s16
    %p70 = scmp.eq.s32.totalorder %s69, 0
    %s72 = sadd.s32 %s71, 1
    %s73 = scalar_select %p70, %s71, %s72
    %p76 = pneg %p70
    %p77 = scmp.eq.s32.totalorder %s9, 1
    %p78 = por %p76, %p77
    %p79 = scmp.ne.s32.totalorder %s71, %s74
    %p80 = scmp.eq.s32.totalorder %s9, 0
    %p81 = por %p79, %p80
    %p82 = scmp.ne.s32.totalorder %s71, %s74
    %p83 = scmp.eq.s32.totalorder %s14, 1
    %p84 = por %p82, %p83
    %p85 = scmp.ne.s32.totalorder %s74, %s75
    %p86 = scmp.eq.s32.totalorder %s14, 0
    %p87 = por %p85, %p86
    %p88 = scmp.ne.s32.totalorder %s74, %s75
    %p89 = scmp.eq.s32.totalorder %s15, 1
    %p90 = por %p88, %p89
    %p92 = scmp.ne.s32.totalorder %s75, %s91
    %p93 = scmp.eq.s32.totalorder %s15, 0
    %p94 = por %p92, %p93
    %s95 = ssub.s32 %s9, %s16
    %p96 = scmp.eq.s32.totalorder %s95, 0
    %s98 = sadd.s32 %s97, 1
    %s99 = scalar_select %p96, %s97, %s98
    %p102 = pneg %p96
    %p103 = scmp.eq.s32.totalorder %s9, 1
    %p104 = por %p102, %p103
    %p105 = scmp.ne.s32.totalorder %s97, %s100
    %p106 = scmp.eq.s32.totalorder %s9, 0
    %p107 = por %p105, %p106
    %p108 = scmp.ne.s32.totalorder %s97, %s100
    %p109 = scmp.eq.s32.totalorder %s14, 1
    %p110 = por %p108, %p109
    %p111 = scmp.ne.s32.totalorder %s100, %s101
    %p112 = scmp.eq.s32.totalorder %s14, 0
    %p113 = por %p111, %p112
    %p114 = scmp.ne.s32.totalorder %s100, %s101
    %p115 = scmp.eq.s32.totalorder %s15, 1
    %p116 = por %p114, %p115
    %p118 = scmp.ne.s32.totalorder %s101, %s117
    %p119 = scmp.eq.s32.totalorder %s15, 0
    %p120 = por %p118, %p119
    %p121 = scmp.le.s32.totalorder 1, %s9
    %p122 = scmp.lt.s32.totalorder %s9, 3
    %p123 = pnand %p121, %p122
    %p124 = pneg %p123
    // Predicated region
    $region9: #{decoder_layer_pallas.8} parent=5 // pred_check
      _
    $region10: #{decoder_layer_pallas.8} parent=5 // pred_check_branch
      %126 = sbr.rel (%p123) target = $region12
    $region11: #{decoder_layer_pallas.8} parent=5 // pred_region
      %s127 = ssub.s32 %s9, 1
    $region12: #{decoder_layer_pallas.8} parent=5 // pred_fallthru
      _
    %p128 = scmp.lt.s32.totalorder %s9, 2
    // Predicated region
    $region13: #{decoder_layer_pallas.8} parent=5 // pred_check
      %p129 = pneg %p128
    $region14: #{decoder_layer_pallas.8} parent=5 // pred_check_branch
      %131 = sbr.rel (%p129) target = $region16
    $region15: #{decoder_layer_pallas.8} parent=5 // pred_region
      // Predicated region
      $region17: #{decoder_layer_pallas.8} parent=15 // pred_check
        %p132 = pneg %p29
      $region18: #{decoder_layer_pallas.8} parent=15 // pred_check_branch
        %134 = sbr.rel (%p132) target = $region20
      $region19: #{decoder_layer_pallas.8} parent=15 // pred_region
        %p135 = scmp.lt.s32.totalorder %s9, 1
        %s136 = scalar_select %p135, %s9, 1
        %s137 = smul.addr %s136, 8
        %s138 = scalar_lea.vmem %s0, %s137
      $region20: #{decoder_layer_pallas.8} parent=15 // pred_fallthru
        _
      // Predicated region
      $region21: #{decoder_layer_pallas.8} parent=15 // pred_check
        %p139 = pneg %p55
      $region22: #{decoder_layer_pallas.8} parent=15 // pred_check_branch
        %141 = sbr.rel (%p139) target = $region24
      $region23: #{decoder_layer_pallas.8} parent=15 // pred_region
        %p142 = scmp.lt.s32.totalorder %s9, 1
        %s143 = scalar_select %p142, %s9, 1
        %s144 = smul.addr %s143, 8
        %s145 = scalar_lea.vmem %s1, %s144
      $region24: #{decoder_layer_pallas.8} parent=15 // pred_fallthru
        _
      // Predicated region
      $region25: #{decoder_layer_pallas.8} parent=15 // pred_check
        %p146 = pneg %p81
      $region26: #{decoder_layer_pallas.8} parent=15 // pred_check_branch
        %148 = sbr.rel (%p146) target = $region28
      $region27: #{decoder_layer_pallas.8} parent=15 // pred_region
        %p149 = scmp.lt.s32.totalorder %s9, 1
        %s150 = scalar_select %p149, %s9, 1
        %s151 = smul.addr %s150, 8
        %s152 = scalar_lea.vmem %s2, %s151
      $region28: #{decoder_layer_pallas.8} parent=15 // pred_fallthru
        _
    $region16: #{decoder_layer_pallas.8} parent=5 // pred_fallthru
      _
    %p153 = scmp.le.s32.totalorder 1, %s9
    %p154 = scmp.lt.s32.totalorder %s9, 3
    %p155 = pnand %p153, %p154
    %p156 = pneg %p155
    // Predicated region
    $region29: #{decoder_layer_pallas.8} parent=5 // pred_check
      _
    $region30: #{decoder_layer_pallas.8} parent=5 // pred_check_branch
      %158 = sbr.rel (%p155) target = $region32
    $region31: #{decoder_layer_pallas.8} parent=5 // pred_region
      %s159 = ssub.s32 %s9, 1
      %p160 = scmp.lt.s32.totalorder %s14, 1
      %s161 = scalar_select %p160, %s14, 1
      %s162 = smul.addr %s161, 8
      %s163 = scalar_lea.vmem %s0, %s162
      %p164 = pneg %p35
      %p165 = pneg %p32
      %p166 = scmp.lt.s32.totalorder %s14, 1
      %s167 = scalar_select %p166, %s14, 1
      %s168 = smul.addr %s167, 8
      %s169 = scalar_lea.vmem %s1, %s168
      %p170 = pneg %p61
      %p171 = pneg %p58
      %p172 = scmp.lt.s32.totalorder %s14, 1
      %s173 = scalar_select %p172, %s14, 1
      %s174 = smul.addr %s173, 8
      %s175 = scalar_lea.vmem %s2, %s174
      %p176 = pneg %p87
      %p177 = pneg %p84
      %p178 = pneg %p113
      %p179 = pneg %p110
      %p180 = scmp.lt.s32.totalorder %s14, 1
      %s181 = scalar_select %p180, %s14, 1
      %s182 = smul.addr %s181, 8
      %s183 = scalar_lea.vmem %s3, %s182
      %p184 = scmp.lt.s32.totalorder %s14, 1
      %s185 = scalar_select %p184, %s14, 1
      %s186 = smul.addr %s185, 8
      %s187 = scalar_lea.vmem %s0, %s186
      %p188 = scmp.lt.s32.totalorder %s14, 1
      %s189 = scalar_select %p188, %s14, 1
      %s190 = smul.addr %s189, 8
      %s191 = scalar_lea.vmem %s1, %s190
      %p192 = scmp.lt.s32.totalorder %s14, 1
      %s193 = scalar_select %p192, %s14, 1
      %s194 = smul.addr %s193, 8
      %s195 = scalar_lea.vmem %s2, %s194
      %p196 = scmp.lt.s32.totalorder %s14, 1
      %s197 = scalar_select %p196, %s14, 1
      %s198 = smul.addr %s197, 8
      %s199 = scalar_lea.vmem %s3, %s198
      %v200 = vld [vmem:[%s187] sm:$0xff]
      %v201 = vld [vmem:[%s191] sm:$0xff]
      %v202 = vld [vmem:[%s195] sm:$0xff]
      %vm203 = vcmask 64512
      %v205 = vsel %vm203, %v200, 0
      %v208 = vsel %vm203, %v201, 0
      %210 = vmatpush.xpose.msra.mxu0 0.0
      %211 = vmatpush.xpose.msra.mxu0 0.0
      %212 = vmatpush.xpose.msra.mxu0 0.0
      %213 = vmatpush.xpose.msra.mxu0 0.0
      %214 = vmatpush.xpose.msra.mxu0 0.0
      %215 = vmatpush.xpose.msra.mxu0 0.0
      %216 = vmatpush.xpose.msra.mxu0 0.0
      %217 = vmatpush.xpose.msra.mxu0 0.0
      %218 = vmatpush.xpose.msra.mxu0 0.0
      %219 = vmatpush.xpose.msra.mxu0 0.0
      %220 = vmatpush.xpose.msra.mxu0 0.0
      %221 = vmatpush.xpose.msra.mxu0 0.0
      %222 = vmatpush.xpose.msra.mxu0 0.0
      %223 = vmatpush.xpose.msra.mxu0 0.0
      %224 = vmatpush.xpose.msra.mxu0 0.0
      %225 = vmatpush.xpose.msra.mxu0 %v208
      %226 = vmatmul.f32.gmra.mxu0 %v205
      %v227 = vpop.f32.mrf.mxu0
      %v228 = vadd.f32 0.0, %v227
      %229 = vdwg.mxu0
      %v230 = vsel %vm203, %v228, -inf
      %231 = vmax.xlane.f32.xlu0 %v230
      %v232 = vpop.xlane.xlu0 %231
      %v233 = vsub.f32 %v228, %v232
      %v234 = vmul.f32 %v233, 1.442695
      %v235 = vpow.pop %v234
      %v236 = vsel %vm203, %v235, 0.0
      %237 = vadd.xlane.f32.xlu0 %v236
      %v238 = vpop.xlane.xlu0 %237
      %v240 = vsel %vm203, %v235, 0
      %242 = vmatpush.msra.mxu0 0.0
      %243 = vmatpush.msra.mxu0 0.0
      %244 = vmatpush.msra.mxu0 0.0
      %245 = vmatpush.msra.mxu0 0.0
      %246 = vmatpush.msra.mxu0 0.0
      %247 = vmatpush.msra.mxu0 0.0
      %248 = vmatpush.msra.mxu0 0.0
      %249 = vmatpush.msra.mxu0 0.0
      %250 = vmatpush.msra.mxu0 0.0
      %251 = vmatpush.msra.mxu0 0.0
      %252 = vmatpush.msra.mxu0 0.0
      %253 = vmatpush.msra.mxu0 0.0
      %254 = vmatpush.msra.mxu0 0.0
      %255 = vmatpush.msra.mxu0 0.0
      %256 = vmatpush.msra.mxu0 0.0
      %257 = vmatpush.msra.mxu0 %v202
      %258 = vmatmul.f32.gmra.mxu0 %v240
      %v259 = vpop.f32.mrf.mxu0
      %v260 = vadd.f32 0.0, %v259
      %261 = vdwg.mxu0
      %v262 = vrcp.pop %v238
      %v263 = vmul.f32 %v260, %v262
      %264 = vrot.lane.b32.xlu0 %v200, 120
      %v265 = vpop.permute.xlu0 %264
      %266 = vrot.lane.b32.xlu0 %v201, 120
      %v267 = vpop.permute.xlu0 %266
      %v268 = vsel %vm203, %v265, 0
      %v270 = vsel %vm203, %v267, 0
      %272 = vmatpush.xpose.msra.mxu0 0.0
      %273 = vmatpush.xpose.msra.mxu0 0.0
      %274 = vmatpush.xpose.msra.mxu0 0.0
      %275 = vmatpush.xpose.msra.mxu0 0.0
      %276 = vmatpush.xpose.msra.mxu0 0.0
      %277 = vmatpush.xpose.msra.mxu0 0.0
      %278 = vmatpush.xpose.msra.mxu0 0.0
      %279 = vmatpush.xpose.msra.mxu0 0.0
      %280 = vmatpush.xpose.msra.mxu0 0.0
      %281 = vmatpush.xpose.msra.mxu0 0.0
      %282 = vmatpush.xpose.msra.mxu0 0.0
      %283 = vmatpush.xpose.msra.mxu0 0.0
      %284 = vmatpush.xpose.msra.mxu0 0.0
      %285 = vmatpush.xpose.msra.mxu0 0.0
      %286 = vmatpush.xpose.msra.mxu0 0.0
      %287 = vmatpush.xpose.msra.mxu0 %v270
      %288 = vmatmul.f32.gmra.mxu0 %v268
      %v289 = vpop.f32.mrf.mxu0
      %v290 = vadd.f32 0.0, %v289
      %291 = vdwg.mxu0
      %v292 = vsel %vm203, %v290, -inf
      %293 = vmax.xlane.f32.xlu0 %v292
      %v294 = vpop.xlane.xlu0 %293
      %v295 = vsub.f32 %v290, %v294
      %v296 = vmul.f32 %v295, 1.442695
      %v297 = vpow.pop %v296
      %v298 = vsel %vm203, %v297, 0.0
      %299 = vadd.xlane.f32.xlu0 %v298
      %v300 = vpop.xlane.xlu0 %299
      %302 = vrot.lane.b32.xlu0 %v202, 120
      %v303 = vpop.permute.xlu0 %302
      %v306 = vsel %vm203, %v297, 0
      %308 = vmatpush.msra.mxu0 0.0
      %309 = vmatpush.msra.mxu0 0.0
      %310 = vmatpush.msra.mxu0 0.0
      %311 = vmatpush.msra.mxu0 0.0
      %312 = vmatpush.msra.mxu0 0.0
      %313 = vmatpush.msra.mxu0 0.0
      %314 = vmatpush.msra.mxu0 0.0
      %315 = vmatpush.msra.mxu0 0.0
      %316 = vmatpush.msra.mxu0 0.0
      %317 = vmatpush.msra.mxu0 0.0
      %318 = vmatpush.msra.mxu0 0.0
      %319 = vmatpush.msra.mxu0 0.0
      %320 = vmatpush.msra.mxu0 0.0
      %321 = vmatpush.msra.mxu0 0.0
      %322 = vmatpush.msra.mxu0 0.0
      %323 = vmatpush.msra.mxu0 %v303
      %324 = vmatmul.f32.gmra.mxu0 %v306
      %v325 = vpop.f32.mrf.mxu0
      %v326 = vadd.f32 0.0, %v325
      %327 = vdwg.mxu0
      %v328 = vrcp.pop %v300
      %v329 = vmul.f32 %v326, %v328
      %330 = vrot.lane.b32.xlu0 %v200, 112
      %v331 = vpop.permute.xlu0 %330
      %332 = vrot.lane.b32.xlu0 %v201, 112
      %v333 = vpop.permute.xlu0 %332
      %v334 = vsel %vm203, %v331, 0
      %v336 = vsel %vm203, %v333, 0
      %338 = vmatpush.xpose.msra.mxu0 0.0
      %339 = vmatpush.xpose.msra.mxu0 0.0
      %340 = vmatpush.xpose.msra.mxu0 0.0
      %341 = vmatpush.xpose.msra.mxu0 0.0
      %342 = vmatpush.xpose.msra.mxu0 0.0
      %343 = vmatpush.xpose.msra.mxu0 0.0
      %344 = vmatpush.xpose.msra.mxu0 0.0
      %345 = vmatpush.xpose.msra.mxu0 0.0
      %346 = vmatpush.xpose.msra.mxu0 0.0
      %347 = vmatpush.xpose.msra.mxu0 0.0
      %348 = vmatpush.xpose.msra.mxu0 0.0
      %349 = vmatpush.xpose.msra.mxu0 0.0
      %350 = vmatpush.xpose.msra.mxu0 0.0
      %351 = vmatpush.xpose.msra.mxu0 0.0
      %352 = vmatpush.xpose.msra.mxu0 0.0
      %353 = vmatpush.xpose.msra.mxu0 %v336
      %354 = vmatmul.f32.gmra.mxu0 %v334
      %v355 = vpop.f32.mrf.mxu0
      %v356 = vadd.f32 0.0, %v355
      %357 = vdwg.mxu0
      %v358 = vsel %vm203, %v356, -inf
      %359 = vmax.xlane.f32.xlu0 %v358
      %v360 = vpop.xlane.xlu0 %359
      %v361 = vsub.f32 %v356, %v360
      %v362 = vmul.f32 %v361, 1.442695
      %v363 = vpow.pop %v362
      %v364 = vsel %vm203, %v363, 0.0
      %365 = vadd.xlane.f32.xlu0 %v364
      %v366 = vpop.xlane.xlu0 %365
      %367 = vrot.lane.b32.xlu0 %v202, 112
      %v368 = vpop.permute.xlu0 %367
      %v371 = vsel %vm203, %v363, 0
      %373 = vmatpush.msra.mxu0 0.0
      %374 = vmatpush.msra.mxu0 0.0
      %375 = vmatpush.msra.mxu0 0.0
      %376 = vmatpush.msra.mxu0 0.0
      %377 = vmatpush.msra.mxu0 0.0
      %378 = vmatpush.msra.mxu0 0.0
      %379 = vmatpush.msra.mxu0 0.0
      %380 = vmatpush.msra.mxu0 0.0
      %381 = vmatpush.msra.mxu0 0.0
      %382 = vmatpush.msra.mxu0 0.0
      %383 = vmatpush.msra.mxu0 0.0
      %384 = vmatpush.msra.mxu0 0.0
      %385 = vmatpush.msra.mxu0 0.0
      %386 = vmatpush.msra.mxu0 0.0
      %387 = vmatpush.msra.mxu0 0.0
      %388 = vmatpush.msra.mxu0 %v368
      %389 = vmatmul.f32.gmra.mxu0 %v371
      %v390 = vpop.f32.mrf.mxu0
      %v391 = vadd.f32 0.0, %v390
      %392 = vdwg.mxu0
      %v393 = vrcp.pop %v366
      %v394 = vmul.f32 %v391, %v393
      %395 = vrot.lane.b32.xlu0 %v200, 104
      %v396 = vpop.permute.xlu0 %395
      %397 = vrot.lane.b32.xlu0 %v201, 104
      %v398 = vpop.permute.xlu0 %397
      %v399 = vsel %vm203, %v396, 0
      %v401 = vsel %vm203, %v398, 0
      %403 = vmatpush.xpose.msra.mxu0 0.0
      %404 = vmatpush.xpose.msra.mxu0 0.0
      %405 = vmatpush.xpose.msra.mxu0 0.0
      %406 = vmatpush.xpose.msra.mxu0 0.0
      %407 = vmatpush.xpose.msra.mxu0 0.0
      %408 = vmatpush.xpose.msra.mxu0 0.0
      %409 = vmatpush.xpose.msra.mxu0 0.0
      %410 = vmatpush.xpose.msra.mxu0 0.0
      %411 = vmatpush.xpose.msra.mxu0 0.0
      %412 = vmatpush.xpose.msra.mxu0 0.0
      %413 = vmatpush.xpose.msra.mxu0 0.0
      %414 = vmatpush.xpose.msra.mxu0 0.0
      %415 = vmatpush.xpose.msra.mxu0 0.0
      %416 = vmatpush.xpose.msra.mxu0 0.0
      %417 = vmatpush.xpose.msra.mxu0 0.0
      %418 = vmatpush.xpose.msra.mxu0 %v401
      %419 = vmatmul.f32.gmra.mxu0 %v399
      %v420 = vpop.f32.mrf.mxu0
      %v421 = vadd.f32 0.0, %v420
      %422 = vdwg.mxu0
      %v423 = vsel %vm203, %v421, -inf
      %424 = vmax.xlane.f32.xlu0 %v423
      %v425 = vpop.xlane.xlu0 %424
      %v426 = vsub.f32 %v421, %v425
      %v427 = vmul.f32 %v426, 1.442695
      %v428 = vpow.pop %v427
      %v429 = vsel %vm203, %v428, 0.0
      %430 = vadd.xlane.f32.xlu0 %v429
      %v431 = vpop.xlane.xlu0 %430
      %432 = vrot.lane.b32.xlu0 %v202, 104
      %v433 = vpop.permute.xlu0 %432
      %v436 = vsel %vm203, %v428, 0
      %438 = vmatpush.msra.mxu0 0.0
      %439 = vmatpush.msra.mxu0 0.0
      %440 = vmatpush.msra.mxu0 0.0
      %441 = vmatpush.msra.mxu0 0.0
      %442 = vmatpush.msra.mxu0 0.0
      %443 = vmatpush.msra.mxu0 0.0
      %444 = vmatpush.msra.mxu0 0.0
      %445 = vmatpush.msra.mxu0 0.0
      %446 = vmatpush.msra.mxu0 0.0
      %447 = vmatpush.msra.mxu0 0.0
      %448 = vmatpush.msra.mxu0 0.0
      %449 = vmatpush.msra.mxu0 0.0
      %450 = vmatpush.msra.mxu0 0.0
      %451 = vmatpush.msra.mxu0 0.0
      %452 = vmatpush.msra.mxu0 0.0
      %453 = vmatpush.msra.mxu0 %v433
      %454 = vmatmul.f32.gmra.mxu0 %v436
      %v455 = vpop.f32.mrf.mxu0
      %v456 = vadd.f32 0.0, %v455
      %457 = vdwg.mxu0
      %v458 = vrcp.pop %v431
      %v459 = vmul.f32 %v456, %v458
      %461 = vrot.lane.b32.xlu0 %v329, 8
      %v462 = vpop.permute.xlu0 %461
      %465 = vrot.lane.b32.xlu0 %v394, 16
      %v466 = vpop.permute.xlu0 %465
      %469 = vrot.lane.b32.xlu0 %v459, 24
      %v470 = vpop.permute.xlu0 %469
      %v472 = vsel %vm203, %v263, %v462
      %vm473 = vcmask 130048
      %v474 = vsel %vm473, %v472, %v466
      %vm475 = vcmask 195584
      %v476 = vsel %vm475, %v474, %v470
      %vm477 = vcmask 261120
      %478 = vst.msk [vmem:[%s199] sm:$0xff] %vm477, %v476
      %p479 = scmp.lt.s32.totalorder %s14, 1
      %s480 = scalar_select %p479, %s14, 1
      %s481 = smul.addr %s480, 8
      %s482 = scalar_lea.vmem %s3, %s481
      // Predicated region
      $region33: #{decoder_layer_pallas.8} parent=31 // pred_check
        %p483 = pneg %p110
      $region34: #{decoder_layer_pallas.8} parent=31 // pred_check_branch
        %485 = sbr.rel (%p483) target = $region36
      $region35: #{decoder_layer_pallas.8} parent=31 // pred_region
        _
      $region36: #{decoder_layer_pallas.8} parent=31 // pred_fallthru
        _
    $region32: #{decoder_layer_pallas.8} parent=5 // pred_fallthru
      _
    %p486 = scmp.le.s32.totalorder 2, %s9
    // Predicated region
    $region37: #{decoder_layer_pallas.8} parent=5 // pred_check
      %p487 = pneg %p486
    $region38: #{decoder_layer_pallas.8} parent=5 // pred_check_branch
      %489 = sbr.rel (%p487) target = $region40
    $region39: #{decoder_layer_pallas.8} parent=5 // pred_region
      %s490 = ssub.s32 %s9, 2
      // Predicated region
      $region41: #{decoder_layer_pallas.8} parent=39 // pred_check
        %p491 = pneg %p116
      $region42: #{decoder_layer_pallas.8} parent=39 // pred_check_branch
        %493 = sbr.rel (%p491) target = $region44
      $region43: #{decoder_layer_pallas.8} parent=39 // pred_region
        %p494 = scmp.lt.s32.totalorder %s15, 1
        %s495 = scalar_select %p494, %s15, 1
        %s496 = smul.addr %s495, 8
        %s497 = scalar_lea.vmem %s3, %s496
      $region44: #{decoder_layer_pallas.8} parent=39 // pred_fallthru
        _
    $region40: #{decoder_layer_pallas.8} parent=5 // pred_fallthru
      _
  $region6: #{decoder_layer_pallas.8} parent=0 // loop_footer
    %s13 = sadd.s32 1, %s9
  $region7: #{decoder_layer_pallas.8} parent=0 // loop_footer_branch
    %8 = sbr.rel target = $region3
  $region8: #{decoder_layer_pallas.8} parent=0 // loop_exit
    _

// kernel: decoder_layer_pallas.7
$region0: #{decoder_layer_pallas.7}
  #allocation0 [shape = 'u32[]', space=smem, size = 0x4, offset = 0x4, fixed_abs, tag = 'smem constant byte address 0x4 - core index']
  #allocation1 [shape = 'u32[72,128]{1,0:T(1,128)}', space=vmem, size = 0x9000, scoped, tag = 'internal scratch']
  %s0 = inlined_call_operand.vmem [shape: f32[16,32], index: 0, kind: input, shape index: {}]
  %s1 = inlined_call_operand.vmem [shape: f32[16,32], index: 1, kind: input, shape index: {}]
  %s2 = inlined_call_operand.vmem [shape: f32[32,64], index: 2, kind: input, shape index: {}]
  %s3 = inlined_call_operand.vmem [shape: f32[1,64], index: 3, kind: input, shape index: {}]
  %s4 = inlined_call_operand.hbm [shape: f32[32,32], index: 4, kind: input, shape index: {}]
  %s5 = inlined_call_operand.vmem [shape: f32[1,32], index: 5, kind: input, shape index: {}]
  %s6 = inlined_call_operand.vmem [shape: f32[16,32], index: 6, kind: output, shape index: {0}]
  %s7 = inlined_call_operand.vmem [shape: f32[16,32], index: 7, kind: output, shape index: {1}]
  %s8 = inlined_call_operand.vmem [shape: f32[16,32], index: 8, kind: output, shape index: {2}]
  %9 = xla_tuple %s6, %s7, %s8
  %s10 = sld [smem:[#allocation0]]
  $region77: #{decoder_layer_pallas.7} parent=0
    _
  %s12 = ssub.s32 1, %s10
  %s13 = scalar_select 0, %s12, %s10
  $region1: #{decoder_layer_pallas.7} parent=0
    #allocation2 [shape = 'u8[16384]{0}', space=vmem, size = 0x4000, scoped, tag = 'input window, operand 4, single buffered']
    #allocation3 [shape = 's32[2]{0}', space=sflag, size = 0x8, scoped, tag = 'scoped memory for decoder_layer_pallas.7']
    %14 = vsyncpa [#allocation3], 0
    loop: start=0, step=1, limit=4
    $region2: #{decoder_layer_pallas.7} parent=1 // loop_pre_header
      _
    $region3: #{decoder_layer_pallas.7} parent=1 // loop_header
      %s16 = sphi 0, %s20
      %p17 = scmp.ge.s32.totalorder %s16, 4
      %s26 = sphi 0, %s28
      %s29 = sphi 0, %s26
      %s30 = sphi 0, %s29
      %s46 = sphi 0, %s30
      %s52 = sphi 0, %s54
      %s55 = sphi 0, %s52
      %s56 = sphi 0, %s55
      %s72 = sphi 0, %s56
      %s76 = sphi 0, %s76
      %s78 = sphi 0, %s76
      %s79 = sphi 0, %s78
      %s93 = sphi 0, %s79
      %s97 = sphi 0, %s97
      %s99 = sphi 0, %s97
      %s100 = sphi 0, %s99
      %s114 = sphi 0, %s100
      %s118 = sphi 0, %s118
      %s120 = sphi 0, %s118
      %s121 = sphi 0, %s120
      %s135 = sphi 0, %s121
      %s139 = sphi 0, %s139
      %s141 = sphi 0, %s139
      %s142 = sphi 0, %s141
      %s156 = sphi 0, %s142
      %s162 = sphi 0, %s164
      %s165 = sphi 0, %s162
      %s166 = sphi 0, %s165
      %s182 = sphi 0, %s166
      %s188 = sphi 0, %s190
      %s191 = sphi 0, %s188
      %s192 = sphi 0, %s191
      %s208 = sphi 0, %s192
      %s214 = sphi 0, %s216
      %s217 = sphi 0, %s214
      %s218 = sphi 0, %s217
      %s234 = sphi 0, %s218
    $region4: #{decoder_layer_pallas.7} parent=1 // loop_header_branch
      %19 = sbr.rel (%p17) target = $region8
    $region5: #{decoder_layer_pallas.7} parent=1 // loop_body
      %s21 = ssub.s32 %s16, 1
      %s22 = ssub.s32 %s16, 2
      %s23 = sadd.s32 %s16, 1
      %s24 = ssub.s32 %s16, %s23
      %p25 = scmp.eq.s32.totalorder %s24, 0
      %s27 = sadd.s32 %s26, 1
      %s28 = scalar_select %p25, %s26, %s27
      %p31 = pneg %p25
      %p32 = scmp.eq.s32.totalorder %s16, 1
      %p33 = por %p31, %p32
      %p34 = scmp.ne.s32.totalorder %s26, %s29
      %p35 = scmp.eq.s32.totalorder %s16, 0
      %p36 = por %p34, %p35
      %p37 = scmp.ne.s32.totalorder %s26, %s29
      %p38 = scmp.eq.s32.totalorder %s21, 1
      %p39 = por %p37, %p38
      %p40 = scmp.ne.s32.totalorder %s29, %s30
      %p41 = scmp.eq.s32.totalorder %s21, 0
      %p42 = por %p40, %p41
      %p43 = scmp.ne.s32.totalorder %s29, %s30
      %p44 = scmp.eq.s32.totalorder %s22, 1
      %p45 = por %p43, %p44
      %p47 = scmp.ne.s32.totalorder %s30, %s46
      %p48 = scmp.eq.s32.totalorder %s22, 0
      %p49 = por %p47, %p48
      %s50 = ssub.s32 %s16, %s23
      %p51 = scmp.eq.s32.totalorder %s50, 0
      %s53 = sadd.s32 %s52, 1
      %s54 = scalar_select %p51, %s52, %s53
      %p57 = pneg %p51
      %p58 = scmp.eq.s32.totalorder %s16, 1
      %p59 = por %p57, %p58
      %p60 = scmp.ne.s32.totalorder %s52, %s55
      %p61 = scmp.eq.s32.totalorder %s16, 0
      %p62 = por %p60, %p61
      %p63 = scmp.ne.s32.totalorder %s52, %s55
      %p64 = scmp.eq.s32.totalorder %s21, 1
      %p65 = por %p63, %p64
      %p66 = scmp.ne.s32.totalorder %s55, %s56
      %p67 = scmp.eq.s32.totalorder %s21, 0
      %p68 = por %p66, %p67
      %p69 = scmp.ne.s32.totalorder %s55, %s56
      %p70 = scmp.eq.s32.totalorder %s22, 1
      %p71 = por %p69, %p70
      %p73 = scmp.ne.s32.totalorder %s56, %s72
      %p74 = scmp.eq.s32.totalorder %s22, 0
      %p75 = por %p73, %p74
      %s77 = sadd.s32 %s76, 1
      %p80 = scmp.eq.s32.totalorder %s16, 1
      %p81 = scmp.ne.s32.totalorder %s76, %s78
      %p82 = scmp.eq.s32.totalorder %s16, 0
      %p83 = por %p81, %p82
      %p84 = scmp.ne.s32.totalorder %s76, %s78
      %p85 = scmp.eq.s32.totalorder %s21, 1
      %p86 = por %p84, %p85
      %p87 = scmp.ne.s32.totalorder %s78, %s79
      %p88 = scmp.eq.s32.totalorder %s21, 0
      %p89 = por %p87, %p88
      %p90 = scmp.ne.s32.totalorder %s78, %s79
      %p91 = scmp.eq.s32.totalorder %s22, 1
      %p92 = por %p90, %p91
      %p94 = scmp.ne.s32.totalorder %s79, %s93
      %p95 = scmp.eq.s32.totalorder %s22, 0
      %p96 = por %p94, %p95
      %s98 = sadd.s32 %s97, 1
      %p101 = scmp.eq.s32.totalorder %s16, 1
      %p102 = scmp.ne.s32.totalorder %s97, %s99
      %p103 = scmp.eq.s32.totalorder %s16, 0
      %p104 = por %p102, %p103
      %p105 = scmp.ne.s32.totalorder %s97, %s99
      %p106 = scmp.eq.s32.totalorder %s21, 1
      %p107 = por %p105, %p106
      %p108 = scmp.ne.s32.totalorder %s99, %s100
      %p109 = scmp.eq.s32.totalorder %s21, 0
      %p110 = por %p108, %p109
      %p111 = scmp.ne.s32.totalorder %s99, %s100
      %p112 = scmp.eq.s32.totalorder %s22, 1
      %p113 = por %p111, %p112
      %p115 = scmp.ne.s32.totalorder %s100, %s114
      %p116 = scmp.eq.s32.totalorder %s22, 0
      %p117 = por %p115, %p116
      %s119 = sadd.s32 %s118, 1
      %p122 = scmp.eq.s32.totalorder %s16, 1
      %p123 = scmp.ne.s32.totalorder %s118, %s120
      %p124 = scmp.eq.s32.totalorder %s16, 0
      %p125 = por %p123, %p124
      %p126 = scmp.ne.s32.totalorder %s118, %s120
      %p127 = scmp.eq.s32.totalorder %s21, 1
      %p128 = por %p126, %p127
      %p129 = scmp.ne.s32.totalorder %s120, %s121
      %p130 = scmp.eq.s32.totalorder %s21, 0
      %p131 = por %p129, %p130
      %p132 = scmp.ne.s32.totalorder %s120, %s121
      %p133 = scmp.eq.s32.totalorder %s22, 1
      %p134 = por %p132, %p133
      %p136 = scmp.ne.s32.totalorder %s121, %s135
      %p137 = scmp.eq.s32.totalorder %s22, 0
      %p138 = por %p136, %p137
      %s140 = sadd.s32 %s139, 1
      %p143 = scmp.eq.s32.totalorder %s16, 1
      %p144 = scmp.ne.s32.totalorder %s139, %s141
      %p145 = scmp.eq.s32.totalorder %s16, 0
      %p146 = por %p144, %p145
      %p147 = scmp.ne.s32.totalorder %s139, %s141
      %p148 = scmp.eq.s32.totalorder %s21, 1
      %p149 = por %p147, %p148
      %p150 = scmp.ne.s32.totalorder %s141, %s142
      %p151 = scmp.eq.s32.totalorder %s21, 0
      %p152 = por %p150, %p151
      %p153 = scmp.ne.s32.totalorder %s141, %s142
      %p154 = scmp.eq.s32.totalorder %s22, 1
      %p155 = por %p153, %p154
      %p157 = scmp.ne.s32.totalorder %s142, %s156
      %p158 = scmp.eq.s32.totalorder %s22, 0
      %p159 = por %p157, %p158
      %s160 = ssub.s32 %s16, %s23
      %p161 = scmp.eq.s32.totalorder %s160, 0
      %s163 = sadd.s32 %s162, 1
      %s164 = scalar_select %p161, %s162, %s163
      %p167 = pneg %p161
      %p168 = scmp.eq.s32.totalorder %s16, 1
      %p169 = por %p167, %p168
      %p170 = scmp.ne.s32.totalorder %s162, %s165
      %p171 = scmp.eq.s32.totalorder %s16, 0
      %p172 = por %p170, %p171
      %p173 = scmp.ne.s32.totalorder %s162, %s165
      %p174 = scmp.eq.s32.totalorder %s21, 1
      %p175 = por %p173, %p174
      %p176 = scmp.ne.s32.totalorder %s165, %s166
      %p177 = scmp.eq.s32.totalorder %s21, 0
      %p178 = por %p176, %p177
      %p179 = scmp.ne.s32.totalorder %s165, %s166
      %p180 = scmp.eq.s32.totalorder %s22, 1
      %p181 = por %p179, %p180
      %p183 = scmp.ne.s32.totalorder %s166, %s182
      %p184 = scmp.eq.s32.totalorder %s22, 0
      %p185 = por %p183, %p184
      %s186 = ssub.s32 %s16, %s23
      %p187 = scmp.eq.s32.totalorder %s186, 0
      %s189 = sadd.s32 %s188, 1
      %s190 = scalar_select %p187, %s188, %s189
      %p193 = pneg %p187
      %p194 = scmp.eq.s32.totalorder %s16, 1
      %p195 = por %p193, %p194
      %p196 = scmp.ne.s32.totalorder %s188, %s191
      %p197 = scmp.eq.s32.totalorder %s16, 0
      %p198 = por %p196, %p197
      %p199 = scmp.ne.s32.totalorder %s188, %s191
      %p200 = scmp.eq.s32.totalorder %s21, 1
      %p201 = por %p199, %p200
      %p202 = scmp.ne.s32.totalorder %s191, %s192
      %p203 = scmp.eq.s32.totalorder %s21, 0
      %p204 = por %p202, %p203
      %p205 = scmp.ne.s32.totalorder %s191, %s192
      %p206 = scmp.eq.s32.totalorder %s22, 1
      %p207 = por %p205, %p206
      %p209 = scmp.ne.s32.totalorder %s192, %s208
      %p210 = scmp.eq.s32.totalorder %s22, 0
      %p211 = por %p209, %p210
      %s212 = ssub.s32 %s16, %s23
      %p213 = scmp.eq.s32.totalorder %s212, 0
      %s215 = sadd.s32 %s214, 1
      %s216 = scalar_select %p213, %s214, %s215
      %p219 = pneg %p213
      %p220 = scmp.eq.s32.totalorder %s16, 1
      %p221 = por %p219, %p220
      %p222 = scmp.ne.s32.totalorder %s214, %s217
      %p223 = scmp.eq.s32.totalorder %s16, 0
      %p224 = por %p222, %p223
      %p225 = scmp.ne.s32.totalorder %s214, %s217
      %p226 = scmp.eq.s32.totalorder %s21, 1
      %p227 = por %p225, %p226
      %p228 = scmp.ne.s32.totalorder %s217, %s218
      %p229 = scmp.eq.s32.totalorder %s21, 0
      %p230 = por %p228, %p229
      %p231 = scmp.ne.s32.totalorder %s217, %s218
      %p232 = scmp.eq.s32.totalorder %s22, 1
      %p233 = por %p231, %p232
      %p235 = scmp.ne.s32.totalorder %s218, %s234
      %p236 = scmp.eq.s32.totalorder %s22, 0
      %p237 = por %p235, %p236
      %p238 = scmp.le.s32.totalorder 1, %s16
      %p239 = scmp.lt.s32.totalorder %s16, 3
      %p240 = pnand %p238, %p239
      %p241 = pneg %p240
      // Predicated region
      $region9: #{decoder_layer_pallas.7} parent=5 // pred_check
        _
      $region10: #{decoder_layer_pallas.7} parent=5 // pred_check_branch
        %243 = sbr.rel (%p240) target = $region12
      $region11: #{decoder_layer_pallas.7} parent=5 // pred_region
        %s244 = ssub.s32 %s16, 1
        // Predicated region
        $region13: #{decoder_layer_pallas.7} parent=11 // pred_check
          %p245 = pneg %p89
        $region14: #{decoder_layer_pallas.7} parent=11 // pred_check_branch
          %247 = sbr.rel (%p245) target = $region16
        $region15: #{decoder_layer_pallas.7} parent=11 // pred_region
          _
        $region16: #{decoder_layer_pallas.7} parent=11 // pred_fallthru
          _
        // Predicated region
        $region17: #{decoder_layer_pallas.7} parent=11 // pred_check
          %p248 = pneg %p110
        $region18: #{decoder_layer_pallas.7} parent=11 // pred_check_branch
          %250 = sbr.rel (%p248) target = $region20
        $region19: #{decoder_layer_pallas.7} parent=11 // pred_region
          _
        $region20: #{decoder_layer_pallas.7} parent=11 // pred_fallthru
          _
        // Predicated region
        $region21: #{decoder_layer_pallas.7} parent=11 // pred_check
          %p251 = pneg %p131
        $region22: #{decoder_layer_pallas.7} parent=11 // pred_check_branch
          %253 = sbr.rel (%p251) target = $region24
        $region23: #{decoder_layer_pallas.7} parent=11 // pred_region
          %255 = vsyncadd [#allocation3], 0
          %s256 = sshll.u32 %s4, 4
          %s257 = int_to_ptr.hbm [resolvable:$true] %s256
          %s258 = sshll.u32 [#allocation2], 4
          %s259 = int_to_ptr.vmem [resolvable:$true] %s258
          %264 = dma.hbm_to_vmem [thread:$0]  %s257, 512, %s259, [#allocation3], 128, 128, 8
        $region24: #{decoder_layer_pallas.7} parent=11 // pred_fallthru
          _
        // Predicated region
        $region25: #{decoder_layer_pallas.7} parent=11 // pred_check
          %p265 = pneg %p152
        $region26: #{decoder_layer_pallas.7} parent=11 // pred_check_branch
          %267 = sbr.rel (%p265) target = $region28
        $region27: #{decoder_layer_pallas.7} parent=11 // pred_region
          _
        $region28: #{decoder_layer_pallas.7} parent=11 // pred_fallthru
          _
      $region12: #{decoder_layer_pallas.7} parent=5 // pred_fallthru
        _
      %p268 = scmp.lt.s32.totalorder %s16, 2
      // Predicated region
      $region29: #{decoder_layer_pallas.7} parent=5 // pred_check
        %p269 = pneg %p268
      $region30: #{decoder_layer_pallas.7} parent=5 // pred_check_branch
        %271 = sbr.rel (%p269) target = $region32
      $region31: #{decoder_layer_pallas.7} parent=5 // pred_region
        // Predicated region
        $region33: #{decoder_layer_pallas.7} parent=31 // pred_check
          %p272 = pneg %p36
        $region34: #{decoder_layer_pallas.7} parent=31 // pred_check_branch
          %274 = sbr.rel (%p272) target = $region36
        $region35: #{decoder_layer_pallas.7} parent=31 // pred_region
          %p275 = scmp.lt.s32.totalorder %s16, 1
          %s276 = scalar_select %p275, %s16, 1
          %s277 = smul.addr %s276, 8
          %s278 = scalar_lea.vmem %s0, %s277
        $region36: #{decoder_layer_pallas.7} parent=31 // pred_fallthru
          _
        // Predicated region
        $region37: #{decoder_layer_pallas.7} parent=31 // pred_check
          %p279 = pneg %p62
        $region38: #{decoder_layer_pallas.7} parent=31 // pred_check_branch
          %281 = sbr.rel (%p279) target = $region40
        $region39: #{decoder_layer_pallas.7} parent=31 // pred_region
          %p282 = scmp.lt.s32.totalorder %s16, 1
          %s283 = scalar_select %p282, %s16, 1
          %s284 = smul.addr %s283, 8
          %s285 = scalar_lea.vmem %s1, %s284
        $region40: #{decoder_layer_pallas.7} parent=31 // pred_fallthru
          _
      $region32: #{decoder_layer_pallas.7} parent=5 // pred_fallthru
        _
      %p286 = scmp.le.s32.totalorder 1, %s16
      %p287 = scmp.lt.s32.totalorder %s16, 3
      %p288 = pnand %p286, %p287
      %p289 = pneg %p288
      // Predicated region
      $region41: #{decoder_layer_pallas.7} parent=5 // pred_check
        _
      $region42: #{decoder_layer_pallas.7} parent=5 // pred_check_branch
        %291 = sbr.rel (%p288) target = $region44
      $region43: #{decoder_layer_pallas.7} parent=5 // pred_region
        %s292 = ssub.s32 %s16, 1
        // Predicated region
        $region45: #{decoder_layer_pallas.7} parent=43 // pred_check
          %p293 = pneg %p131
        $region46: #{decoder_layer_pallas.7} parent=43 // pred_check_branch
          %295 = sbr.rel (%p293) target = $region48
        $region47: #{decoder_layer_pallas.7} parent=43 // pred_region
          %297 = dma.done [#allocation3], 512
        $region48: #{decoder_layer_pallas.7} parent=43 // pred_fallthru
          _
        %p298 = scmp.lt.s32.totalorder %s21, 1
        %s299 = scalar_select %p298, %s21, 1
        %s300 = smul.addr %s299, 8
        %s301 = scalar_lea.vmem %s0, %s300
        %p302 = pneg %p42
        %p303 = pneg %p39
        %p304 = scmp.lt.s32.totalorder %s21, 1
        %s305 = scalar_select %p304, %s21, 1
        %s306 = smul.addr %s305, 8
        %s307 = scalar_lea.vmem %s1, %s306
        %p308 = pneg %p68
        %p309 = pneg %p65
        %p310 = pneg %p89
        %p311 = pneg %p86
        %p312 = pneg %p110
        %p313 = pneg %p107
        %p314 = pneg %p131
        %p315 = pneg %p128
        %p316 = pneg %p152
        %p317 = pneg %p149
        %p318 = pneg %p178
        %p319 = pneg %p175
        %p320 = scmp.lt.s32.totalorder %s21, 1
        %s321 = scalar_select %p320, %s21, 1
        %s322 = smul.addr %s321, 8
        %s323 = scalar_lea.vmem %s6, %s322
        %p324 = pneg %p204
        %p325 = pneg %p201
        %p326 = scmp.lt.s32.totalorder %s21, 1
        %s327 = scalar_select %p326, %s21, 1
        %s328 = smul.addr %s327, 8
        %s329 = scalar_lea.vmem %s7, %s328
        %p330 = pneg %p230
        %p331 = pneg %p227
        %p332 = scmp.lt.s32.totalorder %s21, 1
        %s333 = scalar_select %p332, %s21, 1
        %s334 = smul.addr %s333, 8
        %s335 = scalar_lea.vmem %s8, %s334
        %p336 = scmp.lt.s32.totalorder %s21, 1
        %s337 = scalar_select %p336, %s21, 1
        %s338 = smul.addr %s337, 8
        %s339 = scalar_lea.vmem %s0, %s338
        %p340 = scmp.lt.s32.totalorder %s21, 1
        %s341 = scalar_select %p340, %s21, 1
        %s342 = smul.addr %s341, 8
        %s343 = scalar_lea.vmem %s1, %s342
        %p344 = scmp.lt.s32.totalorder %s21, 1
        %s345 = scalar_select %p344, %s21, 1
        %s346 = smul.addr %s345, 8
        %s347 = scalar_lea.vmem %s6, %s346
        %p348 = scmp.lt.s32.totalorder %s21, 1
        %s349 = scalar_select %p348, %s21, 1
        %s350 = smul.addr %s349, 8
        %s351 = scalar_lea.vmem %s7, %s350
        %p352 = scmp.lt.s32.totalorder %s21, 1
        %s353 = scalar_select %p352, %s21, 1
        %s354 = smul.addr %s353, 8
        %s355 = scalar_lea.vmem %s8, %s354
        %v356 = vld [vmem:[%s339] sm:$0xff]
        %v357 = vld [vmem:[%s343] sm:$0xff]
        %v358 = vadd.f32 %v356, %v357
        %v359 = vld [vmem:[%s2] sm:$0xff]
        %v360 = vld [vmem:[%s2 + $0x8] sm:$0xff]
        %v361 = vld [vmem:[%s2 + $0x10] sm:$0xff]
        %v362 = vld [vmem:[%s2 + $0x18] sm:$0xff]
        %v363 = vld [vmem:[%s3] sm:$0x1]
        %v365 = vperm.slane %v363, 0
        %vm367 = vcmask 261120
        %v369 = vsel %vm367, %v358, 0
        %371 = vmatpush.msra.mxu0 0.0
        %372 = vmatpush.msra.mxu0 0.0
        %373 = vmatpush.msra.mxu0 0.0
        %374 = vmatpush.msra.mxu0 0.0
        %375 = vmatpush.msra.mxu0 0.0
        %376 = vmatpush.msra.mxu0 0.0
        %377 = vmatpush.msra.mxu0 0.0
        %378 = vmatpush.msra.mxu0 0.0
        %379 = vmatpush.msra.mxu0 0.0
        %380 = vmatpush.msra.mxu0 0.0
        %381 = vmatpush.msra.mxu0 0.0
        %382 = vmatpush.msra.mxu0 0.0
        %383 = vmatpush.msra.mxu0 %v362
        %384 = vmatpush.msra.mxu0 %v361
        %385 = vmatpush.msra.mxu0 %v360
        %386 = vmatpush.msra.mxu0 %v359
        %387 = vmatmul.f32.gmra.mxu0 %v369
        %v388 = vpop.f32.mrf.mxu0
        %v389 = vadd.f32 %v365, %v388
        %390 = vdwg.mxu0
        %391 = vst.msk [vmem:[%s347] sm:$0xff] %vm367, %v389
        %393 = vrot.lane.b32.xlu0 %v389, 96
        %v394 = vpop.permute.xlu0 %393
        %396 = vst.msk [vmem:[%s351] sm:$0xff] %vm367, %v394
        %v397 = vld [vmem:[#allocation2] sm:$0xff]
        %v398 = vld [vmem:[#allocation2 + $0x8] sm:$0xff]
        %v399 = vld [vmem:[#allocation2 + $0x10] sm:$0xff]
        %v400 = vld [vmem:[#allocation2 + $0x18] sm:$0xff]
        %v401 = vld [vmem:[%s5] sm:$0x1]
        %v403 = vperm.slane %v401, 0
        %v406 = vsel %vm367, %v356, 0
        %408 = vmatpush.msra.mxu0 0.0
        %409 = vmatpush.msra.mxu0 0.0
        %410 = vmatpush.msra.mxu0 0.0
        %411 = vmatpush.msra.mxu0 0.0
        %412 = vmatpush.msra.mxu0 0.0
        %413 = vmatpush.msra.mxu0 0.0
        %414 = vmatpush.msra.mxu0 0.0
        %415 = vmatpush.msra.mxu0 0.0
        %416 = vmatpush.msra.mxu0 0.0
        %417 = vmatpush.msra.mxu0 0.0
        %418 = vmatpush.msra.mxu0 0.0
        %419 = vmatpush.msra.mxu0 0.0
        %420 = vmatpush.msra.mxu0 %v400
        %421 = vmatpush.msra.mxu0 %v399
        %422 = vmatpush.msra.mxu0 %v398
        %423 = vmatpush.msra.mxu0 %v397
        %424 = vmatmul.f32.gmra.mxu0 %v406
        %v425 = vpop.f32.mrf.mxu0
        %v426 = vadd.f32 %v403, %v425
        %427 = vdwg.mxu0
        %428 = vst.msk [vmem:[%s355] sm:$0xff] %vm367, %v426
        %p429 = scmp.lt.s32.totalorder %s21, 1
        %s430 = scalar_select %p429, %s21, 1
        %s431 = smul.addr %s430, 8
        %s432 = scalar_lea.vmem %s6, %s431
        %p433 = scmp.lt.s32.totalorder %s21, 1
        %s434 = scalar_select %p433, %s21, 1
        %s435 = smul.addr %s434, 8
        %s436 = scalar_lea.vmem %s7, %s435
        %p437 = scmp.lt.s32.totalorder %s21, 1
        %s438 = scalar_select %p437, %s21, 1
        %s439 = smul.addr %s438, 8
        %s440 = scalar_lea.vmem %s8, %s439
        // Predicated region
        $region49: #{decoder_layer_pallas.7} parent=43 // pred_check
          %p441 = pneg %p175
        $region50: #{decoder_layer_pallas.7} parent=43 // pred_check_branch
          %443 = sbr.rel (%p441) target = $region52
        $region51: #{decoder_layer_pallas.7} parent=43 // pred_region
          _
        $region52: #{decoder_layer_pallas.7} parent=43 // pred_fallthru
          _
        // Predicated region
        $region53: #{decoder_layer_pallas.7} parent=43 // pred_check
          %p444 = pneg %p201
        $region54: #{decoder_layer_pallas.7} parent=43 // pred_check_branch
          %446 = sbr.rel (%p444) target = $region56
        $region55: #{decoder_layer_pallas.7} parent=43 // pred_region
          _
        $region56: #{decoder_layer_pallas.7} parent=43 // pred_fallthru
          _
        // Predicated region
        $region57: #{decoder_layer_pallas.7} parent=43 // pred_check
          %p447 = pneg %p227
        $region58: #{decoder_layer_pallas.7} parent=43 // pred_check_branch
          %449 = sbr.rel (%p447) target = $region60
        $region59: #{decoder_layer_pallas.7} parent=43 // pred_region
          _
        $region60: #{decoder_layer_pallas.7} parent=43 // pred_fallthru
          _
      $region44: #{decoder_layer_pallas.7} parent=5 // pred_fallthru
        _
      %p450 = scmp.le.s32.totalorder 2, %s16
      // Predicated region
      $region61: #{decoder_layer_pallas.7} parent=5 // pred_check
        %p451 = pneg %p450
      $region62: #{decoder_layer_pallas.7} parent=5 // pred_check_branch
        %453 = sbr.rel (%p451) target = $region64
      $region63: #{decoder_layer_pallas.7} parent=5 // pred_region
        %s454 = ssub.s32 %s16, 2
        // Predicated region
        $region65: #{decoder_layer_pallas.7} parent=63 // pred_check
          %p455 = pneg %p181
        $region66: #{decoder_layer_pallas.7} parent=63 // pred_check_branch
          %457 = sbr.rel (%p455) target = $region68
        $region67: #{decoder_layer_pallas.7} parent=63 // pred_region
          %p458 = scmp.lt.s32.totalorder %s22, 1
          %s459 = scalar_select %p458, %s22, 1
          %s460 = smul.addr %s459, 8
          %s461 = scalar_lea.vmem %s6, %s460
        $region68: #{decoder_layer_pallas.7} parent=63 // pred_fallthru
          _
        // Predicated region
        $region69: #{decoder_layer_pallas.7} parent=63 // pred_check
          %p462 = pneg %p207
        $region70: #{decoder_layer_pallas.7} parent=63 // pred_check_branch
          %464 = sbr.rel (%p462) target = $region72
        $region71: #{decoder_layer_pallas.7} parent=63 // pred_region
          %p465 = scmp.lt.s32.totalorder %s22, 1
          %s466 = scalar_select %p465, %s22, 1
          %s467 = smul.addr %s466, 8
          %s468 = scalar_lea.vmem %s7, %s467
        $region72: #{decoder_layer_pallas.7} parent=63 // pred_fallthru
          _
        // Predicated region
        $region73: #{decoder_layer_pallas.7} parent=63 // pred_check
          %p469 = pneg %p233
        $region74: #{decoder_layer_pallas.7} parent=63 // pred_check_branch
          %471 = sbr.rel (%p469) target = $region76
        $region75: #{decoder_layer_pallas.7} parent=63 // pred_region
          %p472 = scmp.lt.s32.totalorder %s22, 1
          %s473 = scalar_select %p472, %s22, 1
          %s474 = smul.addr %s473, 8
          %s475 = scalar_lea.vmem %s8, %s474
        $region76: #{decoder_layer_pallas.7} parent=63 // pred_fallthru
          _
      $region64: #{decoder_layer_pallas.7} parent=5 // pred_fallthru
        _
    $region6: #{decoder_layer_pallas.7} parent=1 // loop_footer
      %s20 = sadd.s32 1, %s16
    $region7: #{decoder_layer_pallas.7} parent=1 // loop_footer_branch
      %15 = sbr.rel target = $region3
    $region8: #{decoder_layer_pallas.7} parent=1 // loop_exit
      _
    %476 = vsyncpa [#allocation3], 1
    %s477 = scalar_lea.sflag [#allocation3], 1
    %478 = vsyncpa %s477, 1

// kernel: decoder_layer_pallas.9
$region0: #{decoder_layer_pallas.9}
  #allocation0 [shape = 'u32[]', space=smem, size = 0x4, offset = 0x4, fixed_abs, tag = 'smem constant byte address 0x4 - core index']
  #allocation1 [shape = 'u32[72,128]{1,0:T(1,128)}', space=vmem, size = 0x9000, scoped, tag = 'internal scratch']
  %s0 = inlined_call_operand.vmem [shape: f32[16,32], index: 0, kind: input, shape index: {}]
  %s1 = inlined_call_operand.hbm [shape: f32[32,32], index: 1, kind: input, shape index: {}]
  %s2 = inlined_call_operand.vmem [shape: f32[1,32], index: 2, kind: input, shape index: {}]
  %s3 = inlined_call_operand.vmem [shape: f32[16,32], index: 3, kind: input, shape index: {}]
  %s4 = inlined_call_operand.vmem [shape: f32[1,32], index: 4, kind: input, shape index: {}]
  %s5 = inlined_call_operand.vmem [shape: f32[1,32], index: 5, kind: input, shape index: {}]
  %s6 = inlined_call_operand.vmem [shape: f32[16,32], index: 6, kind: input, shape index: {}]
  %s7 = inlined_call_operand.hbm [shape: f32[32,32], index: 7, kind: input, shape index: {}]
  %s8 = inlined_call_operand.vmem [shape: f32[1,32], index: 8, kind: input, shape index: {}]
  %s9 = inlined_call_operand.vmem [shape: f32[16,32], index: 9, kind: output, shape index: {0}]
  %s10 = inlined_call_operand.vmem [shape: f32[16,32], index: 10, kind: output, shape index: {1}]
  %11 = xla_tuple %s9, %s10
  %s12 = sld [smem:[#allocation0]]
  $region85: #{decoder_layer_pallas.9} parent=0
    _
  %s14 = ssub.s32 1, %s12
  %s15 = scalar_select 0, %s14, %s12
  $region1: #{decoder_layer_pallas.9} parent=0
    #allocation2 [shape = 'u8[16384]{0}', space=vmem, size = 0x4000, scoped, tag = 'input window, operand 1, single buffered']
    #allocation3 [shape = 's32[2]{0}', space=sflag, size = 0x8, scoped, tag = 'scoped memory for decoder_layer_pallas.9']
    #allocation4 [shape = 'u8[16384]{0}', space=vmem, size = 0x4000, scoped, tag = 'input window, operand 7, single buffered']
    #allocation5 [shape = 's32[1]{0}', space=sflag, size = 0x4, scoped, tag = 'scoped memory for decoder_layer_pallas.9']
    %16 = vsyncpa [#allocation3], 0
    %17 = vsyncpa [#allocation5], 0
    loop: start=0, step=1, limit=4
    $region2: #{decoder_layer_pallas.9} parent=1 // loop_pre_header
      _
    $region3: #{decoder_layer_pallas.9} parent=1 // loop_header
      %s19 = sphi 0, %s23
      %p20 = scmp.ge.s32.totalorder %s19, 4
      %s29 = sphi 0, %s31
      %s32 = sphi 0, %s29
      %s33 = sphi 0, %s32
      %s49 = sphi 0, %s33
      %s53 = sphi 0, %s53
      %s55 = sphi 0, %s53
      %s56 = sphi 0, %s55
      %s70 = sphi 0, %s56
      %s74 = sphi 0, %s74
      %s76 = sphi 0, %s74
      %s77 = sphi 0, %s76
      %s91 = sphi 0, %s77
      %s97 = sphi 0, %s99
      %s100 = sphi 0, %s97
      %s101 = sphi 0, %s100
      %s117 = sphi 0, %s101
      %s121 = sphi 0, %s121
      %s123 = sphi 0, %s121
      %s124 = sphi 0, %s123
      %s138 = sphi 0, %s124
      %s142 = sphi 0, %s142
      %s144 = sphi 0, %s142
      %s145 = sphi 0, %s144
      %s159 = sphi 0, %s145
      %s165 = sphi 0, %s167
      %s168 = sphi 0, %s165
      %s169 = sphi 0, %s168
      %s185 = sphi 0, %s169
      %s189 = sphi 0, %s189
      %s191 = sphi 0, %s189
      %s192 = sphi 0, %s191
      %s206 = sphi 0, %s192
      %s210 = sphi 0, %s210
      %s212 = sphi 0, %s210
      %s213 = sphi 0, %s212
      %s227 = sphi 0, %s213
      %s233 = sphi 0, %s235
      %s236 = sphi 0, %s233
      %s237 = sphi 0, %s236
      %s253 = sphi 0, %s237
      %s259 = sphi 0, %s261
      %s262 = sphi 0, %s259
      %s263 = sphi 0, %s262
      %s279 = sphi 0, %s263
    $region4: #{decoder_layer_pallas.9} parent=1 // loop_header_branch
      %22 = sbr.rel (%p20) target = $region8
    $region5: #{decoder_layer_pallas.9} parent=1 // loop_body
      %s24 = ssub.s32 %s19, 1
      %s25 = ssub.s32 %s19, 2
      %s26 = sadd.s32 %s19, 1
      %s27 = ssub.s32 %s19, %s26
      %p28 = scmp.eq.s32.totalorder %s27, 0
      %s30 = sadd.s32 %s29, 1
      %s31 = scalar_select %p28, %s29, %s30
      %p34 = pneg %p28
      %p35 = scmp.eq.s32.totalorder %s19, 1
      %p36 = por %p34, %p35
      %p37 = scmp.ne.s32.totalorder %s29, %s32
      %p38 = scmp.eq.s32.totalorder %s19, 0
      %p39 = por %p37, %p38
      %p40 = scmp.ne.s32.totalorder %s29, %s32
      %p41 = scmp.eq.s32.totalorder %s24, 1
      %p42 = por %p40, %p41
      %p43 = scmp.ne.s32.totalorder %s32, %s33
      %p44 = scmp.eq.s32.totalorder %s24, 0
      %p45 = por %p43, %p44
      %p46 = scmp.ne.s32.totalorder %s32, %s33
      %p47 = scmp.eq.s32.totalorder %s25, 1
      %p48 = por %p46, %p47
      %p50 = scmp.ne.s32.totalorder %s33, %s49
      %p51 = scmp.eq.s32.totalorder %s25, 0
      %p52 = por %p50, %p51
      %s54 = sadd.s32 %s53, 1
      %p57 = scmp.eq.s32.totalorder %s19, 1
      %p58 = scmp.ne.s32.totalorder %s53, %s55
      %p59 = scmp.eq.s32.totalorder %s19, 0
      %p60 = por %p58, %p59
      %p61 = scmp.ne.s32.totalorder %s53, %s55
      %p62 = scmp.eq.s32.totalorder %s24, 1
      %p63 = por %p61, %p62
      %p64 = scmp.ne.s32.totalorder %s55, %s56
      %p65 = scmp.eq.s32.totalorder %s24, 0
      %p66 = por %p64, %p65
      %p67 = scmp.ne.s32.totalorder %s55, %s56
      %p68 = scmp.eq.s32.totalorder %s25, 1
      %p69 = por %p67, %p68
      %p71 = scmp.ne.s32.totalorder %s56, %s70
      %p72 = scmp.eq.s32.totalorder %s25, 0
      %p73 = por %p71, %p72
      %s75 = sadd.s32 %s74, 1
      %p78 = scmp.eq.s32.totalorder %s19, 1
      %p79 = scmp.ne.s32.totalorder %s74, %s76
      %p80 = scmp.eq.s32.totalorder %s19, 0
      %p81 = por %p79, %p80
      %p82 = scmp.ne.s32.totalorder %s74, %s76
      %p83 = scmp.eq.s32.totalorder %s24, 1
      %p84 = por %p82, %p83
      %p85 = scmp.ne.s32.totalorder %s76, %s77
      %p86 = scmp.eq.s32.totalorder %s24, 0
      %p87 = por %p85, %p86
      %p88 = scmp.ne.s32.totalorder %s76, %s77
      %p89 = scmp.eq.s32.totalorder %s25, 1
      %p90 = por %p88, %p89
      %p92 = scmp.ne.s32.totalorder %s77, %s91
      %p93 = scmp.eq.s32.totalorder %s25, 0
      %p94 = por %p92, %p93
      %s95 = ssub.s32 %s19, %s26
      %p96 = scmp.eq.s32.totalorder %s95, 0
      %s98 = sadd.s32 %s97, 1
      %s99 = scalar_select %p96, %s97, %s98
      %p102 = pneg %p96
      %p103 = scmp.eq.s32.totalorder %s19, 1
      %p104 = por %p102, %p103
      %p105 = scmp.ne.s32.totalorder %s97, %s100
      %p106 = scmp.eq.s32.totalorder %s19, 0
      %p107 = por %p105, %p106
      %p108 = scmp.ne.s32.totalorder %s97, %s100
      %p109 = scmp.eq.s32.totalorder %s24, 1
      %p110 = por %p108, %p109
      %p111 = scmp.ne.s32.totalorder %s100, %s101
      %p112 = scmp.eq.s32.totalorder %s24, 0
      %p113 = por %p111, %p112
      %p114 = scmp.ne.s32.totalorder %s100, %s101
      %p115 = scmp.eq.s32.totalorder %s25, 1
      %p116 = por %p114, %p115
      %p118 = scmp.ne.s32.totalorder %s101, %s117
      %p119 = scmp.eq.s32.totalorder %s25, 0
      %p120 = por %p118, %p119
      %s122 = sadd.s32 %s121, 1
      %p125 = scmp.eq.s32.totalorder %s19, 1
      %p126 = scmp.ne.s32.totalorder %s121, %s123
      %p127 = scmp.eq.s32.totalorder %s19, 0
      %p128 = por %p126, %p127
      %p129 = scmp.ne.s32.totalorder %s121, %s123
      %p130 = scmp.eq.s32.totalorder %s24, 1
      %p131 = por %p129, %p130
      %p132 = scmp.ne.s32.totalorder %s123, %s124
      %p133 = scmp.eq.s32.totalorder %s24, 0
      %p134 = por %p132, %p133
      %p135 = scmp.ne.s32.totalorder %s123, %s124
      %p136 = scmp.eq.s32.totalorder %s25, 1
      %p137 = por %p135, %p136
      %p139 = scmp.ne.s32.totalorder %s124, %s138
      %p140 = scmp.eq.s32.totalorder %s25, 0
      %p141 = por %p139, %p140
      %s143 = sadd.s32 %s142, 1
      %p146 = scmp.eq.s32.totalorder %s19, 1
      %p147 = scmp.ne.s32.totalorder %s142, %s144
      %p148 = scmp.eq.s32.totalorder %s19, 0
      %p149 = por %p147, %p148
      %p150 = scmp.ne.s32.totalorder %s142, %s144
      %p151 = scmp.eq.s32.totalorder %s24, 1
      %p152 = por %p150, %p151
      %p153 = scmp.ne.s32.totalorder %s144, %s145
      %p154 = scmp.eq.s32.totalorder %s24, 0
      %p155 = por %p153, %p154
      %p156 = scmp.ne.s32.totalorder %s144, %s145
      %p157 = scmp.eq.s32.totalorder %s25, 1
      %p158 = por %p156, %p157
      %p160 = scmp.ne.s32.totalorder %s145, %s159
      %p161 = scmp.eq.s32.totalorder %s25, 0
      %p162 = por %p160, %p161
      %s163 = ssub.s32 %s19, %s26
      %p164 = scmp.eq.s32.totalorder %s163, 0
      %s166 = sadd.s32 %s165, 1
      %s167 = scalar_select %p164, %s165, %s166
      %p170 = pneg %p164
      %p171 = scmp.eq.s32.totalorder %s19, 1
      %p172 = por %p170, %p171
      %p173 = scmp.ne.s32.totalorder %s165, %s168
      %p174 = scmp.eq.s32.totalorder %s19, 0
      %p175 = por %p173, %p174
      %p176 = scmp.ne.s32.totalorder %s165, %s168
      %p177 = scmp.eq.s32.totalorder %s24, 1
      %p178 = por %p176, %p177
      %p179 = scmp.ne.s32.totalorder %s168, %s169
      %p180 = scmp.eq.s32.totalorder %s24, 0
      %p181 = por %p179, %p180
      %p182 = scmp.ne.s32.totalorder %s168, %s169
      %p183 = scmp.eq.s32.totalorder %s25, 1
      %p184 = por %p182, %p183
      %p186 = scmp.ne.s32.totalorder %s169, %s185
      %p187 = scmp.eq.s32.totalorder %s25, 0
      %p188 = por %p186, %p187
      %s190 = sadd.s32 %s189, 1
      %p193 = scmp.eq.s32.totalorder %s19, 1
      %p194 = scmp.ne.s32.totalorder %s189, %s191
      %p195 = scmp.eq.s32.totalorder %s19, 0
      %p196 = por %p194, %p195
      %p197 = scmp.ne.s32.totalorder %s189, %s191
      %p198 = scmp.eq.s32.totalorder %s24, 1
      %p199 = por %p197, %p198
      %p200 = scmp.ne.s32.totalorder %s191, %s192
      %p201 = scmp.eq.s32.totalorder %s24, 0
      %p202 = por %p200, %p201
      %p203 = scmp.ne.s32.totalorder %s191, %s192
      %p204 = scmp.eq.s32.totalorder %s25, 1
      %p205 = por %p203, %p204
      %p207 = scmp.ne.s32.totalorder %s192, %s206
      %p208 = scmp.eq.s32.totalorder %s25, 0
      %p209 = por %p207, %p208
      %s211 = sadd.s32 %s210, 1
      %p214 = scmp.eq.s32.totalorder %s19, 1
      %p215 = scmp.ne.s32.totalorder %s210, %s212
      %p216 = scmp.eq.s32.totalorder %s19, 0
      %p217 = por %p215, %p216
      %p218 = scmp.ne.s32.totalorder %s210, %s212
      %p219 = scmp.eq.s32.totalorder %s24, 1
      %p220 = por %p218, %p219
      %p221 = scmp.ne.s32.totalorder %s212, %s213
      %p222 = scmp.eq.s32.totalorder %s24, 0
      %p223 = por %p221, %p222
      %p224 = scmp.ne.s32.totalorder %s212, %s213
      %p225 = scmp.eq.s32.totalorder %s25, 1
      %p226 = por %p224, %p225
      %p228 = scmp.ne.s32.totalorder %s213, %s227
      %p229 = scmp.eq.s32.totalorder %s25, 0
      %p230 = por %p228, %p229
      %s231 = ssub.s32 %s19, %s26
      %p232 = scmp.eq.s32.totalorder %s231, 0
      %s234 = sadd.s32 %s233, 1
      %s235 = scalar_select %p232, %s233, %s234
      %p238 = pneg %p232
      %p239 = scmp.eq.s32.totalorder %s19, 1
      %p240 = por %p238, %p239
      %p241 = scmp.ne.s32.totalorder %s233, %s236
      %p242 = scmp.eq.s32.totalorder %s19, 0
      %p243 = por %p241, %p242
      %p244 = scmp.ne.s32.totalorder %s233, %s236
      %p245 = scmp.eq.s32.totalorder %s24, 1
      %p246 = por %p244, %p245
      %p247 = scmp.ne.s32.totalorder %s236, %s237
      %p248 = scmp.eq.s32.totalorder %s24, 0
      %p249 = por %p247, %p248
      %p250 = scmp.ne.s32.totalorder %s236, %s237
      %p251 = scmp.eq.s32.totalorder %s25, 1
      %p252 = por %p250, %p251
      %p254 = scmp.ne.s32.totalorder %s237, %s253
      %p255 = scmp.eq.s32.totalorder %s25, 0
      %p256 = por %p254, %p255
      %s257 = ssub.s32 %s19, %s26
      %p258 = scmp.eq.s32.totalorder %s257, 0
      %s260 = sadd.s32 %s259, 1
      %s261 = scalar_select %p258, %s259, %s260
      %p264 = pneg %p258
      %p265 = scmp.eq.s32.totalorder %s19, 1
      %p266 = por %p264, %p265
      %p267 = scmp.ne.s32.totalorder %s259, %s262
      %p268 = scmp.eq.s32.totalorder %s19, 0
      %p269 = por %p267, %p268
      %p270 = scmp.ne.s32.totalorder %s259, %s262
      %p271 = scmp.eq.s32.totalorder %s24, 1
      %p272 = por %p270, %p271
      %p273 = scmp.ne.s32.totalorder %s262, %s263
      %p274 = scmp.eq.s32.totalorder %s24, 0
      %p275 = por %p273, %p274
      %p276 = scmp.ne.s32.totalorder %s262, %s263
      %p277 = scmp.eq.s32.totalorder %s25, 1
      %p278 = por %p276, %p277
      %p280 = scmp.ne.s32.totalorder %s263, %s279
      %p281 = scmp.eq.s32.totalorder %s25, 0
      %p282 = por %p280, %p281
      %p283 = scmp.le.s32.totalorder 1, %s19
      %p284 = scmp.lt.s32.totalorder %s19, 3
      %p285 = pnand %p283, %p284
      %p286 = pneg %p285
      // Predicated region
      $region9: #{decoder_layer_pallas.9} parent=5 // pred_check
        _
      $region10: #{decoder_layer_pallas.9} parent=5 // pred_check_branch
        %288 = sbr.rel (%p285) target = $region12
      $region11: #{decoder_layer_pallas.9} parent=5 // pred_region
        %s289 = ssub.s32 %s19, 1
        // Predicated region
        $region13: #{decoder_layer_pallas.9} parent=11 // pred_check
          %p290 = pneg %p66
        $region14: #{decoder_layer_pallas.9} parent=11 // pred_check_branch
          %292 = sbr.rel (%p290) target = $region16
        $region15: #{decoder_layer_pallas.9} parent=11 // pred_region
          %294 = vsyncadd [#allocation3], 0
          %s295 = sshll.u32 %s1, 4
          %s296 = int_to_ptr.hbm [resolvable:$true] %s295
          %s297 = sshll.u32 [#allocation2], 4
          %s298 = int_to_ptr.vmem [resolvable:$true] %s297
          %303 = dma.hbm_to_vmem [thread:$0]  %s296, 512, %s298, [#allocation3], 128, 128, 8
        $region16: #{decoder_layer_pallas.9} parent=11 // pred_fallthru
          _
        // Predicated region
        $region17: #{decoder_layer_pallas.9} parent=11 // pred_check
          %p304 = pneg %p87
        $region18: #{decoder_layer_pallas.9} parent=11 // pred_check_branch
          %306 = sbr.rel (%p304) target = $region20
        $region19: #{decoder_layer_pallas.9} parent=11 // pred_region
          _
        $region20: #{decoder_layer_pallas.9} parent=11 // pred_fallthru
          _
        // Predicated region
        $region21: #{decoder_layer_pallas.9} parent=11 // pred_check
          %p307 = pneg %p134
        $region22: #{decoder_layer_pallas.9} parent=11 // pred_check_branch
          %309 = sbr.rel (%p307) target = $region24
        $region23: #{decoder_layer_pallas.9} parent=11 // pred_region
          _
        $region24: #{decoder_layer_pallas.9} parent=11 // pred_fallthru
          _
        // Predicated region
        $region25: #{decoder_layer_pallas.9} parent=11 // pred_check
          %p310 = pneg %p155
        $region26: #{decoder_layer_pallas.9} parent=11 // pred_check_branch
          %312 = sbr.rel (%p310) target = $region28
        $region27: #{decoder_layer_pallas.9} parent=11 // pred_region
          _
        $region28: #{decoder_layer_pallas.9} parent=11 // pred_fallthru
          _
        // Predicated region
        $region29: #{decoder_layer_pallas.9} parent=11 // pred_check
          %p313 = pneg %p202
        $region30: #{decoder_layer_pallas.9} parent=11 // pred_check_branch
          %315 = sbr.rel (%p313) target = $region32
        $region31: #{decoder_layer_pallas.9} parent=11 // pred_region
          %317 = vsyncadd [#allocation5], 0
          %s318 = sshll.u32 %s7, 4
          %s319 = int_to_ptr.hbm [resolvable:$true] %s318
          %s320 = sshll.u32 [#allocation4], 4
          %s321 = int_to_ptr.vmem [resolvable:$true] %s320
          %326 = dma.hbm_to_vmem [thread:$0]  %s319, 512, %s321, [#allocation5], 128, 128, 8
        $region32: #{decoder_layer_pallas.9} parent=11 // pred_fallthru
          _
        // Predicated region
        $region33: #{decoder_layer_pallas.9} parent=11 // pred_check
          %p327 = pneg %p223
        $region34: #{decoder_layer_pallas.9} parent=11 // pred_check_branch
          %329 = sbr.rel (%p327) target = $region36
        $region35: #{decoder_layer_pallas.9} parent=11 // pred_region
          _
        $region36: #{decoder_layer_pallas.9} parent=11 // pred_fallthru
          _
      $region12: #{decoder_layer_pallas.9} parent=5 // pred_fallthru
        _
      %p330 = scmp.lt.s32.totalorder %s19, 2
      // Predicated region
      $region37: #{decoder_layer_pallas.9} parent=5 // pred_check
        %p331 = pneg %p330
      $region38: #{decoder_layer_pallas.9} parent=5 // pred_check_branch
        %333 = sbr.rel (%p331) target = $region40
      $region39: #{decoder_layer_pallas.9} parent=5 // pred_region
        // Predicated region
        $region41: #{decoder_layer_pallas.9} parent=39 // pred_check
          %p334 = pneg %p39
        $region42: #{decoder_layer_pallas.9} parent=39 // pred_check_branch
          %336 = sbr.rel (%p334) target = $region44
        $region43: #{decoder_layer_pallas.9} parent=39 // pred_region
          %p337 = scmp.lt.s32.totalorder %s19, 1
          %s338 = scalar_select %p337, %s19, 1
          %s339 = smul.addr %s338, 8
          %s340 = scalar_lea.vmem %s0, %s339
        $region44: #{decoder_layer_pallas.9} parent=39 // pred_fallthru
          _
        // Predicated region
        $region45: #{decoder_layer_pallas.9} parent=39 // pred_check
          %p341 = pneg %p107
        $region46: #{decoder_layer_pallas.9} parent=39 // pred_check_branch
          %343 = sbr.rel (%p341) target = $region48
        $region47: #{decoder_layer_pallas.9} parent=39 // pred_region
          %p344 = scmp.lt.s32.totalorder %s19, 1
          %s345 = scalar_select %p344, %s19, 1
          %s346 = smul.addr %s345, 8
          %s347 = scalar_lea.vmem %s3, %s346
        $region48: #{decoder_layer_pallas.9} parent=39 // pred_fallthru
          _
        // Predicated region
        $region49: #{decoder_layer_pallas.9} parent=39 // pred_check
          %p348 = pneg %p175
        $region50: #{decoder_layer_pallas.9} parent=39 // pred_check_branch
          %350 = sbr.rel (%p348) target = $region52
        $region51: #{decoder_layer_pallas.9} parent=39 // pred_region
          %p351 = scmp.lt.s32.totalorder %s19, 1
          %s352 = scalar_select %p351, %s19, 1
          %s353 = smul.addr %s352, 8
          %s354 = scalar_lea.vmem %s6, %s353
        $region52: #{decoder_layer_pallas.9} parent=39 // pred_fallthru
          _
      $region40: #{decoder_layer_pallas.9} parent=5 // pred_fallthru
        _
      %p355 = scmp.le.s32.totalorder 1, %s19
      %p356 = scmp.lt.s32.totalorder %s19, 3
      %p357 = pnand %p355, %p356
      %p358 = pneg %p357
      // Predicated region
      $region53: #{decoder_layer_pallas.9} parent=5 // pred_check
        _
      $region54: #{decoder_layer_pallas.9} parent=5 // pred_check_branch
        %360 = sbr.rel (%p357) target = $region56
      $region55: #{decoder_layer_pallas.9} parent=5 // pred_region
        %s361 = ssub.s32 %s19, 1
        // Predicated region
        $region57: #{decoder_layer_pallas.9} parent=55 // pred_check
          %p362 = pneg %p66
        $region58: #{decoder_layer_pallas.9} parent=55 // pred_check_branch
          %364 = sbr.rel (%p362) target = $region60
        $region59: #{decoder_layer_pallas.9} parent=55 // pred_region
          %366 = dma.done [#allocation3], 512
        $region60: #{decoder_layer_pallas.9} parent=55 // pred_fallthru
          _
        // Predicated region
        $region61: #{decoder_layer_pallas.9} parent=55 // pred_check
          %p367 = pneg %p202
        $region62: #{decoder_layer_pallas.9} parent=55 // pred_check_branch
          %369 = sbr.rel (%p367) target = $region64
        $region63: #{decoder_layer_pallas.9} parent=55 // pred_region
          %371 = dma.done [#allocation5], 512
        $region64: #{decoder_layer_pallas.9} parent=55 // pred_fallthru
          _
        %p372 = scmp.lt.s32.totalorder %s24, 1
        %s373 = scalar_select %p372, %s24, 1
        %s374 = smul.addr %s373, 8
        %s375 = scalar_lea.vmem %s0, %s374
        %p376 = pneg %p45
        %p377 = pneg %p42
        %p378 = pneg %p66
        %p379 = pneg %p63
        %p380 = pneg %p87
        %p381 = pneg %p84
        %p382 = scmp.lt.s32.totalorder %s24, 1
        %s383 = scalar_select %p382, %s24, 1
        %s384 = smul.addr %s383, 8
        %s385 = scalar_lea.vmem %s3, %s384
        %p386 = pneg %p113
        %p387 = pneg %p110
        %p388 = pneg %p134
        %p389 = pneg %p131
        %p390 = pneg %p155
        %p391 = pneg %p152
        %p392 = scmp.lt.s32.totalorder %s24, 1
        %s393 = scalar_select %p392, %s24, 1
        %s394 = smul.addr %s393, 8
        %s395 = scalar_lea.vmem %s6, %s394
        %p396 = pneg %p181
        %p397 = pneg %p178
        %p398 = pneg %p202
        %p399 = pneg %p199
        %p400 = pneg %p223
        %p401 = pneg %p220
        %p402 = pneg %p249
        %p403 = pneg %p246
        %p404 = scmp.lt.s32.totalorder %s24, 1
        %s405 = scalar_select %p404, %s24, 1
        %s406 = smul.addr %s405, 8
        %s407 = scalar_lea.vmem %s9, %s406
        %p408 = pneg %p275
        %p409 = pneg %p272
        %p410 = scmp.lt.s32.totalorder %s24, 1
        %s411 = scalar_select %p410, %s24, 1
        %s412 = smul.addr %s411, 8
        %s413 = scalar_lea.vmem %s10, %s412
        %p414 = scmp.lt.s32.totalorder %s24, 1
        %s415 = scalar_select %p414, %s24, 1
        %s416 = smul.addr %s415, 8
        %s417 = scalar_lea.vmem %s0, %s416
        %p418 = scmp.lt.s32.totalorder %s24, 1
        %s419 = scalar_select %p418, %s24, 1
        %s420 = smul.addr %s419, 8
        %s421 = scalar_lea.vmem %s3, %s420
        %p422 = scmp.lt.s32.totalorder %s24, 1
        %s423 = scalar_select %p422, %s24, 1
        %s424 = smul.addr %s423, 8
        %s425 = scalar_lea.vmem %s6, %s424
        %p426 = scmp.lt.s32.totalorder %s24, 1
        %s427 = scalar_select %p426, %s24, 1
        %s428 = smul.addr %s427, 8
        %s429 = scalar_lea.vmem %s9, %s428
        %p430 = scmp.lt.s32.totalorder %s24, 1
        %s431 = scalar_select %p430, %s24, 1
        %s432 = smul.addr %s431, 8
        %s433 = scalar_lea.vmem %s10, %s432
        %v434 = vld [vmem:[%s417] sm:$0xff]
        %v435 = vld [vmem:[#allocation2] sm:$0xff]
        %v436 = vld [vmem:[#allocation2 + $0x8] sm:$0xff]
        %v437 = vld [vmem:[#allocation2 + $0x10] sm:$0xff]
        %v438 = vld [vmem:[#allocation2 + $0x18] sm:$0xff]
        %v439 = vld [vmem:[%s2] sm:$0x1]
        %v441 = vperm.slane %v439, 0
        %vm443 = vcmask 261120
        %v445 = vsel %vm443, %v434, 0
        %447 = vmatpush.msra.mxu0 0.0
        %448 = vmatpush.msra.mxu0 0.0
        %449 = vmatpush.msra.mxu0 0.0
        %450 = vmatpush.msra.mxu0 0.0
        %451 = vmatpush.msra.mxu0 0.0
        %452 = vmatpush.msra.mxu0 0.0
        %453 = vmatpush.msra.mxu0 0.0
        %454 = vmatpush.msra.mxu0 0.0
        %455 = vmatpush.msra.mxu0 0.0
        %456 = vmatpush.msra.mxu0 0.0
        %457 = vmatpush.msra.mxu0 0.0
        %458 = vmatpush.msra.mxu0 0.0
        %459 = vmatpush.msra.mxu0 %v438
        %460 = vmatpush.msra.mxu0 %v437
        %461 = vmatpush.msra.mxu0 %v436
        %462 = vmatpush.msra.mxu0 %v435
        %463 = vmatmul.f32.gmra.mxu0 %v445
        %v464 = vpop.f32.mrf.mxu0
        %v465 = vadd.f32 %v441, %v464
        %466 = vdwg.mxu0
        %v467 = vld [vmem:[%s421] sm:$0xff]
        %v468 = vadd.f32 %v465, %v467
        %v469 = vld [vmem:[%s4] sm:$0x1]
        %v470 = vld [vmem:[%s5] sm:$0x1]
        %v471 = vsel %vm443, %v468, 0.0
        %472 = vadd.xlane.f32.xlu0 %v471
        %v473 = vpop.xlane.xlu0 %472
        %v474 = vrcp.pop 32.0
        %v475 = vmul.f32 32.0, %v474
        %v476 = vsub.f32 1.0, %v475
        %v477 = vmul.f32 %v474, %v476
        %v478 = vadd.f32 %v474, %v477
        %vm479 = vweird.f32 %v474
        %v480 = vsel %vm479, %v474, %v478
        %v481 = vmul.f32 %v473, %v480
        %v482 = vsub.f32 %v468, %v481
        %v483 = vmul.f32 %v482, %v482
        %v484 = vsel %vm443, %v483, 0.0
        %485 = vadd.xlane.f32.xlu0 %v484
        %v486 = vpop.xlane.xlu0 %485
        %v487 = vmul.f32 %v486, %v480
        %v488 = vadd.f32 %v487, 1e-05
        %v489 = vrsqrt.pop %v488
        %v490 = vmul.f32 %v489, %v488
        %v491 = vmul.f32 %v490, %v489
        %v492 = vmul.f32 0.5, %v491
        %v493 = vsub.f32 1.5, %v492
        %v494 = vmul.f32 %v489, %v493
        %vm495 = vweird.f32 %v488
        %vm496 = vweird.f32 %v489
        %vm497 = vmor %vm495, %vm496
        %v498 = vsel %vm497, %v489, %v494
        %v499 = vmul.f32 %v482, %v498
        %v501 = vperm.slane %v469, 0
        %v503 = vmul.f32 %v499, %v501
        %v505 = vperm.slane %v470, 0
        %v507 = vadd.f32 %v503, %v505
        %508 = vst.msk [vmem:[%s429] sm:$0xff] %vm443, %v507
        %v509 = vld [vmem:[%s425] sm:$0xff]
        %v510 = vadd.f32 %v507, %v509
        %v511 = vld [vmem:[#allocation4] sm:$0xff]
        %v512 = vld [vmem:[#allocation4 + $0x8] sm:$0xff]
        %v513 = vld [vmem:[#allocation4 + $0x10] sm:$0xff]
        %v514 = vld [vmem:[#allocation4 + $0x18] sm:$0xff]
        %v515 = vld [vmem:[%s8] sm:$0x1]
        %v517 = vperm.slane %v515, 0
        %v520 = vsel %vm443, %v510, 0
        %522 = vmatpush.msra.mxu0 0.0
        %523 = vmatpush.msra.mxu0 0.0
        %524 = vmatpush.msra.mxu0 0.0
        %525 = vmatpush.msra.mxu0 0.0
        %526 = vmatpush.msra.mxu0 0.0
        %527 = vmatpush.msra.mxu0 0.0
        %528 = vmatpush.msra.mxu0 0.0
        %529 = vmatpush.msra.mxu0 0.0
        %530 = vmatpush.msra.mxu0 0.0
        %531 = vmatpush.msra.mxu0 0.0
        %532 = vmatpush.msra.mxu0 0.0
        %533 = vmatpush.msra.mxu0 0.0
        %534 = vmatpush.msra.mxu0 %v514
        %535 = vmatpush.msra.mxu0 %v513
        %536 = vmatpush.msra.mxu0 %v512
        %537 = vmatpush.msra.mxu0 %v511
        %538 = vmatmul.f32.gmra.mxu0 %v520
        %v539 = vpop.f32.mrf.mxu0
        %v540 = vadd.f32 %v517, %v539
        %541 = vdwg.mxu0
        %542 = vst.msk [vmem:[%s433] sm:$0xff] %vm443, %v540
        %p543 = scmp.lt.s32.totalorder %s24, 1
        %s544 = scalar_select %p543, %s24, 1
        %s545 = smul.addr %s544, 8
        %s546 = scalar_lea.vmem %s9, %s545
        %p547 = scmp.lt.s32.totalorder %s24, 1
        %s548 = scalar_select %p547, %s24, 1
        %s549 = smul.addr %s548, 8
        %s550 = scalar_lea.vmem %s10, %s549
        // Predicated region
        $region65: #{decoder_layer_pallas.9} parent=55 // pred_check
          %p551 = pneg %p246
        $region66: #{decoder_layer_pallas.9} parent=55 // pred_check_branch
          %553 = sbr.rel (%p551) target = $region68
        $region67: #{decoder_layer_pallas.9} parent=55 // pred_region
          _
        $region68: #{decoder_layer_pallas.9} parent=55 // pred_fallthru
          _
        // Predicated region
        $region69: #{decoder_layer_pallas.9} parent=55 // pred_check
          %p554 = pneg %p272
        $region70: #{decoder_layer_pallas.9} parent=55 // pred_check_branch
          %556 = sbr.rel (%p554) target = $region72
        $region71: #{decoder_layer_pallas.9} parent=55 // pred_region
          _
        $region72: #{decoder_layer_pallas.9} parent=55 // pred_fallthru
          _
      $region56: #{decoder_layer_pallas.9} parent=5 // pred_fallthru
        _
      %p557 = scmp.le.s32.totalorder 2, %s19
      // Predicated region
      $region73: #{decoder_layer_pallas.9} parent=5 // pred_check
        %p558 = pneg %p557
      $region74: #{decoder_layer_pallas.9} parent=5 // pred_check_branch
        %560 = sbr.rel (%p558) target = $region76
      $region75: #{decoder_layer_pallas.9} parent=5 // pred_region
        %s561 = ssub.s32 %s19, 2
        // Predicated region
        $region77: #{decoder_layer_pallas.9} parent=75 // pred_check
          %p562 = pneg %p252
        $region78: #{decoder_layer_pallas.9} parent=75 // pred_check_branch
          %564 = sbr.rel (%p562) target = $region80
        $region79: #{decoder_layer_pallas.9} parent=75 // pred_region
          %p565 = scmp.lt.s32.totalorder %s25, 1
          %s566 = scalar_select %p565, %s25, 1
          %s567 = smul.addr %s566, 8
          %s568 = scalar_lea.vmem %s9, %s567
        $region80: #{decoder_layer_pallas.9} parent=75 // pred_fallthru
          _
        // Predicated region
        $region81: #{decoder_layer_pallas.9} parent=75 // pred_check
          %p569 = pneg %p278
        $region82: #{decoder_layer_pallas.9} parent=75 // pred_check_branch
          %571 = sbr.rel (%p569) target = $region84
        $region83: #{decoder_layer_pallas.9} parent=75 // pred_region
          %p572 = scmp.lt.s32.totalorder %s25, 1
          %s573 = scalar_select %p572, %s25, 1
          %s574 = smul.addr %s573, 8
          %s575 = scalar_lea.vmem %s10, %s574
        $region84: #{decoder_layer_pallas.9} parent=75 // pred_fallthru
          _
      $region76: #{decoder_layer_pallas.9} parent=5 // pred_fallthru
        _
    $region6: #{decoder_layer_pallas.9} parent=1 // loop_footer
      %s23 = sadd.s32 1, %s19
    $region7: #{decoder_layer_pallas.9} parent=1 // loop_footer_branch
      %18 = sbr.rel target = $region3
    $region8: #{decoder_layer_pallas.9} parent=1 // loop_exit
      _
    %576 = vsyncpa [#allocation3], 1
    %s577 = scalar_lea.sflag [#allocation3], 1
    %578 = vsyncpa %s577, 1
    %579 = vsyncpa [#allocation5], 1

// kernel: decoder_layer_pallas.12
$region0: #{decoder_layer_pallas.12}
  #allocation0 [shape = 'u32[]', space=smem, size = 0x4, offset = 0x4, fixed_abs, tag = 'smem constant byte address 0x4 - core index']
  #allocation1 [shape = 'u32[72,128]{1,0:T(1,128)}', space=vmem, size = 0x9000, scoped, tag = 'internal scratch']
  %s0 = inlined_call_operand.vmem [shape: f32[16,32], index: 0, kind: input, shape index: {}]
  %s1 = inlined_call_operand.hbm [shape: f32[32,32], index: 1, kind: input, shape index: {}]
  %s2 = inlined_call_operand.vmem [shape: f32[1,32], index: 2, kind: input, shape index: {}]
  %s3 = inlined_call_operand.vmem [shape: f32[16,32], index: 3, kind: input, shape index: {}]
  %s4 = inlined_call_operand.vmem [shape: f32[1,32], index: 4, kind: input, shape index: {}]
  %s5 = inlined_call_operand.vmem [shape: f32[1,32], index: 5, kind: input, shape index: {}]
  %s6 = inlined_call_operand.vmem [shape: f32[16,32], index: 6, kind: output, shape index: {}]
  %s7 = sld [smem:[#allocation0]]
  $region61: #{decoder_layer_pallas.12} parent=0
    _
  %s9 = ssub.s32 1, %s7
  %s10 = scalar_select 0, %s9, %s7
  $region1: #{decoder_layer_pallas.12} parent=0
    #allocation2 [shape = 'u8[16384]{0}', space=vmem, size = 0x4000, scoped, tag = 'input window, operand 1, single buffered']
    #allocation3 [shape = 's32[2]{0}', space=sflag, size = 0x8, scoped, tag = 'scoped memory for decoder_layer_pallas.12']
    %11 = vsyncpa [#allocation3], 0
    loop: start=0, step=1, limit=4
    $region2: #{decoder_layer_pallas.12} parent=1 // loop_pre_header
      _
    $region3: #{decoder_layer_pallas.12} parent=1 // loop_header
      %s13 = sphi 0, %s17
      %p14 = scmp.ge.s32.totalorder %s13, 4
      %s23 = sphi 0, %s25
      %s26 = sphi 0, %s23
      %s27 = sphi 0, %s26
      %s43 = sphi 0, %s27
      %s47 = sphi 0, %s47
      %s49 = sphi 0, %s47
      %s50 = sphi 0, %s49
      %s64 = sphi 0, %s50
      %s68 = sphi 0, %s68
      %s70 = sphi 0, %s68
      %s71 = sphi 0, %s70
      %s85 = sphi 0, %s71
      %s91 = sphi 0, %s93
      %s94 = sphi 0, %s91
      %s95 = sphi 0, %s94
      %s111 = sphi 0, %s95
      %s115 = sphi 0, %s115
      %s117 = sphi 0, %s115
      %s118 = sphi 0, %s117
      %s132 = sphi 0, %s118
      %s136 = sphi 0, %s136
      %s138 = sphi 0, %s136
      %s139 = sphi 0, %s138
      %s153 = sphi 0, %s139
      %s159 = sphi 0, %s161
      %s162 = sphi 0, %s159
      %s163 = sphi 0, %s162
      %s179 = sphi 0, %s163
    $region4: #{decoder_layer_pallas.12} parent=1 // loop_header_branch
      %16 = sbr.rel (%p14) target = $region8
    $region5: #{decoder_layer_pallas.12} parent=1 // loop_body
      %s18 = ssub.s32 %s13, 1
      %s19 = ssub.s32 %s13, 2
      %s20 = sadd.s32 %s13, 1
      %s21 = ssub.s32 %s13, %s20
      %p22 = scmp.eq.s32.totalorder %s21, 0
      %s24 = sadd.s32 %s23, 1
      %s25 = scalar_select %p22, %s23, %s24
      %p28 = pneg %p22
      %p29 = scmp.eq.s32.totalorder %s13, 1
      %p30 = por %p28, %p29
      %p31 = scmp.ne.s32.totalorder %s23, %s26
      %p32 = scmp.eq.s32.totalorder %s13, 0
      %p33 = por %p31, %p32
      %p34 = scmp.ne.s32.totalorder %s23, %s26
      %p35 = scmp.eq.s32.totalorder %s18, 1
      %p36 = por %p34, %p35
      %p37 = scmp.ne.s32.totalorder %s26, %s27
      %p38 = scmp.eq.s32.totalorder %s18, 0
      %p39 = por %p37, %p38
      %p40 = scmp.ne.s32.totalorder %s26, %s27
      %p41 = scmp.eq.s32.totalorder %s19, 1
      %p42 = por %p40, %p41
      %p44 = scmp.ne.s32.totalorder %s27, %s43
      %p45 = scmp.eq.s32.totalorder %s19, 0
      %p46 = por %p44, %p45
      %s48 = sadd.s32 %s47, 1
      %p51 = scmp.eq.s32.totalorder %s13, 1
      %p52 = scmp.ne.s32.totalorder %s47, %s49
      %p53 = scmp.eq.s32.totalorder %s13, 0
      %p54 = por %p52, %p53
      %p55 = scmp.ne.s32.totalorder %s47, %s49
      %p56 = scmp.eq.s32.totalorder %s18, 1
      %p57 = por %p55, %p56
      %p58 = scmp.ne.s32.totalorder %s49, %s50
      %p59 = scmp.eq.s32.totalorder %s18, 0
      %p60 = por %p58, %p59
      %p61 = scmp.ne.s32.totalorder %s49, %s50
      %p62 = scmp.eq.s32.totalorder %s19, 1
      %p63 = por %p61, %p62
      %p65 = scmp.ne.s32.totalorder %s50, %s64
      %p66 = scmp.eq.s32.totalorder %s19, 0
      %p67 = por %p65, %p66
      %s69 = sadd.s32 %s68, 1
      %p72 = scmp.eq.s32.totalorder %s13, 1
      %p73 = scmp.ne.s32.totalorder %s68, %s70
      %p74 = scmp.eq.s32.totalorder %s13, 0
      %p75 = por %p73, %p74
      %p76 = scmp.ne.s32.totalorder %s68, %s70
      %p77 = scmp.eq.s32.totalorder %s18, 1
      %p78 = por %p76, %p77
      %p79 = scmp.ne.s32.totalorder %s70, %s71
      %p80 = scmp.eq.s32.totalorder %s18, 0
      %p81 = por %p79, %p80
      %p82 = scmp.ne.s32.totalorder %s70, %s71
      %p83 = scmp.eq.s32.totalorder %s19, 1
      %p84 = por %p82, %p83
      %p86 = scmp.ne.s32.totalorder %s71, %s85
      %p87 = scmp.eq.s32.totalorder %s19, 0
      %p88 = por %p86, %p87
      %s89 = ssub.s32 %s13, %s20
      %p90 = scmp.eq.s32.totalorder %s89, 0
      %s92 = sadd.s32 %s91, 1
      %s93 = scalar_select %p90, %s91, %s92
      %p96 = pneg %p90
      %p97 = scmp.eq.s32.totalorder %s13, 1
      %p98 = por %p96, %p97
      %p99 = scmp.ne.s32.totalorder %s91, %s94
      %p100 = scmp.eq.s32.totalorder %s13, 0
      %p101 = por %p99, %p100
      %p102 = scmp.ne.s32.totalorder %s91, %s94
      %p103 = scmp.eq.s32.totalorder %s18, 1
      %p104 = por %p102, %p103
      %p105 = scmp.ne.s32.totalorder %s94, %s95
      %p106 = scmp.eq.s32.totalorder %s18, 0
      %p107 = por %p105, %p106
      %p108 = scmp.ne.s32.totalorder %s94, %s95
      %p109 = scmp.eq.s32.totalorder %s19, 1
      %p110 = por %p108, %p109
      %p112 = scmp.ne.s32.totalorder %s95, %s111
      %p113 = scmp.eq.s32.totalorder %s19, 0
      %p114 = por %p112, %p113
      %s116 = sadd.s32 %s115, 1
      %p119 = scmp.eq.s32.totalorder %s13, 1
      %p120 = scmp.ne.s32.totalorder %s115, %s117
      %p121 = scmp.eq.s32.totalorder %s13, 0
      %p122 = por %p120, %p121
      %p123 = scmp.ne.s32.totalorder %s115, %s117
      %p124 = scmp.eq.s32.totalorder %s18, 1
      %p125 = por %p123, %p124
      %p126 = scmp.ne.s32.totalorder %s117, %s118
      %p127 = scmp.eq.s32.totalorder %s18, 0
      %p128 = por %p126, %p127
      %p129 = scmp.ne.s32.totalorder %s117, %s118
      %p130 = scmp.eq.s32.totalorder %s19, 1
      %p131 = por %p129, %p130
      %p133 = scmp.ne.s32.totalorder %s118, %s132
      %p134 = scmp.eq.s32.totalorder %s19, 0
      %p135 = por %p133, %p134
      %s137 = sadd.s32 %s136, 1
      %p140 = scmp.eq.s32.totalorder %s13, 1
      %p141 = scmp.ne.s32.totalorder %s136, %s138
      %p142 = scmp.eq.s32.totalorder %s13, 0
      %p143 = por %p141, %p142
      %p144 = scmp.ne.s32.totalorder %s136, %s138
      %p145 = scmp.eq.s32.totalorder %s18, 1
      %p146 = por %p144, %p145
      %p147 = scmp.ne.s32.totalorder %s138, %s139
      %p148 = scmp.eq.s32.totalorder %s18, 0
      %p149 = por %p147, %p148
      %p150 = scmp.ne.s32.totalorder %s138, %s139
      %p151 = scmp.eq.s32.totalorder %s19, 1
      %p152 = por %p150, %p151
      %p154 = scmp.ne.s32.totalorder %s139, %s153
      %p155 = scmp.eq.s32.totalorder %s19, 0
      %p156 = por %p154, %p155
      %s157 = ssub.s32 %s13, %s20
      %p158 = scmp.eq.s32.totalorder %s157, 0
      %s160 = sadd.s32 %s159, 1
      %s161 = scalar_select %p158, %s159, %s160
      %p164 = pneg %p158
      %p165 = scmp.eq.s32.totalorder %s13, 1
      %p166 = por %p164, %p165
      %p167 = scmp.ne.s32.totalorder %s159, %s162
      %p168 = scmp.eq.s32.totalorder %s13, 0
      %p169 = por %p167, %p168
      %p170 = scmp.ne.s32.totalorder %s159, %s162
      %p171 = scmp.eq.s32.totalorder %s18, 1
      %p172 = por %p170, %p171
      %p173 = scmp.ne.s32.totalorder %s162, %s163
      %p174 = scmp.eq.s32.totalorder %s18, 0
      %p175 = por %p173, %p174
      %p176 = scmp.ne.s32.totalorder %s162, %s163
      %p177 = scmp.eq.s32.totalorder %s19, 1
      %p178 = por %p176, %p177
      %p180 = scmp.ne.s32.totalorder %s163, %s179
      %p181 = scmp.eq.s32.totalorder %s19, 0
      %p182 = por %p180, %p181
      %p183 = scmp.le.s32.totalorder 1, %s13
      %p184 = scmp.lt.s32.totalorder %s13, 3
      %p185 = pnand %p183, %p184
      %p186 = pneg %p185
      // Predicated region
      $region9: #{decoder_layer_pallas.12} parent=5 // pred_check
        _
      $region10: #{decoder_layer_pallas.12} parent=5 // pred_check_branch
        %188 = sbr.rel (%p185) target = $region12
      $region11: #{decoder_layer_pallas.12} parent=5 // pred_region
        %s189 = ssub.s32 %s13, 1
        // Predicated region
        $region13: #{decoder_layer_pallas.12} parent=11 // pred_check
          %p190 = pneg %p60
        $region14: #{decoder_layer_pallas.12} parent=11 // pred_check_branch
          %192 = sbr.rel (%p190) target = $region16
        $region15: #{decoder_layer_pallas.12} parent=11 // pred_region
          %194 = vsyncadd [#allocation3], 0
          %s195 = sshll.u32 %s1, 4
          %s196 = int_to_ptr.hbm [resolvable:$true] %s195
          %s197 = sshll.u32 [#allocation2], 4
          %s198 = int_to_ptr.vmem [resolvable:$true] %s197
          %203 = dma.hbm_to_vmem [thread:$0]  %s196, 512, %s198, [#allocation3], 128, 128, 8
        $region16: #{decoder_layer_pallas.12} parent=11 // pred_fallthru
          _
        // Predicated region
        $region17: #{decoder_layer_pallas.12} parent=11 // pred_check
          %p204 = pneg %p81
        $region18: #{decoder_layer_pallas.12} parent=11 // pred_check_branch
          %206 = sbr.rel (%p204) target = $region20
        $region19: #{decoder_layer_pallas.12} parent=11 // pred_region
          _
        $region20: #{decoder_layer_pallas.12} parent=11 // pred_fallthru
          _
        // Predicated region
        $region21: #{decoder_layer_pallas.12} parent=11 // pred_check
          %p207 = pneg %p128
        $region22: #{decoder_layer_pallas.12} parent=11 // pred_check_branch
          %209 = sbr.rel (%p207) target = $region24
        $region23: #{decoder_layer_pallas.12} parent=11 // pred_region
          _
        $region24: #{decoder_layer_pallas.12} parent=11 // pred_fallthru
          _
        // Predicated region
        $region25: #{decoder_layer_pallas.12} parent=11 // pred_check
          %p210 = pneg %p149
        $region26: #{decoder_layer_pallas.12} parent=11 // pred_check_branch
          %212 = sbr.rel (%p210) target = $region28
        $region27: #{decoder_layer_pallas.12} parent=11 // pred_region
          _
        $region28: #{decoder_layer_pallas.12} parent=11 // pred_fallthru
          _
      $region12: #{decoder_layer_pallas.12} parent=5 // pred_fallthru
        _
      %p213 = scmp.lt.s32.totalorder %s13, 2
      // Predicated region
      $region29: #{decoder_layer_pallas.12} parent=5 // pred_check
        %p214 = pneg %p213
      $region30: #{decoder_layer_pallas.12} parent=5 // pred_check_branch
        %216 = sbr.rel (%p214) target = $region32
      $region31: #{decoder_layer_pallas.12} parent=5 // pred_region
        // Predicated region
        $region33: #{decoder_layer_pallas.12} parent=31 // pred_check
          %p217 = pneg %p33
        $region34: #{decoder_layer_pallas.12} parent=31 // pred_check_branch
          %219 = sbr.rel (%p217) target = $region36
        $region35: #{decoder_layer_pallas.12} parent=31 // pred_region
          %p220 = scmp.lt.s32.totalorder %s13, 1
          %s221 = scalar_select %p220, %s13, 1
          %s222 = smul.addr %s221, 8
          %s223 = scalar_lea.vmem %s0, %s222
        $region36: #{decoder_layer_pallas.12} parent=31 // pred_fallthru
          _
        // Predicated region
        $region37: #{decoder_layer_pallas.12} parent=31 // pred_check
          %p224 = pneg %p101
        $region38: #{decoder_layer_pallas.12} parent=31 // pred_check_branch
          %226 = sbr.rel (%p224) target = $region40
        $region39: #{decoder_layer_pallas.12} parent=31 // pred_region
          %p227 = scmp.lt.s32.totalorder %s13, 1
          %s228 = scalar_select %p227, %s13, 1
          %s229 = smul.addr %s228, 8
          %s230 = scalar_lea.vmem %s3, %s229
        $region40: #{decoder_layer_pallas.12} parent=31 // pred_fallthru
          _
      $region32: #{decoder_layer_pallas.12} parent=5 // pred_fallthru
        _
      %p231 = scmp.le.s32.totalorder 1, %s13
      %p232 = scmp.lt.s32.totalorder %s13, 3
      %p233 = pnand %p231, %p232
      %p234 = pneg %p233
      // Predicated region
      $region41: #{decoder_layer_pallas.12} parent=5 // pred_check
        _
      $region42: #{decoder_layer_pallas.12} parent=5 // pred_check_branch
        %236 = sbr.rel (%p233) target = $region44
      $region43: #{decoder_layer_pallas.12} parent=5 // pred_region
        %s237 = ssub.s32 %s13, 1
        // Predicated region
        $region45: #{decoder_layer_pallas.12} parent=43 // pred_check
          %p238 = pneg %p60
        $region46: #{decoder_layer_pallas.12} parent=43 // pred_check_branch
          %240 = sbr.rel (%p238) target = $region48
        $region47: #{decoder_layer_pallas.12} parent=43 // pred_region
          %242 = dma.done [#allocation3], 512
        $region48: #{decoder_layer_pallas.12} parent=43 // pred_fallthru
          _
        %p243 = scmp.lt.s32.totalorder %s18, 1
        %s244 = scalar_select %p243, %s18, 1
        %s245 = smul.addr %s244, 8
        %s246 = scalar_lea.vmem %s0, %s245
        %p247 = pneg %p39
        %p248 = pneg %p36
        %p249 = pneg %p60
        %p250 = pneg %p57
        %p251 = pneg %p81
        %p252 = pneg %p78
        %p253 = scmp.lt.s32.totalorder %s18, 1
        %s254 = scalar_select %p253, %s18, 1
        %s255 = smul.addr %s254, 8
        %s256 = scalar_lea.vmem %s3, %s255
        %p257 = pneg %p107
        %p258 = pneg %p104
        %p259 = pneg %p128
        %p260 = pneg %p125
        %p261 = pneg %p149
        %p262 = pneg %p146
        %p263 = pneg %p175
        %p264 = pneg %p172
        %p265 = scmp.lt.s32.totalorder %s18, 1
        %s266 = scalar_select %p265, %s18, 1
        %s267 = smul.addr %s266, 8
        %s268 = scalar_lea.vmem %s6, %s267
        %p269 = scmp.lt.s32.totalorder %s18, 1
        %s270 = scalar_select %p269, %s18, 1
        %s271 = smul.addr %s270, 8
        %s272 = scalar_lea.vmem %s0, %s271
        %p273 = scmp.lt.s32.totalorder %s18, 1
        %s274 = scalar_select %p273, %s18, 1
        %s275 = smul.addr %s274, 8
        %s276 = scalar_lea.vmem %s3, %s275
        %p277 = scmp.lt.s32.totalorder %s18, 1
        %s278 = scalar_select %p277, %s18, 1
        %s279 = smul.addr %s278, 8
        %s280 = scalar_lea.vmem %s6, %s279
        %v281 = vld [vmem:[%s272] sm:$0xff]
        %v282 = vld [vmem:[#allocation2] sm:$0xff]
        %v283 = vld [vmem:[#allocation2 + $0x8] sm:$0xff]
        %v284 = vld [vmem:[#allocation2 + $0x10] sm:$0xff]
        %v285 = vld [vmem:[#allocation2 + $0x18] sm:$0xff]
        %v286 = vld [vmem:[%s2] sm:$0x1]
        %v288 = vperm.slane %v286, 0
        %vm290 = vcmask 261120
        %v292 = vsel %vm290, %v281, 0
        %294 = vmatpush.msra.mxu0 0.0
        %295 = vmatpush.msra.mxu0 0.0
        %296 = vmatpush.msra.mxu0 0.0
        %297 = vmatpush.msra.mxu0 0.0
        %298 = vmatpush.msra.mxu0 0.0
        %299 = vmatpush.msra.mxu0 0.0
        %300 = vmatpush.msra.mxu0 0.0
        %301 = vmatpush.msra.mxu0 0.0
        %302 = vmatpush.msra.mxu0 0.0
        %303 = vmatpush.msra.mxu0 0.0
        %304 = vmatpush.msra.mxu0 0.0
        %305 = vmatpush.msra.mxu0 0.0
        %306 = vmatpush.msra.mxu0 %v285
        %307 = vmatpush.msra.mxu0 %v284
        %308 = vmatpush.msra.mxu0 %v283
        %309 = vmatpush.msra.mxu0 %v282
        %310 = vmatmul.f32.gmra.mxu0 %v292
        %v311 = vpop.f32.mrf.mxu0
        %v312 = vadd.f32 %v288, %v311
        %313 = vdwg.mxu0
        %v314 = vld [vmem:[%s276] sm:$0xff]
        %v315 = vadd.f32 %v312, %v314
        %v316 = vld [vmem:[%s4] sm:$0x1]
        %v317 = vld [vmem:[%s5] sm:$0x1]
        %v318 = vsel %vm290, %v315, 0.0
        %319 = vadd.xlane.f32.xlu0 %v318
        %v320 = vpop.xlane.xlu0 %319
        %v321 = vrcp.pop 32.0
        %v322 = vmul.f32 32.0, %v321
        %v323 = vsub.f32 1.0, %v322
        %v324 = vmul.f32 %v321, %v323
        %v325 = vadd.f32 %v321, %v324
        %vm326 = vweird.f32 %v321
        %v327 = vsel %vm326, %v321, %v325
        %v328 = vmul.f32 %v320, %v327
        %v329 = vsub.f32 %v315, %v328
        %v330 = vmul.f32 %v329, %v329
        %v331 = vsel %vm290, %v330, 0.0
        %332 = vadd.xlane.f32.xlu0 %v331
        %v333 = vpop.xlane.xlu0 %332
        %v334 = vmul.f32 %v333, %v327
        %v335 = vadd.f32 %v334, 1e-05
        %v336 = vrsqrt.pop %v335
        %v337 = vmul.f32 %v336, %v335
        %v338 = vmul.f32 %v337, %v336
        %v339 = vmul.f32 0.5, %v338
        %v340 = vsub.f32 1.5, %v339
        %v341 = vmul.f32 %v336, %v340
        %vm342 = vweird.f32 %v335
        %vm343 = vweird.f32 %v336
        %vm344 = vmor %vm342, %vm343
        %v345 = vsel %vm344, %v336, %v341
        %v346 = vmul.f32 %v329, %v345
        %v348 = vperm.slane %v316, 0
        %v350 = vmul.f32 %v346, %v348
        %v352 = vperm.slane %v317, 0
        %v354 = vadd.f32 %v350, %v352
        %355 = vst.msk [vmem:[%s280] sm:$0xff] %vm290, %v354
        %p356 = scmp.lt.s32.totalorder %s18, 1
        %s357 = scalar_select %p356, %s18, 1
        %s358 = smul.addr %s357, 8
        %s359 = scalar_lea.vmem %s6, %s358
        // Predicated region
        $region49: #{decoder_layer_pallas.12} parent=43 // pred_check
          %p360 = pneg %p172
        $region50: #{decoder_layer_pallas.12} parent=43 // pred_check_branch
          %362 = sbr.rel (%p360) target = $region52
        $region51: #{decoder_layer_pallas.12} parent=43 // pred_region
          _
        $region52: #{decoder_layer_pallas.12} parent=43 // pred_fallthru
          _
      $region44: #{decoder_layer_pallas.12} parent=5 // pred_fallthru
        _
      %p363 = scmp.le.s32.totalorder 2, %s13
      // Predicated region
      $region53: #{decoder_layer_pallas.12} parent=5 // pred_check
        %p364 = pneg %p363
      $region54: #{decoder_layer_pallas.12} parent=5 // pred_check_branch
        %366 = sbr.rel (%p364) target = $region56
      $region55: #{decoder_layer_pallas.12} parent=5 // pred_region
        %s367 = ssub.s32 %s13, 2
        // Predicated region
        $region57: #{decoder_layer_pallas.12} parent=55 // pred_check
          %p368 = pneg %p178
        $region58: #{decoder_layer_pallas.12} parent=55 // pred_check_branch
          %370 = sbr.rel (%p368) target = $region60
        $region59: #{decoder_layer_pallas.12} parent=55 // pred_region
          %p371 = scmp.lt.s32.totalorder %s19, 1
          %s372 = scalar_select %p371, %s19, 1
          %s373 = smul.addr %s372, 8
          %s374 = scalar_lea.vmem %s6, %s373
        $region60: #{decoder_layer_pallas.12} parent=55 // pred_fallthru
          _
      $region56: #{decoder_layer_pallas.12} parent=5 // pred_fallthru
        _
    $region6: #{decoder_layer_pallas.12} parent=1 // loop_footer
      %s17 = sadd.s32 1, %s13
    $region7: #{decoder_layer_pallas.12} parent=1 // loop_footer_branch
      %12 = sbr.rel target = $region3
    $region8: #{decoder_layer_pallas.12} parent=1 // loop_exit
      _
    %375 = vsyncpa [#allocation3], 1
    %s376 = scalar_lea.sflag [#allocation3], 1
    %377 = vsyncpa %s376, 1

// kernel: decoder_layer_pallas.13
$region0: #{decoder_layer_pallas.13}
  #allocation0 [shape = 'u32[]', space=smem, size = 0x4, offset = 0x4, fixed_abs, tag = 'smem constant byte address 0x4 - core index']
  #allocation1 [shape = 'u32[72,128]{1,0:T(1,128)}', space=vmem, size = 0x9000, scoped, tag = 'internal scratch']
  %s0 = inlined_call_operand.vmem [shape: f32[16,32], index: 0, kind: input, shape index: {}]
  %s1 = inlined_call_operand.vmem [shape: f32[32,64], index: 1, kind: input, shape index: {}]
  %s2 = inlined_call_operand.vmem [shape: f32[1,64], index: 2, kind: input, shape index: {}]
  %s3 = inlined_call_operand.vmem [shape: f32[64,32], index: 3, kind: input, shape index: {}]
  %s4 = inlined_call_operand.vmem [shape: f32[1,32], index: 4, kind: input, shape index: {}]
  %s5 = inlined_call_operand.vmem [shape: f32[1,32], index: 5, kind: input, shape index: {}]
  %s6 = inlined_call_operand.vmem [shape: f32[1,32], index: 6, kind: input, shape index: {}]
  %s7 = inlined_call_operand.vmem [shape: f32[16,32], index: 7, kind: output, shape index: {}]
  %s8 = sld [smem:[#allocation0]]
  $region61: #{decoder_layer_pallas.13} parent=0
    _
  %s10 = ssub.s32 1, %s8
  %s11 = scalar_select 0, %s10, %s8
  loop: start=0, step=1, limit=4
  $region2: #{decoder_layer_pallas.13} parent=0 // loop_pre_header
    _
  $region3: #{decoder_layer_pallas.13} parent=0 // loop_header
    %s13 = sphi 0, %s17
    %p14 = scmp.ge.s32.totalorder %s13, 4
    %s23 = sphi 0, %s25
    %s26 = sphi 0, %s23
    %s27 = sphi 0, %s26
    %s43 = sphi 0, %s27
    %s47 = sphi 0, %s47
    %s49 = sphi 0, %s47
    %s50 = sphi 0, %s49
    %s64 = sphi 0, %s50
    %s68 = sphi 0, %s68
    %s70 = sphi 0, %s68
    %s71 = sphi 0, %s70
    %s85 = sphi 0, %s71
    %s89 = sphi 0, %s89
    %s91 = sphi 0, %s89
    %s92 = sphi 0, %s91
    %s106 = sphi 0, %s92
    %s110 = sphi 0, %s110
    %s112 = sphi 0, %s110
    %s113 = sphi 0, %s112
    %s127 = sphi 0, %s113
    %s131 = sphi 0, %s131
    %s133 = sphi 0, %s131
    %s134 = sphi 0, %s133
    %s148 = sphi 0, %s134
    %s152 = sphi 0, %s152
    %s154 = sphi 0, %s152
    %s155 = sphi 0, %s154
    %s169 = sphi 0, %s155
    %s175 = sphi 0, %s177
    %s178 = sphi 0, %s175
    %s179 = sphi 0, %s178
    %s195 = sphi 0, %s179
  $region4: #{decoder_layer_pallas.13} parent=0 // loop_header_branch
    %16 = sbr.rel (%p14) target = $region8
  $region5: #{decoder_layer_pallas.13} parent=0 // loop_body
    %s18 = ssub.s32 %s13, 1
    %s19 = ssub.s32 %s13, 2
    %s20 = sadd.s32 %s13, 1
    %s21 = ssub.s32 %s13, %s20
    %p22 = scmp.eq.s32.totalorder %s21, 0
    %s24 = sadd.s32 %s23, 1
    %s25 = scalar_select %p22, %s23, %s24
    %p28 = pneg %p22
    %p29 = scmp.eq.s32.totalorder %s13, 1
    %p30 = por %p28, %p29
    %p31 = scmp.ne.s32.totalorder %s23, %s26
    %p32 = scmp.eq.s32.totalorder %s13, 0
    %p33 = por %p31, %p32
    %p34 = scmp.ne.s32.totalorder %s23, %s26
    %p35 = scmp.eq.s32.totalorder %s18, 1
    %p36 = por %p34, %p35
    %p37 = scmp.ne.s32.totalorder %s26, %s27
    %p38 = scmp.eq.s32.totalorder %s18, 0
    %p39 = por %p37, %p38
    %p40 = scmp.ne.s32.totalorder %s26, %s27
    %p41 = scmp.eq.s32.totalorder %s19, 1
    %p42 = por %p40, %p41
    %p44 = scmp.ne.s32.totalorder %s27, %s43
    %p45 = scmp.eq.s32.totalorder %s19, 0
    %p46 = por %p44, %p45
    %s48 = sadd.s32 %s47, 1
    %p51 = scmp.eq.s32.totalorder %s13, 1
    %p52 = scmp.ne.s32.totalorder %s47, %s49
    %p53 = scmp.eq.s32.totalorder %s13, 0
    %p54 = por %p52, %p53
    %p55 = scmp.ne.s32.totalorder %s47, %s49
    %p56 = scmp.eq.s32.totalorder %s18, 1
    %p57 = por %p55, %p56
    %p58 = scmp.ne.s32.totalorder %s49, %s50
    %p59 = scmp.eq.s32.totalorder %s18, 0
    %p60 = por %p58, %p59
    %p61 = scmp.ne.s32.totalorder %s49, %s50
    %p62 = scmp.eq.s32.totalorder %s19, 1
    %p63 = por %p61, %p62
    %p65 = scmp.ne.s32.totalorder %s50, %s64
    %p66 = scmp.eq.s32.totalorder %s19, 0
    %p67 = por %p65, %p66
    %s69 = sadd.s32 %s68, 1
    %p72 = scmp.eq.s32.totalorder %s13, 1
    %p73 = scmp.ne.s32.totalorder %s68, %s70
    %p74 = scmp.eq.s32.totalorder %s13, 0
    %p75 = por %p73, %p74
    %p76 = scmp.ne.s32.totalorder %s68, %s70
    %p77 = scmp.eq.s32.totalorder %s18, 1
    %p78 = por %p76, %p77
    %p79 = scmp.ne.s32.totalorder %s70, %s71
    %p80 = scmp.eq.s32.totalorder %s18, 0
    %p81 = por %p79, %p80
    %p82 = scmp.ne.s32.totalorder %s70, %s71
    %p83 = scmp.eq.s32.totalorder %s19, 1
    %p84 = por %p82, %p83
    %p86 = scmp.ne.s32.totalorder %s71, %s85
    %p87 = scmp.eq.s32.totalorder %s19, 0
    %p88 = por %p86, %p87
    %s90 = sadd.s32 %s89, 1
    %p93 = scmp.eq.s32.totalorder %s13, 1
    %p94 = scmp.ne.s32.totalorder %s89, %s91
    %p95 = scmp.eq.s32.totalorder %s13, 0
    %p96 = por %p94, %p95
    %p97 = scmp.ne.s32.totalorder %s89, %s91
    %p98 = scmp.eq.s32.totalorder %s18, 1
    %p99 = por %p97, %p98
    %p100 = scmp.ne.s32.totalorder %s91, %s92
    %p101 = scmp.eq.s32.totalorder %s18, 0
    %p102 = por %p100, %p101
    %p103 = scmp.ne.s32.totalorder %s91, %s92
    %p104 = scmp.eq.s32.totalorder %s19, 1
    %p105 = por %p103, %p104
    %p107 = scmp.ne.s32.totalorder %s92, %s106
    %p108 = scmp.eq.s32.totalorder %s19, 0
    %p109 = por %p107, %p108
    %s111 = sadd.s32 %s110, 1
    %p114 = scmp.eq.s32.totalorder %s13, 1
    %p115 = scmp.ne.s32.totalorder %s110, %s112
    %p116 = scmp.eq.s32.totalorder %s13, 0
    %p117 = por %p115, %p116
    %p118 = scmp.ne.s32.totalorder %s110, %s112
    %p119 = scmp.eq.s32.totalorder %s18, 1
    %p120 = por %p118, %p119
    %p121 = scmp.ne.s32.totalorder %s112, %s113
    %p122 = scmp.eq.s32.totalorder %s18, 0
    %p123 = por %p121, %p122
    %p124 = scmp.ne.s32.totalorder %s112, %s113
    %p125 = scmp.eq.s32.totalorder %s19, 1
    %p126 = por %p124, %p125
    %p128 = scmp.ne.s32.totalorder %s113, %s127
    %p129 = scmp.eq.s32.totalorder %s19, 0
    %p130 = por %p128, %p129
    %s132 = sadd.s32 %s131, 1
    %p135 = scmp.eq.s32.totalorder %s13, 1
    %p136 = scmp.ne.s32.totalorder %s131, %s133
    %p137 = scmp.eq.s32.totalorder %s13, 0
    %p138 = por %p136, %p137
    %p139 = scmp.ne.s32.totalorder %s131, %s133
    %p140 = scmp.eq.s32.totalorder %s18, 1
    %p141 = por %p139, %p140
    %p142 = scmp.ne.s32.totalorder %s133, %s134
    %p143 = scmp.eq.s32.totalorder %s18, 0
    %p144 = por %p142, %p143
    %p145 = scmp.ne.s32.totalorder %s133, %s134
    %p146 = scmp.eq.s32.totalorder %s19, 1
    %p147 = por %p145, %p146
    %p149 = scmp.ne.s32.totalorder %s134, %s148
    %p150 = scmp.eq.s32.totalorder %s19, 0
    %p151 = por %p149, %p150
    %s153 = sadd.s32 %s152, 1
    %p156 = scmp.eq.s32.totalorder %s13, 1
    %p157 = scmp.ne.s32.totalorder %s152, %s154
    %p158 = scmp.eq.s32.totalorder %s13, 0
    %p159 = por %p157, %p158
    %p160 = scmp.ne.s32.totalorder %s152, %s154
    %p161 = scmp.eq.s32.totalorder %s18, 1
    %p162 = por %p160, %p161
    %p163 = scmp.ne.s32.totalorder %s154, %s155
    %p164 = scmp.eq.s32.totalorder %s18, 0
    %p165 = por %p163, %p164
    %p166 = scmp.ne.s32.totalorder %s154, %s155
    %p167 = scmp.eq.s32.totalorder %s19, 1
    %p168 = por %p166, %p167
    %p170 = scmp.ne.s32.totalorder %s155, %s169
    %p171 = scmp.eq.s32.totalorder %s19, 0
    %p172 = por %p170, %p171
    %s173 = ssub.s32 %s13, %s20
    %p174 = scmp.eq.s32.totalorder %s173, 0
    %s176 = sadd.s32 %s175, 1
    %s177 = scalar_select %p174, %s175, %s176
    %p180 = pneg %p174
    %p181 = scmp.eq.s32.totalorder %s13, 1
    %p182 = por %p180, %p181
    %p183 = scmp.ne.s32.totalorder %s175, %s178
    %p184 = scmp.eq.s32.totalorder %s13, 0
    %p185 = por %p183, %p184
    %p186 = scmp.ne.s32.totalorder %s175, %s178
    %p187 = scmp.eq.s32.totalorder %s18, 1
    %p188 = por %p186, %p187
    %p189 = scmp.ne.s32.totalorder %s178, %s179
    %p190 = scmp.eq.s32.totalorder %s18, 0
    %p191 = por %p189, %p190
    %p192 = scmp.ne.s32.totalorder %s178, %s179
    %p193 = scmp.eq.s32.totalorder %s19, 1
    %p194 = por %p192, %p193
    %p196 = scmp.ne.s32.totalorder %s179, %s195
    %p197 = scmp.eq.s32.totalorder %s19, 0
    %p198 = por %p196, %p197
    %p199 = scmp.le.s32.totalorder 1, %s13
    %p200 = scmp.lt.s32.totalorder %s13, 3
    %p201 = pnand %p199, %p200
    %p202 = pneg %p201
    // Predicated region
    $region9: #{decoder_layer_pallas.13} parent=5 // pred_check
      _
    $region10: #{decoder_layer_pallas.13} parent=5 // pred_check_branch
      %204 = sbr.rel (%p201) target = $region12
    $region11: #{decoder_layer_pallas.13} parent=5 // pred_region
      %s205 = ssub.s32 %s13, 1
      // Predicated region
      $region13: #{decoder_layer_pallas.13} parent=11 // pred_check
        %p206 = pneg %p60
      $region14: #{decoder_layer_pallas.13} parent=11 // pred_check_branch
        %208 = sbr.rel (%p206) target = $region16
      $region15: #{decoder_layer_pallas.13} parent=11 // pred_region
        _
      $region16: #{decoder_layer_pallas.13} parent=11 // pred_fallthru
        _
      // Predicated region
      $region17: #{decoder_layer_pallas.13} parent=11 // pred_check
        %p209 = pneg %p81
      $region18: #{decoder_layer_pallas.13} parent=11 // pred_check_branch
        %211 = sbr.rel (%p209) target = $region20
      $region19: #{decoder_layer_pallas.13} parent=11 // pred_region
        _
      $region20: #{decoder_layer_pallas.13} parent=11 // pred_fallthru
        _
      // Predicated region
      $region21: #{decoder_layer_pallas.13} parent=11 // pred_check
        %p212 = pneg %p102
      $region22: #{decoder_layer_pallas.13} parent=11 // pred_check_branch
        %214 = sbr.rel (%p212) target = $region24
      $region23: #{decoder_layer_pallas.13} parent=11 // pred_region
        _
      $region24: #{decoder_layer_pallas.13} parent=11 // pred_fallthru
        _
      // Predicated region
      $region25: #{decoder_layer_pallas.13} parent=11 // pred_check
        %p215 = pneg %p123
      $region26: #{decoder_layer_pallas.13} parent=11 // pred_check_branch
        %217 = sbr.rel (%p215) target = $region28
      $region27: #{decoder_layer_pallas.13} parent=11 // pred_region
        _
      $region28: #{decoder_layer_pallas.13} parent=11 // pred_fallthru
        _
      // Predicated region
      $region29: #{decoder_layer_pallas.13} parent=11 // pred_check
        %p218 = pneg %p144
      $region30: #{decoder_layer_pallas.13} parent=11 // pred_check_branch
        %220 = sbr.rel (%p218) target = $region32
      $region31: #{decoder_layer_pallas.13} parent=11 // pred_region
        _
      $region32: #{decoder_layer_pallas.13} parent=11 // pred_fallthru
        _
      // Predicated region
      $region33: #{decoder_layer_pallas.13} parent=11 // pred_check
        %p221 = pneg %p165
      $region34: #{decoder_layer_pallas.13} parent=11 // pred_check_branch
        %223 = sbr.rel (%p221) target = $region36
      $region35: #{decoder_layer_pallas.13} parent=11 // pred_region
        _
      $region36: #{decoder_layer_pallas.13} parent=11 // pred_fallthru
        _
    $region12: #{decoder_layer_pallas.13} parent=5 // pred_fallthru
      _
    %p224 = scmp.lt.s32.totalorder %s13, 2
    // Predicated region
    $region37: #{decoder_layer_pallas.13} parent=5 // pred_check
      %p225 = pneg %p224
    $region38: #{decoder_layer_pallas.13} parent=5 // pred_check_branch
      %227 = sbr.rel (%p225) target = $region40
    $region39: #{decoder_layer_pallas.13} parent=5 // pred_region
      // Predicated region
      $region41: #{decoder_layer_pallas.13} parent=39 // pred_check
        %p228 = pneg %p33
      $region42: #{decoder_layer_pallas.13} parent=39 // pred_check_branch
        %230 = sbr.rel (%p228) target = $region44
      $region43: #{decoder_layer_pallas.13} parent=39 // pred_region
        %p231 = scmp.lt.s32.totalorder %s13, 1
        %s232 = scalar_select %p231, %s13, 1
        %s233 = smul.addr %s232, 8
        %s234 = scalar_lea.vmem %s0, %s233
      $region44: #{decoder_layer_pallas.13} parent=39 // pred_fallthru
        _
    $region40: #{decoder_layer_pallas.13} parent=5 // pred_fallthru
      _
    %p235 = scmp.le.s32.totalorder 1, %s13
    %p236 = scmp.lt.s32.totalorder %s13, 3
    %p237 = pnand %p235, %p236
    %p238 = pneg %p237
    // Predicated region
    $region45: #{decoder_layer_pallas.13} parent=5 // pred_check
      _
    $region46: #{decoder_layer_pallas.13} parent=5 // pred_check_branch
      %240 = sbr.rel (%p237) target = $region48
    $region47: #{decoder_layer_pallas.13} parent=5 // pred_region
      %s241 = ssub.s32 %s13, 1
      %p242 = scmp.lt.s32.totalorder %s18, 1
      %s243 = scalar_select %p242, %s18, 1
      %s244 = smul.addr %s243, 8
      %s245 = scalar_lea.vmem %s0, %s244
      %p246 = pneg %p39
      %p247 = pneg %p36
      %p248 = pneg %p60
      %p249 = pneg %p57
      %p250 = pneg %p81
      %p251 = pneg %p78
      %p252 = pneg %p102
      %p253 = pneg %p99
      %p254 = pneg %p123
      %p255 = pneg %p120
      %p256 = pneg %p144
      %p257 = pneg %p141
      %p258 = pneg %p165
      %p259 = pneg %p162
      %p260 = pneg %p191
      %p261 = pneg %p188
      %p262 = scmp.lt.s32.totalorder %s18, 1
      %s263 = scalar_select %p262, %s18, 1
      %s264 = smul.addr %s263, 8
      %s265 = scalar_lea.vmem %s7, %s264
      %p266 = scmp.lt.s32.totalorder %s18, 1
      %s267 = scalar_select %p266, %s18, 1
      %s268 = smul.addr %s267, 8
      %s269 = scalar_lea.vmem %s0, %s268
      %p270 = scmp.lt.s32.totalorder %s18, 1
      %s271 = scalar_select %p270, %s18, 1
      %s272 = smul.addr %s271, 8
      %s273 = scalar_lea.vmem %s7, %s272
      %v274 = vld [vmem:[%s269] sm:$0xff]
      %v275 = vld [vmem:[%s1] sm:$0xff]
      %v276 = vld [vmem:[%s1 + $0x8] sm:$0xff]
      %v277 = vld [vmem:[%s1 + $0x10] sm:$0xff]
      %v278 = vld [vmem:[%s1 + $0x18] sm:$0xff]
      %v279 = vld [vmem:[%s2] sm:$0x1]
      %v281 = vperm.slane %v279, 0
      %vm283 = vcmask 261120
      %v285 = vsel %vm283, %v274, 0
      %287 = vmatpush.msra.mxu0 0.0
      %288 = vmatpush.msra.mxu0 0.0
      %289 = vmatpush.msra.mxu0 0.0
      %290 = vmatpush.msra.mxu0 0.0
      %291 = vmatpush.msra.mxu0 0.0
      %292 = vmatpush.msra.mxu0 0.0
      %293 = vmatpush.msra.mxu0 0.0
      %294 = vmatpush.msra.mxu0 0.0
      %295 = vmatpush.msra.mxu0 0.0
      %296 = vmatpush.msra.mxu0 0.0
      %297 = vmatpush.msra.mxu0 0.0
      %298 = vmatpush.msra.mxu0 0.0
      %299 = vmatpush.msra.mxu0 %v278
      %300 = vmatpush.msra.mxu0 %v277
      %301 = vmatpush.msra.mxu0 %v276
      %302 = vmatpush.msra.mxu0 %v275
      %303 = vmatmul.f32.gmra.mxu0 %v285
      %v304 = vpop.f32.mrf.mxu0
      %v305 = vadd.f32 %v281, %v304
      %306 = vdwg.mxu0
      %v307 = vmax.f32 %v305, 0.0
      %v308 = vld [vmem:[%s3] sm:$0xff]
      %v309 = vld [vmem:[%s3 + $0x8] sm:$0xff]
      %v310 = vld [vmem:[%s3 + $0x10] sm:$0xff]
      %v311 = vld [vmem:[%s3 + $0x18] sm:$0xff]
      %v312 = vld [vmem:[%s3 + $0x20] sm:$0xff]
      %v313 = vld [vmem:[%s3 + $0x28] sm:$0xff]
      %v314 = vld [vmem:[%s3 + $0x30] sm:$0xff]
      %v315 = vld [vmem:[%s3 + $0x38] sm:$0xff]
      %v316 = vld [vmem:[%s4] sm:$0x1]
      %v318 = vperm.slane %v316, 0
      %vm320 = vcmask 523264
      %v322 = vsel %vm320, %v307, 0
      %324 = vmatpush.msra.mxu0 0.0
      %325 = vmatpush.msra.mxu0 0.0
      %326 = vmatpush.msra.mxu0 0.0
      %327 = vmatpush.msra.mxu0 0.0
      %328 = vmatpush.msra.mxu0 0.0
      %329 = vmatpush.msra.mxu0 0.0
      %330 = vmatpush.msra.mxu0 0.0
      %331 = vmatpush.msra.mxu0 0.0
      %332 = vmatpush.msra.mxu0 %v315
      %333 = vmatpush.msra.mxu0 %v314
      %334 = vmatpush.msra.mxu0 %v313
      %335 = vmatpush.msra.mxu0 %v312
      %336 = vmatpush.msra.mxu0 %v311
      %337 = vmatpush.msra.mxu0 %v310
      %338 = vmatpush.msra.mxu0 %v309
      %339 = vmatpush.msra.mxu0 %v308
      %340 = vmatmul.f32.gmra.mxu0 %v322
      %v341 = vpop.f32.mrf.mxu0
      %v342 = vadd.f32 %v318, %v341
      %343 = vdwg.mxu0
      %v344 = vadd.f32 %v342, %v342
      %v345 = vld [vmem:[%s5] sm:$0x1]
      %v346 = vld [vmem:[%s6] sm:$0x1]
      %v347 = vsel %vm283, %v344, 0.0
      %348 = vadd.xlane.f32.xlu0 %v347
      %v349 = vpop.xlane.xlu0 %348
      %v350 = vrcp.pop 32.0
      %v351 = vmul.f32 32.0, %v350
      %v352 = vsub.f32 1.0, %v351
      %v353 = vmul.f32 %v350, %v352
      %v354 = vadd.f32 %v350, %v353
      %vm355 = vweird.f32 %v350
      %v356 = vsel %vm355, %v350, %v354
      %v357 = vmul.f32 %v349, %v356
      %v358 = vsub.f32 %v344, %v357
      %v359 = vmul.f32 %v358, %v358
      %v360 = vsel %vm283, %v359, 0.0
      %361 = vadd.xlane.f32.xlu0 %v360
      %v362 = vpop.xlane.xlu0 %361
      %v363 = vmul.f32 %v362, %v356
      %v364 = vadd.f32 %v363, 1e-05
      %v365 = vrsqrt.pop %v364
      %v366 = vmul.f32 %v365, %v364
      %v367 = vmul.f32 %v366, %v365
      %v368 = vmul.f32 0.5, %v367
      %v369 = vsub.f32 1.5, %v368
      %v370 = vmul.f32 %v365, %v369
      %vm371 = vweird.f32 %v364
      %vm372 = vweird.f32 %v365
      %vm373 = vmor %vm371, %vm372
      %v374 = vsel %vm373, %v365, %v370
      %v375 = vmul.f32 %v358, %v374
      %v377 = vperm.slane %v345, 0
      %v379 = vmul.f32 %v375, %v377
      %v381 = vperm.slane %v346, 0
      %v383 = vadd.f32 %v379, %v381
      %384 = vst.msk [vmem:[%s273] sm:$0xff] %vm283, %v383
      %p385 = scmp.lt.s32.totalorder %s18, 1
      %s386 = scalar_select %p385, %s18, 1
      %s387 = smul.addr %s386, 8
      %s388 = scalar_lea.vmem %s7, %s387
      // Predicated region
      $region49: #{decoder_layer_pallas.13} parent=47 // pred_check
        %p389 = pneg %p188
      $region50: #{decoder_layer_pallas.13} parent=47 // pred_check_branch
        %391 = sbr.rel (%p389) target = $region52
      $region51: #{decoder_layer_pallas.13} parent=47 // pred_region
        _
      $region52: #{decoder_layer_pallas.13} parent=47 // pred_fallthru
        _
    $region48: #{decoder_layer_pallas.13} parent=5 // pred_fallthru
      _
    %p392 = scmp.le.s32.totalorder 2, %s13
    // Predicated region
    $region53: #{decoder_layer_pallas.13} parent=5 // pred_check
      %p393 = pneg %p392
    $region54: #{decoder_layer_pallas.13} parent=5 // pred_check_branch
      %395 = sbr.rel (%p393) target = $region56
    $region55: #{decoder_layer_pallas.13} parent=5 // pred_region
      %s396 = ssub.s32 %s13, 2
      // Predicated region
      $region57: #{decoder_layer_pallas.13} parent=55 // pred_check
        %p397 = pneg %p194
      $region58: #{decoder_layer_pallas.13} parent=55 // pred_check_branch
        %399 = sbr.rel (%p397) target = $region60
      $region59: #{decoder_layer_pallas.13} parent=55 // pred_region
        %p400 = scmp.lt.s32.totalorder %s19, 1
        %s401 = scalar_select %p400, %s19, 1
        %s402 = smul.addr %s401, 8
        %s403 = scalar_lea.vmem %s7, %s402
      $region60: #{decoder_layer_pallas.13} parent=55 // pred_fallthru
        _
    $region56: #{decoder_layer_pallas.13} parent=5 // pred_fallthru
      _
  $region6: #{decoder_layer_pallas.13} parent=0 // loop_footer
    %s17 = sadd.s32 1, %s13
  $region7: #{decoder_layer_pallas.13} parent=0 // loop_footer_branch
    %12 = sbr.rel target = $region3
  $region8: #{decoder_layer_pallas.13} parent=0 // loop_exit
    _

// kernel: decoder_layer_pallas.11
$region0: #{decoder_layer_pallas.11}
  #allocation0 [shape = 'u32[]', space=smem, size = 0x4, offset = 0x4, fixed_abs, tag = 'smem constant byte address 0x4 - core index']
  #allocation1 [shape = 'u32[72,128]{1,0:T(1,128)}', space=vmem, size = 0x9000, scoped, tag = 'internal scratch']
  %s0 = inlined_call_operand.vmem [shape: f32[16,32], index: 0, kind: input, shape index: {}]
  %s1 = inlined_call_operand.vmem [shape: f32[32,32], index: 1, kind: input, shape index: {}]
  %s2 = inlined_call_operand.vmem [shape: f32[32,32], index: 2, kind: input, shape index: {}]
  %s3 = inlined_call_operand.vmem [shape: f32[16,32], index: 3, kind: output, shape index: {}]
  %s4 = sld [smem:[#allocation0]]
  $region45: #{decoder_layer_pallas.11} parent=0
    _
  %s6 = ssub.s32 1, %s4
  %s7 = scalar_select 0, %s6, %s4
  loop: start=0, step=1, limit=4
  $region2: #{decoder_layer_pallas.11} parent=0 // loop_pre_header
    _
  $region3: #{decoder_layer_pallas.11} parent=0 // loop_header
    %s9 = sphi 0, %s13
    %p10 = scmp.ge.s32.totalorder %s9, 4
    %s19 = sphi 0, %s21
    %s22 = sphi 0, %s19
    %s23 = sphi 0, %s22
    %s39 = sphi 0, %s23
    %s45 = sphi 0, %s47
    %s48 = sphi 0, %s45
    %s49 = sphi 0, %s48
    %s65 = sphi 0, %s49
    %s71 = sphi 0, %s73
    %s74 = sphi 0, %s71
    %s75 = sphi 0, %s74
    %s91 = sphi 0, %s75
    %s97 = sphi 0, %s99
    %s100 = sphi 0, %s97
    %s101 = sphi 0, %s100
    %s117 = sphi 0, %s101
  $region4: #{decoder_layer_pallas.11} parent=0 // loop_header_branch
    %12 = sbr.rel (%p10) target = $region8
  $region5: #{decoder_layer_pallas.11} parent=0 // loop_body
    %s14 = ssub.s32 %s9, 1
    %s15 = ssub.s32 %s9, 2
    %s16 = sadd.s32 %s9, 1
    %s17 = ssub.s32 %s9, %s16
    %p18 = scmp.eq.s32.totalorder %s17, 0
    %s20 = sadd.s32 %s19, 1
    %s21 = scalar_select %p18, %s19, %s20
    %p24 = pneg %p18
    %p25 = scmp.eq.s32.totalorder %s9, 1
    %p26 = por %p24, %p25
    %p27 = scmp.ne.s32.totalorder %s19, %s22
    %p28 = scmp.eq.s32.totalorder %s9, 0
    %p29 = por %p27, %p28
    %p30 = scmp.ne.s32.totalorder %s19, %s22
    %p31 = scmp.eq.s32.totalorder %s14, 1
    %p32 = por %p30, %p31
    %p33 = scmp.ne.s32.totalorder %s22, %s23
    %p34 = scmp.eq.s32.totalorder %s14, 0
    %p35 = por %p33, %p34
    %p36 = scmp.ne.s32.totalorder %s22, %s23
    %p37 = scmp.eq.s32.totalorder %s15, 1
    %p38 = por %p36, %p37
    %p40 = scmp.ne.s32.totalorder %s23, %s39
    %p41 = scmp.eq.s32.totalorder %s15, 0
    %p42 = por %p40, %p41
    %s43 = ssub.s32 %s9, %s16
    %p44 = scmp.eq.s32.totalorder %s43, 0
    %s46 = sadd.s32 %s45, 1
    %s47 = scalar_select %p44, %s45, %s46
    %p50 = pneg %p44
    %p51 = scmp.eq.s32.totalorder %s9, 1
    %p52 = por %p50, %p51
    %p53 = scmp.ne.s32.totalorder %s45, %s48
    %p54 = scmp.eq.s32.totalorder %s9, 0
    %p55 = por %p53, %p54
    %p56 = scmp.ne.s32.totalorder %s45, %s48
    %p57 = scmp.eq.s32.totalorder %s14, 1
    %p58 = por %p56, %p57
    %p59 = scmp.ne.s32.totalorder %s48, %s49
    %p60 = scmp.eq.s32.totalorder %s14, 0
    %p61 = por %p59, %p60
    %p62 = scmp.ne.s32.totalorder %s48, %s49
    %p63 = scmp.eq.s32.totalorder %s15, 1
    %p64 = por %p62, %p63
    %p66 = scmp.ne.s32.totalorder %s49, %s65
    %p67 = scmp.eq.s32.totalorder %s15, 0
    %p68 = por %p66, %p67
    %s69 = ssub.s32 %s9, %s16
    %p70 = scmp.eq.s32.totalorder %s69, 0
    %s72 = sadd.s32 %s71, 1
    %s73 = scalar_select %p70, %s71, %s72
    %p76 = pneg %p70
    %p77 = scmp.eq.s32.totalorder %s9, 1
    %p78 = por %p76, %p77
    %p79 = scmp.ne.s32.totalorder %s71, %s74
    %p80 = scmp.eq.s32.totalorder %s9, 0
    %p81 = por %p79, %p80
    %p82 = scmp.ne.s32.totalorder %s71, %s74
    %p83 = scmp.eq.s32.totalorder %s14, 1
    %p84 = por %p82, %p83
    %p85 = scmp.ne.s32.totalorder %s74, %s75
    %p86 = scmp.eq.s32.totalorder %s14, 0
    %p87 = por %p85, %p86
    %p88 = scmp.ne.s32.totalorder %s74, %s75
    %p89 = scmp.eq.s32.totalorder %s15, 1
    %p90 = por %p88, %p89
    %p92 = scmp.ne.s32.totalorder %s75, %s91
    %p93 = scmp.eq.s32.totalorder %s15, 0
    %p94 = por %p92, %p93
    %s95 = ssub.s32 %s9, %s16
    %p96 = scmp.eq.s32.totalorder %s95, 0
    %s98 = sadd.s32 %s97, 1
    %s99 = scalar_select %p96, %s97, %s98
    %p102 = pneg %p96
    %p103 = scmp.eq.s32.totalorder %s9, 1
    %p104 = por %p102, %p103
    %p105 = scmp.ne.s32.totalorder %s97, %s100
    %p106 = scmp.eq.s32.totalorder %s9, 0
    %p107 = por %p105, %p106
    %p108 = scmp.ne.s32.totalorder %s97, %s100
    %p109 = scmp.eq.s32.totalorder %s14, 1
    %p110 = por %p108, %p109
    %p111 = scmp.ne.s32.totalorder %s100, %s101
    %p112 = scmp.eq.s32.totalorder %s14, 0
    %p113 = por %p111, %p112
    %p114 = scmp.ne.s32.totalorder %s100, %s101
    %p115 = scmp.eq.s32.totalorder %s15, 1
    %p116 = por %p114, %p115
    %p118 = scmp.ne.s32.totalorder %s101, %s117
    %p119 = scmp.eq.s32.totalorder %s15, 0
    %p120 = por %p118, %p119
    %p121 = scmp.le.s32.totalorder 1, %s9
    %p122 = scmp.lt.s32.totalorder %s9, 3
    %p123 = pnand %p121, %p122
    %p124 = pneg %p123
    // Predicated region
    $region9: #{decoder_layer_pallas.11} parent=5 // pred_check
      _
    $region10: #{decoder_layer_pallas.11} parent=5 // pred_check_branch
      %126 = sbr.rel (%p123) target = $region12
    $region11: #{decoder_layer_pallas.11} parent=5 // pred_region
      %s127 = ssub.s32 %s9, 1
    $region12: #{decoder_layer_pallas.11} parent=5 // pred_fallthru
      _
    %p128 = scmp.lt.s32.totalorder %s9, 2
    // Predicated region
    $region13: #{decoder_layer_pallas.11} parent=5 // pred_check
      %p129 = pneg %p128
    $region14: #{decoder_layer_pallas.11} parent=5 // pred_check_branch
      %131 = sbr.rel (%p129) target = $region16
    $region15: #{decoder_layer_pallas.11} parent=5 // pred_region
      // Predicated region
      $region17: #{decoder_layer_pallas.11} parent=15 // pred_check
        %p132 = pneg %p29
      $region18: #{decoder_layer_pallas.11} parent=15 // pred_check_branch
        %134 = sbr.rel (%p132) target = $region20
      $region19: #{decoder_layer_pallas.11} parent=15 // pred_region
        %p135 = scmp.lt.s32.totalorder %s9, 1
        %s136 = scalar_select %p135, %s9, 1
        %s137 = smul.addr %s136, 8
        %s138 = scalar_lea.vmem %s0, %s137
      $region20: #{decoder_layer_pallas.11} parent=15 // pred_fallthru
        _
      // Predicated region
      $region21: #{decoder_layer_pallas.11} parent=15 // pred_check
        %p139 = pneg %p55
      $region22: #{decoder_layer_pallas.11} parent=15 // pred_check_branch
        %141 = sbr.rel (%p139) target = $region24
      $region23: #{decoder_layer_pallas.11} parent=15 // pred_region
        %s142 = smul.u32 2, %s9
        %p143 = scmp.lt.s32.totalorder %s142, 3
        %s144 = scalar_select %p143, %s142, 3
        %s145 = smul.addr %s144, 8
        %s146 = scalar_lea.vmem %s1, %s145
        %s147 = smul.u32 2, %s9
      $region24: #{decoder_layer_pallas.11} parent=15 // pred_fallthru
        _
      // Predicated region
      $region25: #{decoder_layer_pallas.11} parent=15 // pred_check
        %p148 = pneg %p81
      $region26: #{decoder_layer_pallas.11} parent=15 // pred_check_branch
        %150 = sbr.rel (%p148) target = $region28
      $region27: #{decoder_layer_pallas.11} parent=15 // pred_region
        %s151 = smul.u32 2, %s9
        %p152 = scmp.lt.s32.totalorder %s151, 3
        %s153 = scalar_select %p152, %s151, 3
        %s154 = smul.addr %s153, 8
        %s155 = scalar_lea.vmem %s2, %s154
        %s156 = smul.u32 2, %s9
      $region28: #{decoder_layer_pallas.11} parent=15 // pred_fallthru
        _
    $region16: #{decoder_layer_pallas.11} parent=5 // pred_fallthru
      _
    %p157 = scmp.le.s32.totalorder 1, %s9
    %p158 = scmp.lt.s32.totalorder %s9, 3
    %p159 = pnand %p157, %p158
    %p160 = pneg %p159
    // Predicated region
    $region29: #{decoder_layer_pallas.11} parent=5 // pred_check
      _
    $region30: #{decoder_layer_pallas.11} parent=5 // pred_check_branch
      %162 = sbr.rel (%p159) target = $region32
    $region31: #{decoder_layer_pallas.11} parent=5 // pred_region
      %s163 = ssub.s32 %s9, 1
      %p164 = scmp.lt.s32.totalorder %s14, 1
      %s165 = scalar_select %p164, %s14, 1
      %s166 = smul.addr %s165, 8
      %s167 = scalar_lea.vmem %s0, %s166
      %p168 = pneg %p35
      %p169 = pneg %p32
      %s170 = smul.u32 2, %s14
      %p171 = scmp.lt.s32.totalorder %s170, 3
      %s172 = scalar_select %p171, %s170, 3
      %s173 = smul.addr %s172, 8
      %s174 = scalar_lea.vmem %s1, %s173
      %p175 = pneg %p61
      %p176 = pneg %p58
      %s177 = smul.u32 2, %s14
      %p178 = scmp.lt.s32.totalorder %s177, 3
      %s179 = scalar_select %p178, %s177, 3
      %s180 = smul.addr %s179, 8
      %s181 = scalar_lea.vmem %s2, %s180
      %p182 = pneg %p87
      %p183 = pneg %p84
      %p184 = pneg %p113
      %p185 = pneg %p110
      %p186 = scmp.lt.s32.totalorder %s14, 1
      %s187 = scalar_select %p186, %s14, 1
      %s188 = smul.addr %s187, 8
      %s189 = scalar_lea.vmem %s3, %s188
      %p190 = scmp.lt.s32.totalorder %s14, 1
      %s191 = scalar_select %p190, %s14, 1
      %s192 = smul.addr %s191, 8
      %s193 = scalar_lea.vmem %s0, %s192
      %s194 = smul.u32 2, %s14
      %p195 = scmp.lt.s32.totalorder %s194, 3
      %s196 = scalar_select %p195, %s194, 3
      %s197 = smul.addr %s196, 8
      %s198 = scalar_lea.vmem %s1, %s197
      %s199 = smul.u32 2, %s14
      %s200 = smul.u32 2, %s14
      %p201 = scmp.lt.s32.totalorder %s200, 3
      %s202 = scalar_select %p201, %s200, 3
      %s203 = smul.addr %s202, 8
      %s204 = scalar_lea.vmem %s2, %s203
      %s205 = smul.u32 2, %s14
      %p206 = scmp.lt.s32.totalorder %s14, 1
      %s207 = scalar_select %p206, %s14, 1
      %s208 = smul.addr %s207, 8
      %s209 = scalar_lea.vmem %s3, %s208
      %v210 = vld [vmem:[%s193] sm:$0xff]
      %v211 = vld [vmem:[%s198] sm:$0xff]
      %v212 = vld [vmem:[%s198 + $0x8] sm:$0xff]
      %v213 = vld [vmem:[%s204] sm:$0xff]
      %v214 = vld [vmem:[%s204 + $0x8] sm:$0xff]
      %vm215 = vcmask 64512
      %v217 = vsel %vm215, %v210, 0
      %v220 = vsel %vm215, %v211, 0
      %v223 = vsel %vm215, %v212, 0
      %225 = vmatpush.xpose.msra.mxu0 0.0
      %226 = vmatpush.xpose.msra.mxu0 0.0
      %227 = vmatpush.xpose.msra.mxu0 0.0
      %228 = vmatpush.xpose.msra.mxu0 0.0
      %229 = vmatpush.xpose.msra.mxu0 0.0
      %230 = vmatpush.xpose.msra.mxu0 0.0
      %231 = vmatpush.xpose.msra.mxu0 0.0
      %232 = vmatpush.xpose.msra.mxu0 0.0
      %233 = vmatpush.xpose.msra.mxu0 0.0
      %234 = vmatpush.xpose.msra.mxu0 0.0
      %235 = vmatpush.xpose.msra.mxu0 0.0
      %236 = vmatpush.xpose.msra.mxu0 0.0
      %237 = vmatpush.xpose.msra.mxu0 0.0
      %238 = vmatpush.xpose.msra.mxu0 0.0
      %239 = vmatpush.xpose.msra.mxu0 %v223
      %240 = vmatpush.xpose.msra.mxu0 %v220
      %241 = vmatmul.f32.gmra.mxu0 %v217
      %v242 = vpop.f32.mrf.mxu0
      %v243 = vadd.f32 0.0, %v242
      %244 = vdwg.mxu0
      %vm245 = vcmask 130048
      %v246 = vsel %vm245, %v243, -inf
      %247 = vmax.xlane.f32.xlu0 %v246
      %v248 = vpop.xlane.xlu0 %247
      %v249 = vsub.f32 %v243, %v248
      %v250 = vmul.f32 %v249, 1.442695
      %v251 = vpow.pop %v250
      %v252 = vsel %vm245, %v251, 0.0
      %253 = vadd.xlane.f32.xlu0 %v252
      %v254 = vpop.xlane.xlu0 %253
      %v256 = vsel %vm245, %v251, 0
      %258 = vmatpush.msra.mxu0 0.0
      %259 = vmatpush.msra.mxu0 0.0
      %260 = vmatpush.msra.mxu0 0.0
      %261 = vmatpush.msra.mxu0 0.0
      %262 = vmatpush.msra.mxu0 0.0
      %263 = vmatpush.msra.mxu0 0.0
      %264 = vmatpush.msra.mxu0 0.0
      %265 = vmatpush.msra.mxu0 0.0
      %266 = vmatpush.msra.mxu0 0.0
      %267 = vmatpush.msra.mxu0 0.0
      %268 = vmatpush.msra.mxu0 0.0
      %269 = vmatpush.msra.mxu0 0.0
      %270 = vmatpush.msra.mxu0 0.0
      %271 = vmatpush.msra.mxu0 0.0
      %272 = vmatpush.msra.mxu0 %v214
      %273 = vmatpush.msra.mxu0 %v213
      %274 = vmatmul.f32.gmra.mxu0 %v256
      %v275 = vpop.f32.mrf.mxu0
      %v276 = vadd.f32 0.0, %v275
      %277 = vdwg.mxu0
      %v278 = vrcp.pop %v254
      %v279 = vmul.f32 %v276, %v278
      %280 = vrot.lane.b32.xlu0 %v210, 120
      %v281 = vpop.permute.xlu0 %280
      %282 = vrot.lane.b32.xlu0 %v211, 120
      %v283 = vpop.permute.xlu0 %282
      %284 = vrot.lane.b32.xlu0 %v212, 120
      %v285 = vpop.permute.xlu0 %284
      %v286 = vsel %vm215, %v281, 0
      %v288 = vsel %vm215, %v283, 0
      %v290 = vsel %vm215, %v285, 0
      %292 = vmatpush.xpose.msra.mxu0 0.0
      %293 = vmatpush.xpose.msra.mxu0 0.0
      %294 = vmatpush.xpose.msra.mxu0 0.0
      %295 = vmatpush.xpose.msra.mxu0 0.0
      %296 = vmatpush.xpose.msra.mxu0 0.0
      %297 = vmatpush.xpose.msra.mxu0 0.0
      %298 = vmatpush.xpose.msra.mxu0 0.0
      %299 = vmatpush.xpose.msra.mxu0 0.0
      %300 = vmatpush.xpose.msra.mxu0 0.0
      %301 = vmatpush.xpose.msra.mxu0 0.0
      %302 = vmatpush.xpose.msra.mxu0 0.0
      %303 = vmatpush.xpose.msra.mxu0 0.0
      %304 = vmatpush.xpose.msra.mxu0 0.0
      %305 = vmatpush.xpose.msra.mxu0 0.0
      %306 = vmatpush.xpose.msra.mxu0 %v290
      %307 = vmatpush.xpose.msra.mxu0 %v288
      %308 = vmatmul.f32.gmra.mxu0 %v286
      %v309 = vpop.f32.mrf.mxu0
      %v310 = vadd.f32 0.0, %v309
      %311 = vdwg.mxu0
      %v312 = vsel %vm245, %v310, -inf
      %313 = vmax.xlane.f32.xlu0 %v312
      %v314 = vpop.xlane.xlu0 %313
      %v315 = vsub.f32 %v310, %v314
      %v316 = vmul.f32 %v315, 1.442695
      %v317 = vpow.pop %v316
      %v318 = vsel %vm245, %v317, 0.0
      %319 = vadd.xlane.f32.xlu0 %v318
      %v320 = vpop.xlane.xlu0 %319
      %323 = vrot.lane.b32.xlu0 %v213, 120
      %v324 = vpop.permute.xlu0 %323
      %325 = vrot.lane.b32.xlu0 %v214, 120
      %v326 = vpop.permute.xlu0 %325
      %v330 = vsel %vm245, %v317, 0
      %332 = vmatpush.msra.mxu0 0.0
      %333 = vmatpush.msra.mxu0 0.0
      %334 = vmatpush.msra.mxu0 0.0
      %335 = vmatpush.msra.mxu0 0.0
      %336 = vmatpush.msra.mxu0 0.0
      %337 = vmatpush.msra.mxu0 0.0
      %338 = vmatpush.msra.mxu0 0.0
      %339 = vmatpush.msra.mxu0 0.0
      %340 = vmatpush.msra.mxu0 0.0
      %341 = vmatpush.msra.mxu0 0.0
      %342 = vmatpush.msra.mxu0 0.0
      %343 = vmatpush.msra.mxu0 0.0
      %344 = vmatpush.msra.mxu0 0.0
      %345 = vmatpush.msra.mxu0 0.0
      %346 = vmatpush.msra.mxu0 %v326
      %347 = vmatpush.msra.mxu0 %v324
      %348 = vmatmul.f32.gmra.mxu0 %v330
      %v349 = vpop.f32.mrf.mxu0
      %v350 = vadd.f32 0.0, %v349
      %351 = vdwg.mxu0
      %v352 = vrcp.pop %v320
      %v353 = vmul.f32 %v350, %v352
      %354 = vrot.lane.b32.xlu0 %v210, 112
      %v355 = vpop.permute.xlu0 %354
      %356 = vrot.lane.b32.xlu0 %v211, 112
      %v357 = vpop.permute.xlu0 %356
      %358 = vrot.lane.b32.xlu0 %v212, 112
      %v359 = vpop.permute.xlu0 %358
      %v360 = vsel %vm215, %v355, 0
      %v362 = vsel %vm215, %v357, 0
      %v364 = vsel %vm215, %v359, 0
      %366 = vmatpush.xpose.msra.mxu0 0.0
      %367 = vmatpush.xpose.msra.mxu0 0.0
      %368 = vmatpush.xpose.msra.mxu0 0.0
      %369 = vmatpush.xpose.msra.mxu0 0.0
      %370 = vmatpush.xpose.msra.mxu0 0.0
      %371 = vmatpush.xpose.msra.mxu0 0.0
      %372 = vmatpush.xpose.msra.mxu0 0.0
      %373 = vmatpush.xpose.msra.mxu0 0.0
      %374 = vmatpush.xpose.msra.mxu0 0.0
      %375 = vmatpush.xpose.msra.mxu0 0.0
      %376 = vmatpush.xpose.msra.mxu0 0.0
      %377 = vmatpush.xpose.msra.mxu0 0.0
      %378 = vmatpush.xpose.msra.mxu0 0.0
      %379 = vmatpush.xpose.msra.mxu0 0.0
      %380 = vmatpush.xpose.msra.mxu0 %v364
      %381 = vmatpush.xpose.msra.mxu0 %v362
      %382 = vmatmul.f32.gmra.mxu0 %v360
      %v383 = vpop.f32.mrf.mxu0
      %v384 = vadd.f32 0.0, %v383
      %385 = vdwg.mxu0
      %v386 = vsel %vm245, %v384, -inf
      %387 = vmax.xlane.f32.xlu0 %v386
      %v388 = vpop.xlane.xlu0 %387
      %v389 = vsub.f32 %v384, %v388
      %v390 = vmul.f32 %v389, 1.442695
      %v391 = vpow.pop %v390
      %v392 = vsel %vm245, %v391, 0.0
      %393 = vadd.xlane.f32.xlu0 %v392
      %v394 = vpop.xlane.xlu0 %393
      %395 = vrot.lane.b32.xlu0 %v213, 112
      %v396 = vpop.permute.xlu0 %395
      %397 = vrot.lane.b32.xlu0 %v214, 112
      %v398 = vpop.permute.xlu0 %397
      %v402 = vsel %vm245, %v391, 0
      %404 = vmatpush.msra.mxu0 0.0
      %405 = vmatpush.msra.mxu0 0.0
      %406 = vmatpush.msra.mxu0 0.0
      %407 = vmatpush.msra.mxu0 0.0
      %408 = vmatpush.msra.mxu0 0.0
      %409 = vmatpush.msra.mxu0 0.0
      %410 = vmatpush.msra.mxu0 0.0
      %411 = vmatpush.msra.mxu0 0.0
      %412 = vmatpush.msra.mxu0 0.0
      %413 = vmatpush.msra.mxu0 0.0
      %414 = vmatpush.msra.mxu0 0.0
      %415 = vmatpush.msra.mxu0 0.0
      %416 = vmatpush.msra.mxu0 0.0
      %417 = vmatpush.msra.mxu0 0.0
      %418 = vmatpush.msra.mxu0 %v398
      %419 = vmatpush.msra.mxu0 %v396
      %420 = vmatmul.f32.gmra.mxu0 %v402
      %v421 = vpop.f32.mrf.mxu0
      %v422 = vadd.f32 0.0, %v421
      %423 = vdwg.mxu0
      %v424 = vrcp.pop %v394
      %v425 = vmul.f32 %v422, %v424
      %426 = vrot.lane.b32.xlu0 %v210, 104
      %v427 = vpop.permute.xlu0 %426
      %428 = vrot.lane.b32.xlu0 %v211, 104
      %v429 = vpop.permute.xlu0 %428
      %430 = vrot.lane.b32.xlu0 %v212, 104
      %v431 = vpop.permute.xlu0 %430
      %v432 = vsel %vm215, %v427, 0
      %v434 = vsel %vm215, %v429, 0
      %v436 = vsel %vm215, %v431, 0
      %438 = vmatpush.xpose.msra.mxu0 0.0
      %439 = vmatpush.xpose.msra.mxu0 0.0
      %440 = vmatpush.xpose.msra.mxu0 0.0
      %441 = vmatpush.xpose.msra.mxu0 0.0
      %442 = vmatpush.xpose.msra.mxu0 0.0
      %443 = vmatpush.xpose.msra.mxu0 0.0
      %444 = vmatpush.xpose.msra.mxu0 0.0
      %445 = vmatpush.xpose.msra.mxu0 0.0
      %446 = vmatpush.xpose.msra.mxu0 0.0
      %447 = vmatpush.xpose.msra.mxu0 0.0
      %448 = vmatpush.xpose.msra.mxu0 0.0
      %449 = vmatpush.xpose.msra.mxu0 0.0
      %450 = vmatpush.xpose.msra.mxu0 0.0
      %451 = vmatpush.xpose.msra.mxu0 0.0
      %452 = vmatpush.xpose.msra.mxu0 %v436
      %453 = vmatpush.xpose.msra.mxu0 %v434
      %454 = vmatmul.f32.gmra.mxu0 %v432
      %v455 = vpop.f32.mrf.mxu0
      %v456 = vadd.f32 0.0, %v455
      %457 = vdwg.mxu0
      %v458 = vsel %vm245, %v456, -inf
      %459 = vmax.xlane.f32.xlu0 %v458
      %v460 = vpop.xlane.xlu0 %459
      %v461 = vsub.f32 %v456, %v460
      %v462 = vmul.f32 %v461, 1.442695
      %v463 = vpow.pop %v462
      %v464 = vsel %vm245, %v463, 0.0
      %465 = vadd.xlane.f32.xlu0 %v464
      %v466 = vpop.xlane.xlu0 %465
      %467 = vrot.lane.b32.xlu0 %v213, 104
      %v468 = vpop.permute.xlu0 %467
      %469 = vrot.lane.b32.xlu0 %v214, 104
      %v470 = vpop.permute.xlu0 %469
      %v474 = vsel %vm245, %v463, 0
      %476 = vmatpush.msra.mxu0 0.0
      %477 = vmatpush.msra.mxu0 0.0
      %478 = vmatpush.msra.mxu0 0.0
      %479 = vmatpush.msra.mxu0 0.0
      %480 = vmatpush.msra.mxu0 0.0
      %481 = vmatpush.msra.mxu0 0.0
      %482 = vmatpush.msra.mxu0 0.0
      %483 = vmatpush.msra.mxu0 0.0
      %484 = vmatpush.msra.mxu0 0.0
      %485 = vmatpush.msra.mxu0 0.0
      %486 = vmatpush.msra.mxu0 0.0
      %487 = vmatpush.msra.mxu0 0.0
      %488 = vmatpush.msra.mxu0 0.0
      %489 = vmatpush.msra.mxu0 0.0
      %490 = vmatpush.msra.mxu0 %v470
      %491 = vmatpush.msra.mxu0 %v468
      %492 = vmatmul.f32.gmra.mxu0 %v474
      %v493 = vpop.f32.mrf.mxu0
      %v494 = vadd.f32 0.0, %v493
      %495 = vdwg.mxu0
      %v496 = vrcp.pop %v466
      %v497 = vmul.f32 %v494, %v496
      %499 = vrot.lane.b32.xlu0 %v353, 8
      %v500 = vpop.permute.xlu0 %499
      %503 = vrot.lane.b32.xlu0 %v425, 16
      %v504 = vpop.permute.xlu0 %503
      %507 = vrot.lane.b32.xlu0 %v497, 24
      %v508 = vpop.permute.xlu0 %507
      %v510 = vsel %vm215, %v279, %v500
      %v511 = vsel %vm245, %v510, %v504
      %vm512 = vcmask 195584
      %v513 = vsel %vm512, %v511, %v508
      %vm514 = vcmask 261120
      %515 = vst.msk [vmem:[%s209] sm:$0xff] %vm514, %v513
      %p516 = scmp.lt.s32.totalorder %s14, 1
      %s517 = scalar_select %p516, %s14, 1
      %s518 = smul.addr %s517, 8
      %s519 = scalar_lea.vmem %s3, %s518
      // Predicated region
      $region33: #{decoder_layer_pallas.11} parent=31 // pred_check
        %p520 = pneg %p110
      $region34: #{decoder_layer_pallas.11} parent=31 // pred_check_branch
        %522 = sbr.rel (%p520) target = $region36
      $region35: #{decoder_layer_pallas.11} parent=31 // pred_region
        _
      $region36: #{decoder_layer_pallas.11} parent=31 // pred_fallthru
        _
    $region32: #{decoder_layer_pallas.11} parent=5 // pred_fallthru
      _
    %p523 = scmp.le.s32.totalorder 2, %s9
    // Predicated region
    $region37: #{decoder_layer_pallas.11} parent=5 // pred_check
      %p524 = pneg %p523
    $region38: #{decoder_layer_pallas.11} parent=5 // pred_check_branch
      %526 = sbr.rel (%p524) target = $region40
    $region39: #{decoder_layer_pallas.11} parent=5 // pred_region
      %s527 = ssub.s32 %s9, 2
      // Predicated region
      $region41: #{decoder_layer_pallas.11} parent=39 // pred_check
        %p528 = pneg %p116
      $region42: #{decoder_layer_pallas.11} parent=39 // pred_check_branch
        %530 = sbr.rel (%p528) target = $region44
      $region43: #{decoder_layer_pallas.11} parent=39 // pred_region
        %p531 = scmp.lt.s32.totalorder %s15, 1
        %s532 = scalar_select %p531, %s15, 1
        %s533 = smul.addr %s532, 8
        %s534 = scalar_lea.vmem %s3, %s533
      $region44: #{decoder_layer_pallas.11} parent=39 // pred_fallthru
        _
    $region40: #{decoder_layer_pallas.11} parent=5 // pred_fallthru
      _
  $region6: #{decoder_layer_pallas.11} parent=0 // loop_footer
    %s13 = sadd.s32 1, %s9
  $region7: #{decoder_layer_pallas.11} parent=0 // loop_footer_branch
    %8 = sbr.rel target = $region3
  $region8: #{decoder_layer_pallas.11} parent=0 // loop_exit
    _

</llo_original>
